<compile_context>
chip_gen: v7x
topology: tpu7x:2x2x1
jax: 0.10.0
libtpu: 0.0.40
codegen_flags: <defaults>
</compile_context>

<pallas_src>
import functools

import jax
import jax.numpy as jnp
import numpy as np
from jax.experimental import pallas as pl
from jax.experimental.pallas import tpu as pltpu


# ----------------------------------------------------------------------------
# Pallas kernel: Linear + bias + ReLU (single block; lane dim = N = 3136).
# ----------------------------------------------------------------------------
def _linear_relu_kernel(x_ref, w_ref, b_ref, o_ref):
    acc = jnp.dot(x_ref[...], w_ref[...], preferred_element_type=jnp.float32)
    acc = acc + b_ref[...]                       # (1, N) broadcast
    o_ref[...] = jnp.maximum(acc, 0.0).astype(o_ref.dtype)


def linear_relu(x, w, b, *, out_dtype):
    """x: (B, K) @ w: (K, N) + b: (1, N), ReLU -> (B, N)."""
    B, K = x.shape
    N = w.shape[1]
    return pl.pallas_call(
        _linear_relu_kernel,
        out_shape=jax.ShapeDtypeStruct((B, N), out_dtype),
        grid=(1,),
        in_specs=[
            pl.BlockSpec((B, K), lambda i: (0, 0)),
            pl.BlockSpec((K, N), lambda i: (0, 0)),
            pl.BlockSpec((1, N), lambda i: (0, 0)),
        ],
        out_specs=pl.BlockSpec((B, N), lambda i: (0, 0)),
    )(x, w, b)


# ----------------------------------------------------------------------------
# Pallas kernel: phase-decomposed deconv contraction, gridded over batch.
#   (4*Cout, 4*Cin) @ (4*Cin, Mp) + bias [+ ReLU], Mp = (H+1)*(W+1) lane-dense.
# ----------------------------------------------------------------------------
def _deconv_phase_kernel(p_ref, w_ref, b_ref, o_ref, *, relu):
    acc = jnp.dot(w_ref[...], p_ref[0], preferred_element_type=jnp.float32)
    acc = acc + b_ref[...]                       # (4*Cout, 1) broadcast over lanes
    if relu:
        acc = jnp.maximum(acc, 0.0)
    o_ref[0] = acc.astype(o_ref.dtype)


def _deconv_phase_matmul(patches, w_mat, b_col, *, relu, out_dtype):
    """patches: (B, 4*Cin, Mp); w_mat: (4*Cout, 4*Cin); b_col: (4*Cout, 1)."""
    B, K4, Mp = patches.shape
    R = w_mat.shape[0]
    kernel = functools.partial(_deconv_phase_kernel, relu=relu)
    return pl.pallas_call(
        kernel,
        out_shape=jax.ShapeDtypeStruct((B, R, Mp), out_dtype),
        grid=(B,),
        in_specs=[
            pl.BlockSpec((1, K4, Mp), lambda b: (b, 0, 0)),   # per-batch taps
            pl.BlockSpec((R, K4), lambda b: (0, 0)),          # phase weights
            pl.BlockSpec((R, 1), lambda b: (0, 0)),           # bias column
        ],
        out_specs=pl.BlockSpec((1, R, Mp), lambda b: (b, 0, 0)),
        compiler_params=pltpu.CompilerParams(dimension_semantics=("parallel",)),
    )(patches, w_mat, b_col)


# ----------------------------------------------------------------------------
# ConvTranspose2d(kernel=4, stride=2, padding=0) on NCHW input via the
# sub-pixel decomposition:
#   y[2a+ph, 2b+pw, co] = sum_{oh,ow in {0,1}} sum_ci
#       xpad[ci, a+oh, b+ow] * w[ci, co, ph + 2*(1-oh), pw + 2*(1-ow)]
# where xpad is x zero-padded by 1 on each spatial side.
# ----------------------------------------------------------------------------
def conv_transpose2d_s2k4(x_nchw, wt, bias, *, relu, out_dtype,
                          compute_dtype=jnp.bfloat16):
    """x_nchw: (B, Cin, H, W); wt: (Cin, Cout, 4, 4) [PyTorch]; bias: (Cout,)."""
    B, Cin, H, W = x_nchw.shape
    Cout = wt.shape[1]
    Hp1, Wp1 = H + 1, W + 1
    Mp = Hp1 * Wp1

    # 4-tap patch matrix on the UNdilated input (thin XLA glue; only 4x copy).
    xp = jnp.pad(x_nchw.astype(compute_dtype), ((0, 0), (0, 0), (1, 1), (1, 1)))
    taps = [xp[:, :, oh:oh + Hp1, ow:ow + Wp1] for oh in (0, 1) for ow in (0, 1)]
    patches = jnp.concatenate(taps, axis=1).reshape(B, 4 * Cin, Mp)

    # Phase weight matrix: Wm[(ph,pw,co),(oh,ow,ci)] = wt[ci,co,ph+2(1-oh),pw+2(1-ow)]
    w6 = wt.reshape(Cin, Cout, 2, 2, 2, 2)          # (ci, co, mh, ph, mw, pw), kh = 2*mh+ph
    w6 = w6[:, :, ::-1, :, ::-1, :]                  # mh -> oh = 1 - mh
    w_mat = jnp.transpose(w6, (3, 5, 1, 2, 4, 0)).reshape(4 * Cout, 4 * Cin)
    w_mat = w_mat.astype(compute_dtype)
    b_col = jnp.tile(bias, 4).reshape(4 * Cout, 1).astype(jnp.float32)

    out = _deconv_phase_matmul(patches, w_mat, b_col, relu=relu, out_dtype=out_dtype)

    # Interleave the 2x2 output phases back into the spatial grid (tiny glue).
    out = out.reshape(B, 2, 2, Cout, Hp1, Wp1)
    out = jnp.transpose(out, (0, 3, 4, 1, 5, 2))     # (B, Cout, a, ph, b, pw)
    return out.reshape(B, Cout, 2 * Hp1, 2 * Wp1)


# ----------------------------------------------------------------------------
# Full Generator forward (Pallas path).
# ----------------------------------------------------------------------------
def generator_forward(x, p, *, compute_dtype=jnp.bfloat16):
    """x: (B, latent_dim) float32  ->  (B, 1, 70, 70) float32 (NCHW)."""
    B = x.shape[0]
    h = linear_relu(
        x.astype(compute_dtype),
        p["lin_w"].astype(compute_dtype),
        p["lin_b"].reshape(1, -1).astype(jnp.float32),
        out_dtype=compute_dtype,
    )
    # X.view(-1, 64, 7, 7): already NCHW, kept NCHW end to end (no transpose).
    h = h.reshape(B, 64, 7, 7)
    h = conv_transpose2d_s2k4(h, p["ct1_w"], p["ct1_b"], relu=True,
                              out_dtype=compute_dtype, compute_dtype=compute_dtype)
    h = conv_transpose2d_s2k4(h, p["ct2_w"], p["ct2_b"], relu=True,
                              out_dtype=compute_dtype, compute_dtype=compute_dtype)
    h = conv_transpose2d_s2k4(h, p["conv_w"], p["conv_b"], relu=False,
                              out_dtype=jnp.float32, compute_dtype=compute_dtype)
    return h                                          # (B, 1, 70, 70) NCHW


# ----------------------------------------------------------------------------
# Pure-JAX f32 reference (XLA dilated conv) for a correctness check.
# ----------------------------------------------------------------------------
def generator_reference(x, p):
    B = x.shape[0]
    h = jnp.maximum(x @ p["lin_w"] + p["lin_b"], 0.0)
    h = h.reshape(B, 64, 7, 7).transpose(0, 2, 3, 1)

    def ct_ref(xn, wt, b, relu):
        w_hwio = jnp.transpose(wt[:, :, ::-1, ::-1], (2, 3, 0, 1))
        y = jax.lax.conv_general_dilated(
            xn, w_hwio, window_strides=(1, 1), padding=((3, 3), (3, 3)),
            lhs_dilation=(2, 2), dimension_numbers=("NHWC", "HWIO", "NHWC"))
        y = y + b[None, None, None, :]
        return jnp.maximum(y, 0.0) if relu else y

    h = ct_ref(h, p["ct1_w"], p["ct1_b"], True)
    h = ct_ref(h, p["ct2_w"], p["ct2_b"], True)
    h = ct_ref(h, p["conv_w"], p["conv_b"], False)
    return h.transpose(0, 3, 1, 2)


# ----------------------------------------------------------------------------
# Deterministic parameter construction (shapes from Generator.__init__).
# ----------------------------------------------------------------------------
def init_params(latent_dim, key):
    ks = jax.random.split(key, 8)

    def u(k, shape, fan_in):
        lim = 1.0 / np.sqrt(fan_in)
        return jax.random.uniform(k, shape, jnp.float32, -lim, lim)

    return {
        # Linear(latent, 3136); stored as (latent, 3136) = W.T
        "lin_w": u(ks[0], (latent_dim, 7 * 7 * 64), latent_dim),
        "lin_b": u(ks[1], (7 * 7 * 64,), latent_dim),
        # ConvTranspose2d weights in PyTorch layout (Cin, Cout, kH, kW)
        "ct1_w": u(ks[2], (64, 32, 4, 4), 64 * 16),
        "ct1_b": u(ks[3], (32,), 64 * 16),
        "ct2_w": u(ks[4], (32, 16, 4, 4), 32 * 16),
        "ct2_b": u(ks[5], (16,), 32 * 16),
        "conv_w": u(ks[6], (16, 1, 4, 4), 16 * 16),
        "conv_b": u(ks[7], (1,), 16 * 16),
    }


if __name__ == "__main__":
    latent_dim = 64
    batch = 2
    key = jax.random.PRNGKey(0)
    k_param, k_x = jax.random.split(key)

    params = init_params(latent_dim, k_param)
    x = jax.random.normal(k_x, (batch, latent_dim), jnp.float32)

    fwd = jax.jit(generator_forward)
    out = jax.block_until_ready(fwd(x, params))

    assert out.shape == (batch, 1, 70, 70), out.shape

    ref = jax.block_until_ready(jax.jit(generator_reference)(x, params))
    np.testing.assert_allclose(np.asarray(out), np.asarray(ref), rtol=2e-2, atol=2e-2)

    print("KERNEL_OK")
</pallas_src>

<mosaic_0001>
module attributes {stable_mosaic.version = 11 : i64} {
  func.func @_linear_relu_kernel(%arg0: i32, %arg1: memref<2x64xbf16, #tpu.memory_space<vmem>>, %arg2: memref<64x3136xbf16, #tpu.memory_space<vmem>>, %arg3: memref<1x3136xf32, #tpu.memory_space<vmem>>, %arg4: memref<2x3136xbf16, #tpu.memory_space<vmem>>) attributes {dimension_semantics = [#tpu.dimension_semantics<arbitrary>], iteration_bounds = array<i64: 1>, scalar_prefetch = 0 : i64, scratch_operands = 0 : i64, tpu.core_type = #tpu.core_type<tc>, window_params = [{pipeline_mode = #tpu.pipeline_mode<synchronous>, transform_indices = @transform_0, window_bounds = array<i64: 2, 64>}, {pipeline_mode = #tpu.pipeline_mode<synchronous>, transform_indices = @transform_1, window_bounds = array<i64: 64, 3136>}, {pipeline_mode = #tpu.pipeline_mode<synchronous>, transform_indices = @transform_2, window_bounds = array<i64: 1, 3136>}, {pipeline_mode = #tpu.pipeline_mode<synchronous>, transform_indices = @transform_3, window_bounds = array<i64: 2, 3136>}]} {
    %c0 = arith.constant 0 : index
    %c0_0 = arith.constant 0 : index
    %0 = vector.load %arg1[%c0, %c0_0] : memref<2x64xbf16, #tpu.memory_space<vmem>>, vector<2x64xbf16>
    %c0_1 = arith.constant 0 : index
    %c0_2 = arith.constant 0 : index
    %1 = vector.load %arg2[%c0_1, %c0_2] : memref<64x3136xbf16, #tpu.memory_space<vmem>>, vector<64x3136xbf16>
    %cst = arith.constant dense<0.000000e+00> : vector<2x3136xf32>
    %2 = tpu.matmul %0, %1, %cst {dimension_numbers = #tpu.dot_dimension_numbers<[1], [0], [0], [1], [0, 0, 1, 1], [], []>} : vector<2x64xbf16>, vector<64x3136xbf16>, vector<2x3136xf32> -> vector<2x3136xf32>
    %c0_3 = arith.constant 0 : index
    %c0_4 = arith.constant 0 : index
    %3 = vector.load %arg3[%c0_3, %c0_4] : memref<1x3136xf32, #tpu.memory_space<vmem>>, vector<1x3136xf32>
    %4 = vector.broadcast %3 : vector<1x3136xf32> to vector<2x3136xf32>
    %5 = arith.addf %2, %4 : vector<2x3136xf32>
    %cst_5 = arith.constant 0.000000e+00 : f32
    %6 = vector.broadcast %cst_5 : f32 to vector<2x3136xf32>
    %7 = arith.maximumf %5, %6 : vector<2x3136xf32>
    %8 = arith.truncf %7 : vector<2x3136xf32> to vector<2x3136xbf16>
    %c0_6 = arith.constant 0 : index
    %c0_7 = arith.constant 0 : index
    %9 = vector.load %arg4[%c0_6, %c0_7] : memref<2x3136xbf16, #tpu.memory_space<vmem>>, vector<2x3136xbf16>
    tpu.vector_store %arg4[%c0_6, %c0_7], %8 {strides = array<i32>} : memref<2x3136xbf16, #tpu.memory_space<vmem>>, vector<2x3136xbf16>,
    return
  }
  func.func @transform_0(%arg0: i32) -> (i32, i32) {
    %c0_i32 = arith.constant 0 : i32
    %c0_i32_0 = arith.constant 0 : i32
    %c0_i32_1 = arith.constant 0 : i32
    return %c0_i32, %c0_i32_0 : i32, i32
  }
  func.func @transform_1(%arg0: i32) -> (i32, i32) {
    %c0_i32 = arith.constant 0 : i32
    %c0_i32_0 = arith.constant 0 : i32
    %c0_i32_1 = arith.constant 0 : i32
    return %c0_i32, %c0_i32_0 : i32, i32
  }
  func.func @transform_2(%arg0: i32) -> (i32, i32) {
    %c0_i32 = arith.constant 0 : i32
    %c0_i32_0 = arith.constant 0 : i32
    %c0_i32_1 = arith.constant 0 : i32
    return %c0_i32, %c0_i32_0 : i32, i32
  }
  func.func @transform_3(%arg0: i32) -> (i32, i32) {
    %c0_i32 = arith.constant 0 : i32
    %c0_i32_0 = arith.constant 0 : i32
    %c0_i32_1 = arith.constant 0 : i32
    return %c0_i32, %c0_i32_0 : i32, i32
  }
}

module attributes {stable_mosaic.version = 11 : i64} {
  func.func @_deconv_phase_kernel(%arg0: i32, %arg1: memref<1x256x64xbf16, #tpu.memory_space<vmem>>, %arg2: memref<128x256xbf16, #tpu.memory_space<vmem>>, %arg3: memref<128x1xf32, #tpu.memory_space<vmem>>, %arg4: memref<1x128x64xbf16, #tpu.memory_space<vmem>>) attributes {dimension_semantics = [#tpu.dimension_semantics<parallel>], iteration_bounds = array<i64: 2>, scalar_prefetch = 0 : i64, scratch_operands = 0 : i64, tpu.core_type = #tpu.core_type<tc>, window_params = [{transform_indices = @transform_0, window_bounds = array<i64: 1, 256, 64>}, {pipeline_mode = #tpu.pipeline_mode<synchronous>, transform_indices = @transform_1, window_bounds = array<i64: 128, 256>}, {pipeline_mode = #tpu.pipeline_mode<synchronous>, transform_indices = @transform_2, window_bounds = array<i64: 128, 1>}, {transform_indices = @transform_3, window_bounds = array<i64: 1, 128, 64>}]} {
    %c0 = arith.constant 0 : index
    %c0_0 = arith.constant 0 : index
    %0 = vector.load %arg2[%c0, %c0_0] : memref<128x256xbf16, #tpu.memory_space<vmem>>, vector<128x256xbf16>
    %c0_1 = arith.constant 0 : index
    %c0_2 = arith.constant 0 : index
    %c0_3 = arith.constant 0 : index
    %1 = vector.load %arg1[%c0_1, %c0_2, %c0_3] : memref<1x256x64xbf16, #tpu.memory_space<vmem>>, vector<1x256x64xbf16>
    %2 = vector.shape_cast %1 : vector<1x256x64xbf16> to vector<256x64xbf16>
    %cst = arith.constant dense<0.000000e+00> : vector<128x64xf32>
    %3 = tpu.matmul %0, %2, %cst {dimension_numbers = #tpu.dot_dimension_numbers<[1], [0], [0], [1], [0, 0, 1, 1], [], []>} : vector<128x256xbf16>, vector<256x64xbf16>, vector<128x64xf32> -> vector<128x64xf32>
    %c0_4 = arith.constant 0 : index
    %c0_5 = arith.constant 0 : index
    %4 = vector.load %arg3[%c0_4, %c0_5] : memref<128x1xf32, #tpu.memory_space<vmem>>, vector<128x1xf32>
    %5 = vector.broadcast %4 : vector<128x1xf32> to vector<128x64xf32>
    %6 = arith.addf %3, %5 : vector<128x64xf32>
    %cst_6 = arith.constant 0.000000e+00 : f32
    %7 = vector.broadcast %cst_6 : f32 to vector<128x64xf32>
    %8 = arith.maximumf %6, %7 : vector<128x64xf32>
    %9 = arith.truncf %8 : vector<128x64xf32> to vector<128x64xbf16>
    %c0_7 = arith.constant 0 : index
    %c0_8 = arith.constant 0 : index
    %c0_9 = arith.constant 0 : index
    %10 = vector.load %arg4[%c0_7, %c0_8, %c0_9] : memref<1x128x64xbf16, #tpu.memory_space<vmem>>, vector<1x128x64xbf16>
    %11 = vector.shape_cast %10 : vector<1x128x64xbf16> to vector<128x64xbf16>
    %12 = vector.shape_cast %9 : vector<128x64xbf16> to vector<1x128x64xbf16>
    tpu.vector_store %arg4[%c0_7, %c0_8, %c0_9], %12 {strides = array<i32>} : memref<1x128x64xbf16, #tpu.memory_space<vmem>>, vector<1x128x64xbf16>,
    return
  }
  func.func @transform_0(%arg0: i32) -> (i32, i32, i32) {
    %c0_i32 = arith.constant 0 : i32
    %c0_i32_0 = arith.constant 0 : i32
    %c0_i32_1 = arith.constant 0 : i32
    return %arg0, %c0_i32, %c0_i32_0 : i32, i32, i32
  }
  func.func @transform_1(%arg0: i32) -> (i32, i32) {
    %c0_i32 = arith.constant 0 : i32
    %c0_i32_0 = arith.constant 0 : i32
    %c0_i32_1 = arith.constant 0 : i32
    return %c0_i32, %c0_i32_0 : i32, i32
  }
  func.func @transform_2(%arg0: i32) -> (i32, i32) {
    %c0_i32 = arith.constant 0 : i32
    %c0_i32_0 = arith.constant 0 : i32
    %c0_i32_1 = arith.constant 0 : i32
    return %c0_i32, %c0_i32_0 : i32, i32
  }
  func.func @transform_3(%arg0: i32) -> (i32, i32, i32) {
    %c0_i32 = arith.constant 0 : i32
    %c0_i32_0 = arith.constant 0 : i32
    %c0_i32_1 = arith.constant 0 : i32
    return %arg0, %c0_i32, %c0_i32_0 : i32, i32, i32
  }
}

module attributes {stable_mosaic.version = 11 : i64} {
  func.func @_deconv_phase_kernel(%arg0: i32, %arg1: memref<1x128x289xbf16, #tpu.memory_space<vmem>>, %arg2: memref<64x128xbf16, #tpu.memory_space<vmem>>, %arg3: memref<64x1xf32, #tpu.memory_space<vmem>>, %arg4: memref<1x64x289xbf16, #tpu.memory_space<vmem>>) attributes {dimension_semantics = [#tpu.dimension_semantics<parallel>], iteration_bounds = array<i64: 2>, scalar_prefetch = 0 : i64, scratch_operands = 0 : i64, tpu.core_type = #tpu.core_type<tc>, window_params = [{transform_indices = @transform_0, window_bounds = array<i64: 1, 128, 289>}, {pipeline_mode = #tpu.pipeline_mode<synchronous>, transform_indices = @transform_1, window_bounds = array<i64: 64, 128>}, {pipeline_mode = #tpu.pipeline_mode<synchronous>, transform_indices = @transform_2, window_bounds = array<i64: 64, 1>}, {transform_indices = @transform_3, window_bounds = array<i64: 1, 64, 289>}]} {
    %c0 = arith.constant 0 : index
    %c0_0 = arith.constant 0 : index
    %0 = vector.load %arg2[%c0, %c0_0] : memref<64x128xbf16, #tpu.memory_space<vmem>>, vector<64x128xbf16>
    %c0_1 = arith.constant 0 : index
    %c0_2 = arith.constant 0 : index
    %c0_3 = arith.constant 0 : index
    %1 = vector.load %arg1[%c0_1, %c0_2, %c0_3] : memref<1x128x289xbf16, #tpu.memory_space<vmem>>, vector<1x128x289xbf16>
    %2 = vector.shape_cast %1 : vector<1x128x289xbf16> to vector<128x289xbf16>
    %cst = arith.constant dense<0.000000e+00> : vector<64x289xf32>
    %3 = tpu.matmul %0, %2, %cst {dimension_numbers = #tpu.dot_dimension_numbers<[1], [0], [0], [1], [0, 0, 1, 1], [], []>} : vector<64x128xbf16>, vector<128x289xbf16>, vector<64x289xf32> -> vector<64x289xf32>
    %c0_4 = arith.constant 0 : index
    %c0_5 = arith.constant 0 : index
    %4 = vector.load %arg3[%c0_4, %c0_5] : memref<64x1xf32, #tpu.memory_space<vmem>>, vector<64x1xf32>
    %5 = vector.broadcast %4 : vector<64x1xf32> to vector<64x289xf32>
    %6 = arith.addf %3, %5 : vector<64x289xf32>
    %cst_6 = arith.constant 0.000000e+00 : f32
    %7 = vector.broadcast %cst_6 : f32 to vector<64x289xf32>
    %8 = arith.maximumf %6, %7 : vector<64x289xf32>
    %9 = arith.truncf %8 : vector<64x289xf32> to vector<64x289xbf16>
    %c0_7 = arith.constant 0 : index
    %c0_8 = arith.constant 0 : index
    %c0_9 = arith.constant 0 : index
    %10 = vector.load %arg4[%c0_7, %c0_8, %c0_9] : memref<1x64x289xbf16, #tpu.memory_space<vmem>>, vector<1x64x289xbf16>
    %11 = vector.shape_cast %10 : vector<1x64x289xbf16> to vector<64x289xbf16>
    %12 = vector.shape_cast %9 : vector<64x289xbf16> to vector<1x64x289xbf16>
    tpu.vector_store %arg4[%c0_7, %c0_8, %c0_9], %12 {strides = array<i32>} : memref<1x64x289xbf16, #tpu.memory_space<vmem>>, vector<1x64x289xbf16>,
    return
  }
  func.func @transform_0(%arg0: i32) -> (i32, i32, i32) {
    %c0_i32 = arith.constant 0 : i32
    %c0_i32_0 = arith.constant 0 : i32
    %c0_i32_1 = arith.constant 0 : i32
    return %arg0, %c0_i32, %c0_i32_0 : i32, i32, i32
  }
  func.func @transform_1(%arg0: i32) -> (i32, i32) {
    %c0_i32 = arith.constant 0 : i32
    %c0_i32_0 = arith.constant 0 : i32
    %c0_i32_1 = arith.constant 0 : i32
    return %c0_i32, %c0_i32_0 : i32, i32
  }
  func.func @transform_2(%arg0: i32) -> (i32, i32) {
    %c0_i32 = arith.constant 0 : i32
    %c0_i32_0 = arith.constant 0 : i32
    %c0_i32_1 = arith.constant 0 : i32
    return %c0_i32, %c0_i32_0 : i32, i32
  }
  func.func @transform_3(%arg0: i32) -> (i32, i32, i32) {
    %c0_i32 = arith.constant 0 : i32
    %c0_i32_0 = arith.constant 0 : i32
    %c0_i32_1 = arith.constant 0 : i32
    return %arg0, %c0_i32, %c0_i32_0 : i32, i32, i32
  }
}

module attributes {stable_mosaic.version = 11 : i64} {
  func.func @_deconv_phase_kernel(%arg0: i32, %arg1: memref<1x64x1225xbf16, #tpu.memory_space<vmem>>, %arg2: memref<4x64xbf16, #tpu.memory_space<vmem>>, %arg3: memref<4x1xf32, #tpu.memory_space<vmem>>, %arg4: memref<1x4x1225xf32, #tpu.memory_space<vmem>>) attributes {dimension_semantics = [#tpu.dimension_semantics<parallel>], iteration_bounds = array<i64: 2>, scalar_prefetch = 0 : i64, scratch_operands = 0 : i64, tpu.core_type = #tpu.core_type<tc>, window_params = [{transform_indices = @transform_0, window_bounds = array<i64: 1, 64, 1225>}, {pipeline_mode = #tpu.pipeline_mode<synchronous>, transform_indices = @transform_1, window_bounds = array<i64: 4, 64>}, {pipeline_mode = #tpu.pipeline_mode<synchronous>, transform_indices = @transform_2, window_bounds = array<i64: 4, 1>}, {transform_indices = @transform_3, window_bounds = array<i64: 1, 4, 1225>}]} {
    %c0 = arith.constant 0 : index
    %c0_0 = arith.constant 0 : index
    %0 = vector.load %arg2[%c0, %c0_0] : memref<4x64xbf16, #tpu.memory_space<vmem>>, vector<4x64xbf16>
    %c0_1 = arith.constant 0 : index
    %c0_2 = arith.constant 0 : index
    %c0_3 = arith.constant 0 : index
    %1 = vector.load %arg1[%c0_1, %c0_2, %c0_3] : memref<1x64x1225xbf16, #tpu.memory_space<vmem>>, vector<1x64x1225xbf16>
    %2 = vector.shape_cast %1 : vector<1x64x1225xbf16> to vector<64x1225xbf16>
    %cst = arith.constant dense<0.000000e+00> : vector<4x1225xf32>
    %3 = tpu.matmul %0, %2, %cst {dimension_numbers = #tpu.dot_dimension_numbers<[1], [0], [0], [1], [0, 0, 1, 1], [], []>} : vector<4x64xbf16>, vector<64x1225xbf16>, vector<4x1225xf32> -> vector<4x1225xf32>
    %c0_4 = arith.constant 0 : index
    %c0_5 = arith.constant 0 : index
    %4 = vector.load %arg3[%c0_4, %c0_5] : memref<4x1xf32, #tpu.memory_space<vmem>>, vector<4x1xf32>
    %5 = vector.broadcast %4 : vector<4x1xf32> to vector<4x1225xf32>
    %6 = arith.addf %3, %5 : vector<4x1225xf32>
    %c0_6 = arith.constant 0 : index
    %c0_7 = arith.constant 0 : index
    %c0_8 = arith.constant 0 : index
    %7 = vector.load %arg4[%c0_6, %c0_7, %c0_8] : memref<1x4x1225xf32, #tpu.memory_space<vmem>>, vector<1x4x1225xf32>
    %8 = vector.shape_cast %7 : vector<1x4x1225xf32> to vector<4x1225xf32>
    %9 = vector.shape_cast %6 : vector<4x1225xf32> to vector<1x4x1225xf32>
    tpu.vector_store %arg4[%c0_6, %c0_7, %c0_8], %9 {strides = array<i32>} : memref<1x4x1225xf32, #tpu.memory_space<vmem>>, vector<1x4x1225xf32>,
    return
  }
  func.func @transform_0(%arg0: i32) -> (i32, i32, i32) {
    %c0_i32 = arith.constant 0 : i32
    %c0_i32_0 = arith.constant 0 : i32
    %c0_i32_1 = arith.constant 0 : i32
    return %arg0, %c0_i32, %c0_i32_0 : i32, i32, i32
  }
  func.func @transform_1(%arg0: i32) -> (i32, i32) {
    %c0_i32 = arith.constant 0 : i32
    %c0_i32_0 = arith.constant 0 : i32
    %c0_i32_1 = arith.constant 0 : i32
    return %c0_i32, %c0_i32_0 : i32, i32
  }
  func.func @transform_2(%arg0: i32) -> (i32, i32) {
    %c0_i32 = arith.constant 0 : i32
    %c0_i32_0 = arith.constant 0 : i32
    %c0_i32_1 = arith.constant 0 : i32
    return %c0_i32, %c0_i32_0 : i32, i32
  }
  func.func @transform_3(%arg0: i32) -> (i32, i32, i32) {
    %c0_i32 = arith.constant 0 : i32
    %c0_i32_0 = arith.constant 0 : i32
    %c0_i32_1 = arith.constant 0 : i32
    return %arg0, %c0_i32, %c0_i32_0 : i32, i32, i32
  }
}

</mosaic_0001>

<llo_original>
// kernel: generator_forward.4
$region0: #{generator_forward.4}
  #allocation0 [shape = 'u32[]', space=smem, size = 0x4, offset = 0x4, fixed_abs, tag = 'smem constant byte address 0x4 - core index']
  #allocation1 [shape = 'u32[144,128]{1,0:T(1,128)}', space=vmem, size = 0x12000, scoped, tag = 'internal scratch']
  %s0 = inlined_call_operand.vmem [shape: bf16[2,64], index: 0, kind: input, shape index: {}]
  %s1 = inlined_call_operand.vmem [shape: bf16[64,3136], index: 1, kind: input, shape index: {}]
  %s2 = inlined_call_operand.vmem [shape: f32[1,3136], index: 2, kind: input, shape index: {}]
  %s3 = inlined_call_operand.vmem [shape: bf16[2,3136], index: 3, kind: output, shape index: {}]
  %s4 = sld [smem:[#allocation0]]
  $region22: #{generator_forward.4} parent=0
    _
  %s6 = ssub.s32 1, %s4
  %s7 = scalar_select 0, %s6, %s4
  // Predicated region
  $region2: #{generator_forward.4} parent=0 // pred_check
    _
  $region3: #{generator_forward.4} parent=0 // pred_check_branch
    %9 = sbr.rel (0) target = $region5
  $region4: #{generator_forward.4} parent=0 // pred_region
    _
  $region5: #{generator_forward.4} parent=0 // pred_fallthru
    _
  // Predicated region
  $region6: #{generator_forward.4} parent=0 // pred_check
    _
  $region7: #{generator_forward.4} parent=0 // pred_check_branch
    %11 = sbr.rel (0) target = $region9
  $region8: #{generator_forward.4} parent=0 // pred_region
    _
  $region9: #{generator_forward.4} parent=0 // pred_fallthru
    _
  // Predicated region
  $region10: #{generator_forward.4} parent=0 // pred_check
    _
  $region11: #{generator_forward.4} parent=0 // pred_check_branch
    %13 = sbr.rel (0) target = $region13
  $region12: #{generator_forward.4} parent=0 // pred_region
    _
  $region13: #{generator_forward.4} parent=0 // pred_fallthru
    _
  %v15 = vld [vmem:[%s0] sm:$0x1]
  %v16 = vld [vmem:[%s1] sm:$0xff]
  %v17 = vld [vmem:[%s1 + $0x8] sm:$0xff]
  %v18 = vld [vmem:[%s1 + $0x10] sm:$0xff]
  %v19 = vld [vmem:[%s1 + $0x18] sm:$0xff]
  %v20 = vld [vmem:[%s1 + $0x20] sm:$0xff]
  %v21 = vld [vmem:[%s1 + $0x28] sm:$0xff]
  %v22 = vld [vmem:[%s1 + $0x30] sm:$0xff]
  %v23 = vld [vmem:[%s1 + $0x38] sm:$0xff]
  %v24 = vld [vmem:[%s1 + $0x40] sm:$0xff]
  %v25 = vld [vmem:[%s1 + $0x48] sm:$0xff]
  %v26 = vld [vmem:[%s1 + $0x50] sm:$0xff]
  %v27 = vld [vmem:[%s1 + $0x58] sm:$0xff]
  %v28 = vld [vmem:[%s1 + $0x60] sm:$0xf]
  %v29 = vld [vmem:[%s1 + $0x64] sm:$0xff]
  %v30 = vld [vmem:[%s1 + $0x6c] sm:$0xff]
  %v31 = vld [vmem:[%s1 + $0x74] sm:$0xff]
  %v32 = vld [vmem:[%s1 + $0x7c] sm:$0xff]
  %v33 = vld [vmem:[%s1 + $0x84] sm:$0xff]
  %v34 = vld [vmem:[%s1 + $0x8c] sm:$0xff]
  %v35 = vld [vmem:[%s1 + $0x94] sm:$0xff]
  %v36 = vld [vmem:[%s1 + $0x9c] sm:$0xff]
  %v37 = vld [vmem:[%s1 + $0xa4] sm:$0xff]
  %v38 = vld [vmem:[%s1 + $0xac] sm:$0xff]
  %v39 = vld [vmem:[%s1 + $0xb4] sm:$0xff]
  %v40 = vld [vmem:[%s1 + $0xbc] sm:$0xff]
  %v41 = vld [vmem:[%s1 + $0xc4] sm:$0xf]
  %v42 = vld [vmem:[%s1 + $0xc8] sm:$0xff]
  %v43 = vld [vmem:[%s1 + $0xd0] sm:$0xff]
  %v44 = vld [vmem:[%s1 + $0xd8] sm:$0xff]
  %v45 = vld [vmem:[%s1 + $0xe0] sm:$0xff]
  %v46 = vld [vmem:[%s1 + $0xe8] sm:$0xff]
  %v47 = vld [vmem:[%s1 + $0xf0] sm:$0xff]
  %v48 = vld [vmem:[%s1 + $0xf8] sm:$0xff]
  %v49 = vld [vmem:[%s1 + $0x100] sm:$0xff]
  %v50 = vld [vmem:[%s1 + $0x108] sm:$0xff]
  %v51 = vld [vmem:[%s1 + $0x110] sm:$0xff]
  %v52 = vld [vmem:[%s1 + $0x118] sm:$0xff]
  %v53 = vld [vmem:[%s1 + $0x120] sm:$0xff]
  %v54 = vld [vmem:[%s1 + $0x128] sm:$0xf]
  %v55 = vld [vmem:[%s1 + $0x12c] sm:$0xff]
  %v56 = vld [vmem:[%s1 + $0x134] sm:$0xff]
  %v57 = vld [vmem:[%s1 + $0x13c] sm:$0xff]
  %v58 = vld [vmem:[%s1 + $0x144] sm:$0xff]
  %v59 = vld [vmem:[%s1 + $0x14c] sm:$0xff]
  %v60 = vld [vmem:[%s1 + $0x154] sm:$0xff]
  %v61 = vld [vmem:[%s1 + $0x15c] sm:$0xff]
  %v62 = vld [vmem:[%s1 + $0x164] sm:$0xff]
  %v63 = vld [vmem:[%s1 + $0x16c] sm:$0xff]
  %v64 = vld [vmem:[%s1 + $0x174] sm:$0xff]
  %v65 = vld [vmem:[%s1 + $0x17c] sm:$0xff]
  %v66 = vld [vmem:[%s1 + $0x184] sm:$0xff]
  %v67 = vld [vmem:[%s1 + $0x18c] sm:$0xf]
  %v68 = vld [vmem:[%s1 + $0x190] sm:$0xff]
  %v69 = vld [vmem:[%s1 + $0x198] sm:$0xff]
  %v70 = vld [vmem:[%s1 + $0x1a0] sm:$0xff]
  %v71 = vld [vmem:[%s1 + $0x1a8] sm:$0xff]
  %v72 = vld [vmem:[%s1 + $0x1b0] sm:$0xff]
  %v73 = vld [vmem:[%s1 + $0x1b8] sm:$0xff]
  %v74 = vld [vmem:[%s1 + $0x1c0] sm:$0xff]
  %v75 = vld [vmem:[%s1 + $0x1c8] sm:$0xff]
  %v76 = vld [vmem:[%s1 + $0x1d0] sm:$0xff]
  %v77 = vld [vmem:[%s1 + $0x1d8] sm:$0xff]
  %v78 = vld [vmem:[%s1 + $0x1e0] sm:$0xff]
  %v79 = vld [vmem:[%s1 + $0x1e8] sm:$0xff]
  %v80 = vld [vmem:[%s1 + $0x1f0] sm:$0xf]
  %v81 = vld [vmem:[%s1 + $0x1f4] sm:$0xff]
  %v82 = vld [vmem:[%s1 + $0x1fc] sm:$0xff]
  %v83 = vld [vmem:[%s1 + $0x204] sm:$0xff]
  %v84 = vld [vmem:[%s1 + $0x20c] sm:$0xff]
  %v85 = vld [vmem:[%s1 + $0x214] sm:$0xff]
  %v86 = vld [vmem:[%s1 + $0x21c] sm:$0xff]
  %v87 = vld [vmem:[%s1 + $0x224] sm:$0xff]
  %v88 = vld [vmem:[%s1 + $0x22c] sm:$0xff]
  %v89 = vld [vmem:[%s1 + $0x234] sm:$0xff]
  %v90 = vld [vmem:[%s1 + $0x23c] sm:$0xff]
  %v91 = vld [vmem:[%s1 + $0x244] sm:$0xff]
  %v92 = vld [vmem:[%s1 + $0x24c] sm:$0xff]
  %v93 = vld [vmem:[%s1 + $0x254] sm:$0xf]
  %v94 = vld [vmem:[%s1 + $0x258] sm:$0xff]
  %v95 = vld [vmem:[%s1 + $0x260] sm:$0xff]
  %v96 = vld [vmem:[%s1 + $0x268] sm:$0xff]
  %v97 = vld [vmem:[%s1 + $0x270] sm:$0xff]
  %v98 = vld [vmem:[%s1 + $0x278] sm:$0xff]
  %v99 = vld [vmem:[%s1 + $0x280] sm:$0xff]
  %v100 = vld [vmem:[%s1 + $0x288] sm:$0xff]
  %v101 = vld [vmem:[%s1 + $0x290] sm:$0xff]
  %v102 = vld [vmem:[%s1 + $0x298] sm:$0xff]
  %v103 = vld [vmem:[%s1 + $0x2a0] sm:$0xff]
  %v104 = vld [vmem:[%s1 + $0x2a8] sm:$0xff]
  %v105 = vld [vmem:[%s1 + $0x2b0] sm:$0xff]
  %v106 = vld [vmem:[%s1 + $0x2b8] sm:$0xf]
  %v107 = vld [vmem:[%s1 + $0x2bc] sm:$0xff]
  %v108 = vld [vmem:[%s1 + $0x2c4] sm:$0xff]
  %v109 = vld [vmem:[%s1 + $0x2cc] sm:$0xff]
  %v110 = vld [vmem:[%s1 + $0x2d4] sm:$0xff]
  %v111 = vld [vmem:[%s1 + $0x2dc] sm:$0xff]
  %v112 = vld [vmem:[%s1 + $0x2e4] sm:$0xff]
  %v113 = vld [vmem:[%s1 + $0x2ec] sm:$0xff]
  %v114 = vld [vmem:[%s1 + $0x2f4] sm:$0xff]
  %v115 = vld [vmem:[%s1 + $0x2fc] sm:$0xff]
  %v116 = vld [vmem:[%s1 + $0x304] sm:$0xff]
  %v117 = vld [vmem:[%s1 + $0x30c] sm:$0xff]
  %v118 = vld [vmem:[%s1 + $0x314] sm:$0xff]
  %v119 = vld [vmem:[%s1 + $0x31c] sm:$0xf]
  %v120 = vld [vmem:[%s2] sm:$0xff]
  %v121 = vld [vmem:[%s2 + $0x8] sm:$0xff]
  %v122 = vld [vmem:[%s2 + $0x10] sm:$0xff]
  %v123 = vld [vmem:[%s2 + $0x18] sm:$0x1]
  %v128 = vlaneseq
  %v129 = vshrl.u32 %v128, 7
  %v130 = vsub.s32 0, %v129
  %v131 = vrot.slane %v120, %v130
  %v132 = vlaneseq
  %v133 = vshrl.u32 %v132, 7
  %v134 = vsub.s32 1, %v133
  %v135 = vrot.slane %v120, %v134
  %v136 = vlaneseq
  %v137 = vshrl.u32 %v136, 7
  %v138 = vsub.s32 2, %v137
  %v139 = vrot.slane %v120, %v138
  %v140 = vlaneseq
  %v141 = vshrl.u32 %v140, 7
  %v142 = vsub.s32 3, %v141
  %v143 = vrot.slane %v120, %v142
  %v144 = vlaneseq
  %v145 = vshrl.u32 %v144, 7
  %v146 = vsub.s32 4, %v145
  %v147 = vrot.slane %v120, %v146
  %v148 = vlaneseq
  %v149 = vshrl.u32 %v148, 7
  %v150 = vsub.s32 5, %v149
  %v151 = vrot.slane %v120, %v150
  %v152 = vlaneseq
  %v153 = vshrl.u32 %v152, 7
  %v154 = vsub.s32 6, %v153
  %v155 = vrot.slane %v120, %v154
  %v156 = vlaneseq
  %v157 = vshrl.u32 %v156, 7
  %v158 = vsub.s32 7, %v157
  %v159 = vrot.slane %v120, %v158
  %v160 = vlaneseq
  %v161 = vshrl.u32 %v160, 7
  %v162 = vsub.s32 0, %v161
  %v163 = vrot.slane %v121, %v162
  %v164 = vlaneseq
  %v165 = vshrl.u32 %v164, 7
  %v166 = vsub.s32 1, %v165
  %v167 = vrot.slane %v121, %v166
  %v168 = vlaneseq
  %v169 = vshrl.u32 %v168, 7
  %v170 = vsub.s32 2, %v169
  %v171 = vrot.slane %v121, %v170
  %v172 = vlaneseq
  %v173 = vshrl.u32 %v172, 7
  %v174 = vsub.s32 3, %v173
  %v175 = vrot.slane %v121, %v174
  %v176 = vlaneseq
  %v177 = vshrl.u32 %v176, 7
  %v178 = vsub.s32 4, %v177
  %v179 = vrot.slane %v121, %v178
  %v180 = vlaneseq
  %v181 = vshrl.u32 %v180, 7
  %v182 = vsub.s32 5, %v181
  %v183 = vrot.slane %v121, %v182
  %v184 = vlaneseq
  %v185 = vshrl.u32 %v184, 7
  %v186 = vsub.s32 6, %v185
  %v187 = vrot.slane %v121, %v186
  %v188 = vlaneseq
  %v189 = vshrl.u32 %v188, 7
  %v190 = vsub.s32 7, %v189
  %v191 = vrot.slane %v121, %v190
  %v192 = vlaneseq
  %v193 = vshrl.u32 %v192, 7
  %v194 = vsub.s32 0, %v193
  %v195 = vrot.slane %v122, %v194
  %v196 = vlaneseq
  %v197 = vshrl.u32 %v196, 7
  %v198 = vsub.s32 1, %v197
  %v199 = vrot.slane %v122, %v198
  %v200 = vlaneseq
  %v201 = vshrl.u32 %v200, 7
  %v202 = vsub.s32 2, %v201
  %v203 = vrot.slane %v122, %v202
  %v204 = vlaneseq
  %v205 = vshrl.u32 %v204, 7
  %v206 = vsub.s32 3, %v205
  %v207 = vrot.slane %v122, %v206
  %v208 = vlaneseq
  %v209 = vshrl.u32 %v208, 7
  %v210 = vsub.s32 4, %v209
  %v211 = vrot.slane %v122, %v210
  %v212 = vlaneseq
  %v213 = vshrl.u32 %v212, 7
  %v214 = vsub.s32 5, %v213
  %v215 = vrot.slane %v122, %v214
  %v216 = vlaneseq
  %v217 = vshrl.u32 %v216, 7
  %v218 = vsub.s32 6, %v217
  %v219 = vrot.slane %v122, %v218
  %v220 = vlaneseq
  %v221 = vshrl.u32 %v220, 7
  %v222 = vsub.s32 7, %v221
  %v223 = vrot.slane %v122, %v222
  %v224 = vlaneseq
  %v225 = vshrl.u32 %v224, 7
  %v226 = vsub.s32 0, %v225
  %v227 = vrot.slane %v123, %v226
  %v357 = vunpack.c.l.b16 %v16
  %v358 = vunpack.c.h.b16 %v16
  %v359 = vunpack.c.l.b16 %v17
  %v360 = vunpack.c.h.b16 %v17
  %v361 = vunpack.c.l.b16 %v18
  %v362 = vunpack.c.h.b16 %v18
  %v363 = vunpack.c.l.b16 %v19
  %v364 = vunpack.c.h.b16 %v19
  %v365 = vunpack.c.l.b16 %v20
  %v366 = vunpack.c.h.b16 %v20
  %v367 = vunpack.c.l.b16 %v21
  %v368 = vunpack.c.h.b16 %v21
  %v369 = vunpack.c.l.b16 %v22
  %v370 = vunpack.c.h.b16 %v22
  %v371 = vunpack.c.l.b16 %v23
  %v372 = vunpack.c.h.b16 %v23
  %v373 = vunpack.c.l.b16 %v24
  %v374 = vunpack.c.h.b16 %v24
  %v375 = vunpack.c.l.b16 %v25
  %v376 = vunpack.c.h.b16 %v25
  %v377 = vunpack.c.l.b16 %v26
  %v378 = vunpack.c.h.b16 %v26
  %v379 = vunpack.c.l.b16 %v27
  %v380 = vunpack.c.h.b16 %v27
  %v381 = vunpack.c.l.b16 %v28
  %v382 = vunpack.c.l.b16 %v29
  %v383 = vunpack.c.h.b16 %v29
  %v384 = vunpack.c.l.b16 %v30
  %v385 = vunpack.c.h.b16 %v30
  %v386 = vunpack.c.l.b16 %v31
  %v387 = vunpack.c.h.b16 %v31
  %v388 = vunpack.c.l.b16 %v32
  %v389 = vunpack.c.h.b16 %v32
  %v390 = vunpack.c.l.b16 %v33
  %v391 = vunpack.c.h.b16 %v33
  %v392 = vunpack.c.l.b16 %v34
  %v393 = vunpack.c.h.b16 %v34
  %v394 = vunpack.c.l.b16 %v35
  %v395 = vunpack.c.h.b16 %v35
  %v396 = vunpack.c.l.b16 %v36
  %v397 = vunpack.c.h.b16 %v36
  %v398 = vunpack.c.l.b16 %v37
  %v399 = vunpack.c.h.b16 %v37
  %v400 = vunpack.c.l.b16 %v38
  %v401 = vunpack.c.h.b16 %v38
  %v402 = vunpack.c.l.b16 %v39
  %v403 = vunpack.c.h.b16 %v39
  %v404 = vunpack.c.l.b16 %v40
  %v405 = vunpack.c.h.b16 %v40
  %v406 = vunpack.c.l.b16 %v41
  %v407 = vunpack.c.l.b16 %v42
  %v408 = vunpack.c.h.b16 %v42
  %v409 = vunpack.c.l.b16 %v43
  %v410 = vunpack.c.h.b16 %v43
  %v411 = vunpack.c.l.b16 %v44
  %v412 = vunpack.c.h.b16 %v44
  %v413 = vunpack.c.l.b16 %v45
  %v414 = vunpack.c.h.b16 %v45
  %v415 = vunpack.c.l.b16 %v46
  %v416 = vunpack.c.h.b16 %v46
  %v417 = vunpack.c.l.b16 %v47
  %v418 = vunpack.c.h.b16 %v47
  %v419 = vunpack.c.l.b16 %v48
  %v420 = vunpack.c.h.b16 %v48
  %v421 = vunpack.c.l.b16 %v49
  %v422 = vunpack.c.h.b16 %v49
  %v423 = vunpack.c.l.b16 %v50
  %v424 = vunpack.c.h.b16 %v50
  %v425 = vunpack.c.l.b16 %v51
  %v426 = vunpack.c.h.b16 %v51
  %v427 = vunpack.c.l.b16 %v52
  %v428 = vunpack.c.h.b16 %v52
  %v429 = vunpack.c.l.b16 %v53
  %v430 = vunpack.c.h.b16 %v53
  %v431 = vunpack.c.l.b16 %v54
  %v432 = vunpack.c.l.b16 %v55
  %v433 = vunpack.c.h.b16 %v55
  %v434 = vunpack.c.l.b16 %v56
  %v435 = vunpack.c.h.b16 %v56
  %v436 = vunpack.c.l.b16 %v57
  %v437 = vunpack.c.h.b16 %v57
  %v438 = vunpack.c.l.b16 %v58
  %v439 = vunpack.c.h.b16 %v58
  %v440 = vunpack.c.l.b16 %v59
  %v441 = vunpack.c.h.b16 %v59
  %v442 = vunpack.c.l.b16 %v60
  %v443 = vunpack.c.h.b16 %v60
  %v444 = vunpack.c.l.b16 %v61
  %v445 = vunpack.c.h.b16 %v61
  %v446 = vunpack.c.l.b16 %v62
  %v447 = vunpack.c.h.b16 %v62
  %v448 = vunpack.c.l.b16 %v63
  %v449 = vunpack.c.h.b16 %v63
  %v450 = vunpack.c.l.b16 %v64
  %v451 = vunpack.c.h.b16 %v64
  %v452 = vunpack.c.l.b16 %v65
  %v453 = vunpack.c.h.b16 %v65
  %v454 = vunpack.c.l.b16 %v66
  %v455 = vunpack.c.h.b16 %v66
  %v456 = vunpack.c.l.b16 %v67
  %v457 = vunpack.c.l.b16 %v68
  %v458 = vunpack.c.h.b16 %v68
  %v459 = vunpack.c.l.b16 %v69
  %v460 = vunpack.c.h.b16 %v69
  %v461 = vunpack.c.l.b16 %v70
  %v462 = vunpack.c.h.b16 %v70
  %v463 = vunpack.c.l.b16 %v71
  %v464 = vunpack.c.h.b16 %v71
  %v465 = vunpack.c.l.b16 %v72
  %v466 = vunpack.c.h.b16 %v72
  %v467 = vunpack.c.l.b16 %v73
  %v468 = vunpack.c.h.b16 %v73
  %v469 = vunpack.c.l.b16 %v74
  %v470 = vunpack.c.h.b16 %v74
  %v471 = vunpack.c.l.b16 %v75
  %v472 = vunpack.c.h.b16 %v75
  %v473 = vunpack.c.l.b16 %v76
  %v474 = vunpack.c.h.b16 %v76
  %v475 = vunpack.c.l.b16 %v77
  %v476 = vunpack.c.h.b16 %v77
  %v477 = vunpack.c.l.b16 %v78
  %v478 = vunpack.c.h.b16 %v78
  %v479 = vunpack.c.l.b16 %v79
  %v480 = vunpack.c.h.b16 %v79
  %v481 = vunpack.c.l.b16 %v80
  %v482 = vunpack.c.l.b16 %v81
  %v483 = vunpack.c.h.b16 %v81
  %v484 = vunpack.c.l.b16 %v82
  %v485 = vunpack.c.h.b16 %v82
  %v486 = vunpack.c.l.b16 %v83
  %v487 = vunpack.c.h.b16 %v83
  %v488 = vunpack.c.l.b16 %v84
  %v489 = vunpack.c.h.b16 %v84
  %v490 = vunpack.c.l.b16 %v85
  %v491 = vunpack.c.h.b16 %v85
  %v492 = vunpack.c.l.b16 %v86
  %v493 = vunpack.c.h.b16 %v86
  %v494 = vunpack.c.l.b16 %v87
  %v495 = vunpack.c.h.b16 %v87
  %v496 = vunpack.c.l.b16 %v88
  %v497 = vunpack.c.h.b16 %v88
  %v498 = vunpack.c.l.b16 %v89
  %v499 = vunpack.c.h.b16 %v89
  %v500 = vunpack.c.l.b16 %v90
  %v501 = vunpack.c.h.b16 %v90
  %v502 = vunpack.c.l.b16 %v91
  %v503 = vunpack.c.h.b16 %v91
  %v504 = vunpack.c.l.b16 %v92
  %v505 = vunpack.c.h.b16 %v92
  %v506 = vunpack.c.l.b16 %v93
  %v507 = vunpack.c.l.b16 %v94
  %v508 = vunpack.c.h.b16 %v94
  %v509 = vunpack.c.l.b16 %v95
  %v510 = vunpack.c.h.b16 %v95
  %v511 = vunpack.c.l.b16 %v96
  %v512 = vunpack.c.h.b16 %v96
  %v513 = vunpack.c.l.b16 %v97
  %v514 = vunpack.c.h.b16 %v97
  %v515 = vunpack.c.l.b16 %v98
  %v516 = vunpack.c.h.b16 %v98
  %v517 = vunpack.c.l.b16 %v99
  %v518 = vunpack.c.h.b16 %v99
  %v519 = vunpack.c.l.b16 %v100
  %v520 = vunpack.c.h.b16 %v100
  %v521 = vunpack.c.l.b16 %v101
  %v522 = vunpack.c.h.b16 %v101
  %v523 = vunpack.c.l.b16 %v102
  %v524 = vunpack.c.h.b16 %v102
  %v525 = vunpack.c.l.b16 %v103
  %v526 = vunpack.c.h.b16 %v103
  %v527 = vunpack.c.l.b16 %v104
  %v528 = vunpack.c.h.b16 %v104
  %v529 = vunpack.c.l.b16 %v105
  %v530 = vunpack.c.h.b16 %v105
  %v531 = vunpack.c.l.b16 %v106
  %v532 = vunpack.c.l.b16 %v107
  %v533 = vunpack.c.h.b16 %v107
  %v534 = vunpack.c.l.b16 %v108
  %v535 = vunpack.c.h.b16 %v108
  %v536 = vunpack.c.l.b16 %v109
  %v537 = vunpack.c.h.b16 %v109
  %v538 = vunpack.c.l.b16 %v110
  %v539 = vunpack.c.h.b16 %v110
  %v540 = vunpack.c.l.b16 %v111
  %v541 = vunpack.c.h.b16 %v111
  %v542 = vunpack.c.l.b16 %v112
  %v543 = vunpack.c.h.b16 %v112
  %v544 = vunpack.c.l.b16 %v113
  %v545 = vunpack.c.h.b16 %v113
  %v546 = vunpack.c.l.b16 %v114
  %v547 = vunpack.c.h.b16 %v114
  %v548 = vunpack.c.l.b16 %v115
  %v549 = vunpack.c.h.b16 %v115
  %v550 = vunpack.c.l.b16 %v116
  %v551 = vunpack.c.h.b16 %v116
  %v552 = vunpack.c.l.b16 %v117
  %v553 = vunpack.c.h.b16 %v117
  %v554 = vunpack.c.l.b16 %v118
  %v555 = vunpack.c.h.b16 %v118
  %v556 = vunpack.c.l.b16 %v119
  %v557 = vpack.c.b16 %v382, %v357
  %v558 = vpack.c.b16 %v383, %v358
  %v559 = vpack.c.b16 %v384, %v359
  %v560 = vpack.c.b16 %v385, %v360
  %v561 = vpack.c.b16 %v386, %v361
  %v562 = vpack.c.b16 %v387, %v362
  %v563 = vpack.c.b16 %v388, %v363
  %v564 = vpack.c.b16 %v389, %v364
  %v565 = vpack.c.b16 %v390, %v365
  %v566 = vpack.c.b16 %v391, %v366
  %v567 = vpack.c.b16 %v392, %v367
  %v568 = vpack.c.b16 %v393, %v368
  %v569 = vpack.c.b16 %v394, %v369
  %v570 = vpack.c.b16 %v395, %v370
  %v571 = vpack.c.b16 %v396, %v371
  %v572 = vpack.c.b16 %v397, %v372
  %v573 = vpack.c.b16 %v398, %v373
  %v574 = vpack.c.b16 %v399, %v374
  %v575 = vpack.c.b16 %v400, %v375
  %v576 = vpack.c.b16 %v401, %v376
  %v577 = vpack.c.b16 %v402, %v377
  %v578 = vpack.c.b16 %v403, %v378
  %v579 = vpack.c.b16 %v404, %v379
  %v580 = vpack.c.b16 %v405, %v380
  %v581 = vpack.c.b16 %v406, %v381
  %v582 = vpack.c.b16 %v432, %v407
  %v583 = vpack.c.b16 %v433, %v408
  %v584 = vpack.c.b16 %v434, %v409
  %v585 = vpack.c.b16 %v435, %v410
  %v586 = vpack.c.b16 %v436, %v411
  %v587 = vpack.c.b16 %v437, %v412
  %v588 = vpack.c.b16 %v438, %v413
  %v589 = vpack.c.b16 %v439, %v414
  %v590 = vpack.c.b16 %v440, %v415
  %v591 = vpack.c.b16 %v441, %v416
  %v592 = vpack.c.b16 %v442, %v417
  %v593 = vpack.c.b16 %v443, %v418
  %v594 = vpack.c.b16 %v444, %v419
  %v595 = vpack.c.b16 %v445, %v420
  %v596 = vpack.c.b16 %v446, %v421
  %v597 = vpack.c.b16 %v447, %v422
  %v598 = vpack.c.b16 %v448, %v423
  %v599 = vpack.c.b16 %v449, %v424
  %v600 = vpack.c.b16 %v450, %v425
  %v601 = vpack.c.b16 %v451, %v426
  %v602 = vpack.c.b16 %v452, %v427
  %v603 = vpack.c.b16 %v453, %v428
  %v604 = vpack.c.b16 %v454, %v429
  %v605 = vpack.c.b16 %v455, %v430
  %v606 = vpack.c.b16 %v456, %v431
  %v607 = vpack.c.b16 %v482, %v457
  %v608 = vpack.c.b16 %v483, %v458
  %v609 = vpack.c.b16 %v484, %v459
  %v610 = vpack.c.b16 %v485, %v460
  %v611 = vpack.c.b16 %v486, %v461
  %v612 = vpack.c.b16 %v487, %v462
  %v613 = vpack.c.b16 %v488, %v463
  %v614 = vpack.c.b16 %v489, %v464
  %v615 = vpack.c.b16 %v490, %v465
  %v616 = vpack.c.b16 %v491, %v466
  %v617 = vpack.c.b16 %v492, %v467
  %v618 = vpack.c.b16 %v493, %v468
  %v619 = vpack.c.b16 %v494, %v469
  %v620 = vpack.c.b16 %v495, %v470
  %v621 = vpack.c.b16 %v496, %v471
  %v622 = vpack.c.b16 %v497, %v472
  %v623 = vpack.c.b16 %v498, %v473
  %v624 = vpack.c.b16 %v499, %v474
  %v625 = vpack.c.b16 %v500, %v475
  %v626 = vpack.c.b16 %v501, %v476
  %v627 = vpack.c.b16 %v502, %v477
  %v628 = vpack.c.b16 %v503, %v478
  %v629 = vpack.c.b16 %v504, %v479
  %v630 = vpack.c.b16 %v505, %v480
  %v631 = vpack.c.b16 %v506, %v481
  %v632 = vpack.c.b16 %v532, %v507
  %v633 = vpack.c.b16 %v533, %v508
  %v634 = vpack.c.b16 %v534, %v509
  %v635 = vpack.c.b16 %v535, %v510
  %v636 = vpack.c.b16 %v536, %v511
  %v637 = vpack.c.b16 %v537, %v512
  %v638 = vpack.c.b16 %v538, %v513
  %v639 = vpack.c.b16 %v539, %v514
  %v640 = vpack.c.b16 %v540, %v515
  %v641 = vpack.c.b16 %v541, %v516
  %v642 = vpack.c.b16 %v542, %v517
  %v643 = vpack.c.b16 %v543, %v518
  %v644 = vpack.c.b16 %v544, %v519
  %v645 = vpack.c.b16 %v545, %v520
  %v646 = vpack.c.b16 %v546, %v521
  %v647 = vpack.c.b16 %v547, %v522
  %v648 = vpack.c.b16 %v548, %v523
  %v649 = vpack.c.b16 %v549, %v524
  %v650 = vpack.c.b16 %v550, %v525
  %v651 = vpack.c.b16 %v551, %v526
  %v652 = vpack.c.b16 %v552, %v527
  %v653 = vpack.c.b16 %v553, %v528
  %v654 = vpack.c.b16 %v554, %v529
  %v655 = vpack.c.b16 %v555, %v530
  %v656 = vpack.c.b16 %v556, %v531
  %vm757 = vcmask 523264
  %v759 = vsel %vm757, %v15, 0
  %761 = vmatprep.subr.bf16.mxu0 %v558
  %762 = vmatpush1.bf16.msra.mxu0 %v557
  %763 = vmatprep.subr.bf16.mxu0 %v583
  %764 = vmatpush1.bf16.msra.mxu0 %v582
  %765 = vmatprep.subr.bf16.mxu0 %v608
  %766 = vmatpush1.bf16.msra.mxu0 %v607
  %767 = vmatprep.subr.bf16.mxu0 %v633
  %768 = vmatpush1.bf16.msra.mxu0 %v632
  %769 = vmatprep.subr.bf16.mxu0 0
  %770 = vmatpush1.bf16.msra.mxu0 0
  %771 = vmatprep.subr.bf16.mxu0 0
  %772 = vmatpush1.bf16.msra.mxu0 0
  %773 = vmatprep.subr.bf16.mxu0 0
  %774 = vmatpush1.bf16.msra.mxu0 0
  %775 = vmatprep.subr.bf16.mxu0 0
  %776 = vmatpush1.bf16.msra.mxu0 0
  %777 = vmatprep.subr.bf16.mxu0 0
  %778 = vmatpush1.bf16.msra.mxu0 0
  %779 = vmatprep.subr.bf16.mxu0 0
  %780 = vmatpush1.bf16.msra.mxu0 0
  %781 = vmatprep.subr.bf16.mxu0 0
  %782 = vmatpush1.bf16.msra.mxu0 0
  %783 = vmatprep.subr.bf16.mxu0 0
  %784 = vmatpush1.bf16.msra.mxu0 0
  %785 = vmatprep.subr.bf16.mxu0 0
  %786 = vmatpush1.bf16.msra.mxu0 0
  %787 = vmatprep.subr.bf16.mxu0 0
  %788 = vmatpush1.bf16.msra.mxu0 0
  %789 = vmatprep.subr.bf16.mxu0 0
  %790 = vmatpush1.bf16.msra.mxu0 0
  %791 = vmatprep.subr.bf16.mxu0 0
  %792 = vmatpush1.bf16.msra.mxu0 0
  %793 = vmatprep.mubr.bf16.mxu0 0
  %794 = vmatmul.mubr.bf16.gmra.mrb[0].mxu0 %v759
  %v795 = vpop.f32.mrb[0].mxu0
  %v796 = vadd.f32 %v131, %v795
  %v797 = vpop.f32.mrb[0].mxu0
  %v798 = vadd.f32 %v135, %v797
  %v799 = vpop.f32.mrb[0].mxu0
  %v800 = vpop.f32.mrb[0].mxu0
  %801 = vdwg.mxu0
  %802 = vmatprep.subr.bf16.mxu0 %v560
  %803 = vmatpush1.bf16.msra.mxu0 %v559
  %804 = vmatprep.subr.bf16.mxu0 %v585
  %805 = vmatpush1.bf16.msra.mxu0 %v584
  %806 = vmatprep.subr.bf16.mxu0 %v610
  %807 = vmatpush1.bf16.msra.mxu0 %v609
  %808 = vmatprep.subr.bf16.mxu0 %v635
  %809 = vmatpush1.bf16.msra.mxu0 %v634
  %810 = vmatprep.subr.bf16.mxu0 0
  %811 = vmatpush1.bf16.msra.mxu0 0
  %812 = vmatprep.subr.bf16.mxu0 0
  %813 = vmatpush1.bf16.msra.mxu0 0
  %814 = vmatprep.subr.bf16.mxu0 0
  %815 = vmatpush1.bf16.msra.mxu0 0
  %816 = vmatprep.subr.bf16.mxu0 0
  %817 = vmatpush1.bf16.msra.mxu0 0
  %818 = vmatprep.subr.bf16.mxu0 0
  %819 = vmatpush1.bf16.msra.mxu0 0
  %820 = vmatprep.subr.bf16.mxu0 0
  %821 = vmatpush1.bf16.msra.mxu0 0
  %822 = vmatprep.subr.bf16.mxu0 0
  %823 = vmatpush1.bf16.msra.mxu0 0
  %824 = vmatprep.subr.bf16.mxu0 0
  %825 = vmatpush1.bf16.msra.mxu0 0
  %826 = vmatprep.subr.bf16.mxu0 0
  %827 = vmatpush1.bf16.msra.mxu0 0
  %828 = vmatprep.subr.bf16.mxu0 0
  %829 = vmatpush1.bf16.msra.mxu0 0
  %830 = vmatprep.subr.bf16.mxu0 0
  %831 = vmatpush1.bf16.msra.mxu0 0
  %832 = vmatprep.subr.bf16.mxu0 0
  %833 = vmatpush1.bf16.msra.mxu0 0
  %834 = vmatprep.mubr.bf16.mxu0 0
  %835 = vmatmul.mubr.bf16.gmra.mrb[0].mxu0 %v759
  %v836 = vpop.f32.mrb[0].mxu0
  %v837 = vadd.f32 %v139, %v836
  %v838 = vpop.f32.mrb[0].mxu0
  %v839 = vadd.f32 %v143, %v838
  %v840 = vpop.f32.mrb[0].mxu0
  %v841 = vpop.f32.mrb[0].mxu0
  %842 = vdwg.mxu0
  %843 = vmatprep.subr.bf16.mxu0 %v562
  %844 = vmatpush1.bf16.msra.mxu0 %v561
  %845 = vmatprep.subr.bf16.mxu0 %v587
  %846 = vmatpush1.bf16.msra.mxu0 %v586
  %847 = vmatprep.subr.bf16.mxu0 %v612
  %848 = vmatpush1.bf16.msra.mxu0 %v611
  %849 = vmatprep.subr.bf16.mxu0 %v637
  %850 = vmatpush1.bf16.msra.mxu0 %v636
  %851 = vmatprep.subr.bf16.mxu0 0
  %852 = vmatpush1.bf16.msra.mxu0 0
  %853 = vmatprep.subr.bf16.mxu0 0
  %854 = vmatpush1.bf16.msra.mxu0 0
  %855 = vmatprep.subr.bf16.mxu0 0
  %856 = vmatpush1.bf16.msra.mxu0 0
  %857 = vmatprep.subr.bf16.mxu0 0
  %858 = vmatpush1.bf16.msra.mxu0 0
  %859 = vmatprep.subr.bf16.mxu0 0
  %860 = vmatpush1.bf16.msra.mxu0 0
  %861 = vmatprep.subr.bf16.mxu0 0
  %862 = vmatpush1.bf16.msra.mxu0 0
  %863 = vmatprep.subr.bf16.mxu0 0
  %864 = vmatpush1.bf16.msra.mxu0 0
  %865 = vmatprep.subr.bf16.mxu0 0
  %866 = vmatpush1.bf16.msra.mxu0 0
  %867 = vmatprep.subr.bf16.mxu0 0
  %868 = vmatpush1.bf16.msra.mxu0 0
  %869 = vmatprep.subr.bf16.mxu0 0
  %870 = vmatpush1.bf16.msra.mxu0 0
  %871 = vmatprep.subr.bf16.mxu0 0
  %872 = vmatpush1.bf16.msra.mxu0 0
  %873 = vmatprep.subr.bf16.mxu0 0
  %874 = vmatpush1.bf16.msra.mxu0 0
  %875 = vmatprep.mubr.bf16.mxu0 0
  %876 = vmatmul.mubr.bf16.gmra.mrb[0].mxu0 %v759
  %v877 = vpop.f32.mrb[0].mxu0
  %v878 = vadd.f32 %v147, %v877
  %v879 = vpop.f32.mrb[0].mxu0
  %v880 = vadd.f32 %v151, %v879
  %v881 = vpop.f32.mrb[0].mxu0
  %v882 = vpop.f32.mrb[0].mxu0
  %883 = vdwg.mxu0
  %884 = vmatprep.subr.bf16.mxu0 %v564
  %885 = vmatpush1.bf16.msra.mxu0 %v563
  %886 = vmatprep.subr.bf16.mxu0 %v589
  %887 = vmatpush1.bf16.msra.mxu0 %v588
  %888 = vmatprep.subr.bf16.mxu0 %v614
  %889 = vmatpush1.bf16.msra.mxu0 %v613
  %890 = vmatprep.subr.bf16.mxu0 %v639
  %891 = vmatpush1.bf16.msra.mxu0 %v638
  %892 = vmatprep.subr.bf16.mxu0 0
  %893 = vmatpush1.bf16.msra.mxu0 0
  %894 = vmatprep.subr.bf16.mxu0 0
  %895 = vmatpush1.bf16.msra.mxu0 0
  %896 = vmatprep.subr.bf16.mxu0 0
  %897 = vmatpush1.bf16.msra.mxu0 0
  %898 = vmatprep.subr.bf16.mxu0 0
  %899 = vmatpush1.bf16.msra.mxu0 0
  %900 = vmatprep.subr.bf16.mxu0 0
  %901 = vmatpush1.bf16.msra.mxu0 0
  %902 = vmatprep.subr.bf16.mxu0 0
  %903 = vmatpush1.bf16.msra.mxu0 0
  %904 = vmatprep.subr.bf16.mxu0 0
  %905 = vmatpush1.bf16.msra.mxu0 0
  %906 = vmatprep.subr.bf16.mxu0 0
  %907 = vmatpush1.bf16.msra.mxu0 0
  %908 = vmatprep.subr.bf16.mxu0 0
  %909 = vmatpush1.bf16.msra.mxu0 0
  %910 = vmatprep.subr.bf16.mxu0 0
  %911 = vmatpush1.bf16.msra.mxu0 0
  %912 = vmatprep.subr.bf16.mxu0 0
  %913 = vmatpush1.bf16.msra.mxu0 0
  %914 = vmatprep.subr.bf16.mxu0 0
  %915 = vmatpush1.bf16.msra.mxu0 0
  %916 = vmatprep.mubr.bf16.mxu0 0
  %917 = vmatmul.mubr.bf16.gmra.mrb[0].mxu0 %v759
  %v918 = vpop.f32.mrb[0].mxu0
  %v919 = vadd.f32 %v155, %v918
  %v920 = vpop.f32.mrb[0].mxu0
  %v921 = vadd.f32 %v159, %v920
  %v922 = vpop.f32.mrb[0].mxu0
  %v923 = vpop.f32.mrb[0].mxu0
  %924 = vdwg.mxu0
  %925 = vmatprep.subr.bf16.mxu0 %v566
  %926 = vmatpush1.bf16.msra.mxu0 %v565
  %927 = vmatprep.subr.bf16.mxu0 %v591
  %928 = vmatpush1.bf16.msra.mxu0 %v590
  %929 = vmatprep.subr.bf16.mxu0 %v616
  %930 = vmatpush1.bf16.msra.mxu0 %v615
  %931 = vmatprep.subr.bf16.mxu0 %v641
  %932 = vmatpush1.bf16.msra.mxu0 %v640
  %933 = vmatprep.subr.bf16.mxu0 0
  %934 = vmatpush1.bf16.msra.mxu0 0
  %935 = vmatprep.subr.bf16.mxu0 0
  %936 = vmatpush1.bf16.msra.mxu0 0
  %937 = vmatprep.subr.bf16.mxu0 0
  %938 = vmatpush1.bf16.msra.mxu0 0
  %939 = vmatprep.subr.bf16.mxu0 0
  %940 = vmatpush1.bf16.msra.mxu0 0
  %941 = vmatprep.subr.bf16.mxu0 0
  %942 = vmatpush1.bf16.msra.mxu0 0
  %943 = vmatprep.subr.bf16.mxu0 0
  %944 = vmatpush1.bf16.msra.mxu0 0
  %945 = vmatprep.subr.bf16.mxu0 0
  %946 = vmatpush1.bf16.msra.mxu0 0
  %947 = vmatprep.subr.bf16.mxu0 0
  %948 = vmatpush1.bf16.msra.mxu0 0
  %949 = vmatprep.subr.bf16.mxu0 0
  %950 = vmatpush1.bf16.msra.mxu0 0
  %951 = vmatprep.subr.bf16.mxu0 0
  %952 = vmatpush1.bf16.msra.mxu0 0
  %953 = vmatprep.subr.bf16.mxu0 0
  %954 = vmatpush1.bf16.msra.mxu0 0
  %955 = vmatprep.subr.bf16.mxu0 0
  %956 = vmatpush1.bf16.msra.mxu0 0
  %957 = vmatprep.mubr.bf16.mxu0 0
  %958 = vmatmul.mubr.bf16.gmra.mrb[0].mxu0 %v759
  %v959 = vpop.f32.mrb[0].mxu0
  %v960 = vadd.f32 %v163, %v959
  %v961 = vpop.f32.mrb[0].mxu0
  %v962 = vadd.f32 %v167, %v961
  %v963 = vpop.f32.mrb[0].mxu0
  %v964 = vpop.f32.mrb[0].mxu0
  %965 = vdwg.mxu0
  %966 = vmatprep.subr.bf16.mxu0 %v568
  %967 = vmatpush1.bf16.msra.mxu0 %v567
  %968 = vmatprep.subr.bf16.mxu0 %v593
  %969 = vmatpush1.bf16.msra.mxu0 %v592
  %970 = vmatprep.subr.bf16.mxu0 %v618
  %971 = vmatpush1.bf16.msra.mxu0 %v617
  %972 = vmatprep.subr.bf16.mxu0 %v643
  %973 = vmatpush1.bf16.msra.mxu0 %v642
  %974 = vmatprep.subr.bf16.mxu0 0
  %975 = vmatpush1.bf16.msra.mxu0 0
  %976 = vmatprep.subr.bf16.mxu0 0
  %977 = vmatpush1.bf16.msra.mxu0 0
  %978 = vmatprep.subr.bf16.mxu0 0
  %979 = vmatpush1.bf16.msra.mxu0 0
  %980 = vmatprep.subr.bf16.mxu0 0
  %981 = vmatpush1.bf16.msra.mxu0 0
  %982 = vmatprep.subr.bf16.mxu0 0
  %983 = vmatpush1.bf16.msra.mxu0 0
  %984 = vmatprep.subr.bf16.mxu0 0
  %985 = vmatpush1.bf16.msra.mxu0 0
  %986 = vmatprep.subr.bf16.mxu0 0
  %987 = vmatpush1.bf16.msra.mxu0 0
  %988 = vmatprep.subr.bf16.mxu0 0
  %989 = vmatpush1.bf16.msra.mxu0 0
  %990 = vmatprep.subr.bf16.mxu0 0
  %991 = vmatpush1.bf16.msra.mxu0 0
  %992 = vmatprep.subr.bf16.mxu0 0
  %993 = vmatpush1.bf16.msra.mxu0 0
  %994 = vmatprep.subr.bf16.mxu0 0
  %995 = vmatpush1.bf16.msra.mxu0 0
  %996 = vmatprep.subr.bf16.mxu0 0
  %997 = vmatpush1.bf16.msra.mxu0 0
  %998 = vmatprep.mubr.bf16.mxu0 0
  %999 = vmatmul.mubr.bf16.gmra.mrb[0].mxu0 %v759
  %v1000 = vpop.f32.mrb[0].mxu0
  %v1001 = vadd.f32 %v171, %v1000
  %v1002 = vpop.f32.mrb[0].mxu0
  %v1003 = vadd.f32 %v175, %v1002
  %v1004 = vpop.f32.mrb[0].mxu0
  %v1005 = vpop.f32.mrb[0].mxu0
  %1006 = vdwg.mxu0
  %1007 = vmatprep.subr.bf16.mxu0 %v570
  %1008 = vmatpush1.bf16.msra.mxu0 %v569
  %1009 = vmatprep.subr.bf16.mxu0 %v595
  %1010 = vmatpush1.bf16.msra.mxu0 %v594
  %1011 = vmatprep.subr.bf16.mxu0 %v620
  %1012 = vmatpush1.bf16.msra.mxu0 %v619
  %1013 = vmatprep.subr.bf16.mxu0 %v645
  %1014 = vmatpush1.bf16.msra.mxu0 %v644
  %1015 = vmatprep.subr.bf16.mxu0 0
  %1016 = vmatpush1.bf16.msra.mxu0 0
  %1017 = vmatprep.subr.bf16.mxu0 0
  %1018 = vmatpush1.bf16.msra.mxu0 0
  %1019 = vmatprep.subr.bf16.mxu0 0
  %1020 = vmatpush1.bf16.msra.mxu0 0
  %1021 = vmatprep.subr.bf16.mxu0 0
  %1022 = vmatpush1.bf16.msra.mxu0 0
  %1023 = vmatprep.subr.bf16.mxu0 0
  %1024 = vmatpush1.bf16.msra.mxu0 0
  %1025 = vmatprep.subr.bf16.mxu0 0
  %1026 = vmatpush1.bf16.msra.mxu0 0
  %1027 = vmatprep.subr.bf16.mxu0 0
  %1028 = vmatpush1.bf16.msra.mxu0 0
  %1029 = vmatprep.subr.bf16.mxu0 0
  %1030 = vmatpush1.bf16.msra.mxu0 0
  %1031 = vmatprep.subr.bf16.mxu0 0
  %1032 = vmatpush1.bf16.msra.mxu0 0
  %1033 = vmatprep.subr.bf16.mxu0 0
  %1034 = vmatpush1.bf16.msra.mxu0 0
  %1035 = vmatprep.subr.bf16.mxu0 0
  %1036 = vmatpush1.bf16.msra.mxu0 0
  %1037 = vmatprep.subr.bf16.mxu0 0
  %1038 = vmatpush1.bf16.msra.mxu0 0
  %1039 = vmatprep.mubr.bf16.mxu0 0
  %1040 = vmatmul.mubr.bf16.gmra.mrb[0].mxu0 %v759
  %v1041 = vpop.f32.mrb[0].mxu0
  %v1042 = vadd.f32 %v179, %v1041
  %v1043 = vpop.f32.mrb[0].mxu0
  %v1044 = vadd.f32 %v183, %v1043
  %v1045 = vpop.f32.mrb[0].mxu0
  %v1046 = vpop.f32.mrb[0].mxu0
  %1047 = vdwg.mxu0
  %1048 = vmatprep.subr.bf16.mxu0 %v572
  %1049 = vmatpush1.bf16.msra.mxu0 %v571
  %1050 = vmatprep.subr.bf16.mxu0 %v597
  %1051 = vmatpush1.bf16.msra.mxu0 %v596
  %1052 = vmatprep.subr.bf16.mxu0 %v622
  %1053 = vmatpush1.bf16.msra.mxu0 %v621
  %1054 = vmatprep.subr.bf16.mxu0 %v647
  %1055 = vmatpush1.bf16.msra.mxu0 %v646
  %1056 = vmatprep.subr.bf16.mxu0 0
  %1057 = vmatpush1.bf16.msra.mxu0 0
  %1058 = vmatprep.subr.bf16.mxu0 0
  %1059 = vmatpush1.bf16.msra.mxu0 0
  %1060 = vmatprep.subr.bf16.mxu0 0
  %1061 = vmatpush1.bf16.msra.mxu0 0
  %1062 = vmatprep.subr.bf16.mxu0 0
  %1063 = vmatpush1.bf16.msra.mxu0 0
  %1064 = vmatprep.subr.bf16.mxu0 0
  %1065 = vmatpush1.bf16.msra.mxu0 0
  %1066 = vmatprep.subr.bf16.mxu0 0
  %1067 = vmatpush1.bf16.msra.mxu0 0
  %1068 = vmatprep.subr.bf16.mxu0 0
  %1069 = vmatpush1.bf16.msra.mxu0 0
  %1070 = vmatprep.subr.bf16.mxu0 0
  %1071 = vmatpush1.bf16.msra.mxu0 0
  %1072 = vmatprep.subr.bf16.mxu0 0
  %1073 = vmatpush1.bf16.msra.mxu0 0
  %1074 = vmatprep.subr.bf16.mxu0 0
  %1075 = vmatpush1.bf16.msra.mxu0 0
  %1076 = vmatprep.subr.bf16.mxu0 0
  %1077 = vmatpush1.bf16.msra.mxu0 0
  %1078 = vmatprep.subr.bf16.mxu0 0
  %1079 = vmatpush1.bf16.msra.mxu0 0
  %1080 = vmatprep.mubr.bf16.mxu0 0
  %1081 = vmatmul.mubr.bf16.gmra.mrb[0].mxu0 %v759
  %v1082 = vpop.f32.mrb[0].mxu0
  %v1083 = vadd.f32 %v187, %v1082
  %v1084 = vpop.f32.mrb[0].mxu0
  %v1085 = vadd.f32 %v191, %v1084
  %v1086 = vpop.f32.mrb[0].mxu0
  %v1087 = vpop.f32.mrb[0].mxu0
  %1088 = vdwg.mxu0
  %1089 = vmatprep.subr.bf16.mxu0 %v574
  %1090 = vmatpush1.bf16.msra.mxu0 %v573
  %1091 = vmatprep.subr.bf16.mxu0 %v599
  %1092 = vmatpush1.bf16.msra.mxu0 %v598
  %1093 = vmatprep.subr.bf16.mxu0 %v624
  %1094 = vmatpush1.bf16.msra.mxu0 %v623
  %1095 = vmatprep.subr.bf16.mxu0 %v649
  %1096 = vmatpush1.bf16.msra.mxu0 %v648
  %1097 = vmatprep.subr.bf16.mxu0 0
  %1098 = vmatpush1.bf16.msra.mxu0 0
  %1099 = vmatprep.subr.bf16.mxu0 0
  %1100 = vmatpush1.bf16.msra.mxu0 0
  %1101 = vmatprep.subr.bf16.mxu0 0
  %1102 = vmatpush1.bf16.msra.mxu0 0
  %1103 = vmatprep.subr.bf16.mxu0 0
  %1104 = vmatpush1.bf16.msra.mxu0 0
  %1105 = vmatprep.subr.bf16.mxu0 0
  %1106 = vmatpush1.bf16.msra.mxu0 0
  %1107 = vmatprep.subr.bf16.mxu0 0
  %1108 = vmatpush1.bf16.msra.mxu0 0
  %1109 = vmatprep.subr.bf16.mxu0 0
  %1110 = vmatpush1.bf16.msra.mxu0 0
  %1111 = vmatprep.subr.bf16.mxu0 0
  %1112 = vmatpush1.bf16.msra.mxu0 0
  %1113 = vmatprep.subr.bf16.mxu0 0
  %1114 = vmatpush1.bf16.msra.mxu0 0
  %1115 = vmatprep.subr.bf16.mxu0 0
  %1116 = vmatpush1.bf16.msra.mxu0 0
  %1117 = vmatprep.subr.bf16.mxu0 0
  %1118 = vmatpush1.bf16.msra.mxu0 0
  %1119 = vmatprep.subr.bf16.mxu0 0
  %1120 = vmatpush1.bf16.msra.mxu0 0
  %1121 = vmatprep.mubr.bf16.mxu0 0
  %1122 = vmatmul.mubr.bf16.gmra.mrb[0].mxu0 %v759
  %v1123 = vpop.f32.mrb[0].mxu0
  %v1124 = vadd.f32 %v195, %v1123
  %v1125 = vpop.f32.mrb[0].mxu0
  %v1126 = vadd.f32 %v199, %v1125
  %v1127 = vpop.f32.mrb[0].mxu0
  %v1128 = vpop.f32.mrb[0].mxu0
  %1129 = vdwg.mxu0
  %1130 = vmatprep.subr.bf16.mxu0 %v576
  %1131 = vmatpush1.bf16.msra.mxu0 %v575
  %1132 = vmatprep.subr.bf16.mxu0 %v601
  %1133 = vmatpush1.bf16.msra.mxu0 %v600
  %1134 = vmatprep.subr.bf16.mxu0 %v626
  %1135 = vmatpush1.bf16.msra.mxu0 %v625
  %1136 = vmatprep.subr.bf16.mxu0 %v651
  %1137 = vmatpush1.bf16.msra.mxu0 %v650
  %1138 = vmatprep.subr.bf16.mxu0 0
  %1139 = vmatpush1.bf16.msra.mxu0 0
  %1140 = vmatprep.subr.bf16.mxu0 0
  %1141 = vmatpush1.bf16.msra.mxu0 0
  %1142 = vmatprep.subr.bf16.mxu0 0
  %1143 = vmatpush1.bf16.msra.mxu0 0
  %1144 = vmatprep.subr.bf16.mxu0 0
  %1145 = vmatpush1.bf16.msra.mxu0 0
  %1146 = vmatprep.subr.bf16.mxu0 0
  %1147 = vmatpush1.bf16.msra.mxu0 0
  %1148 = vmatprep.subr.bf16.mxu0 0
  %1149 = vmatpush1.bf16.msra.mxu0 0
  %1150 = vmatprep.subr.bf16.mxu0 0
  %1151 = vmatpush1.bf16.msra.mxu0 0
  %1152 = vmatprep.subr.bf16.mxu0 0
  %1153 = vmatpush1.bf16.msra.mxu0 0
  %1154 = vmatprep.subr.bf16.mxu0 0
  %1155 = vmatpush1.bf16.msra.mxu0 0
  %1156 = vmatprep.subr.bf16.mxu0 0
  %1157 = vmatpush1.bf16.msra.mxu0 0
  %1158 = vmatprep.subr.bf16.mxu0 0
  %1159 = vmatpush1.bf16.msra.mxu0 0
  %1160 = vmatprep.subr.bf16.mxu0 0
  %1161 = vmatpush1.bf16.msra.mxu0 0
  %1162 = vmatprep.mubr.bf16.mxu0 0
  %1163 = vmatmul.mubr.bf16.gmra.mrb[0].mxu0 %v759
  %v1164 = vpop.f32.mrb[0].mxu0
  %v1165 = vadd.f32 %v203, %v1164
  %v1166 = vpop.f32.mrb[0].mxu0
  %v1167 = vadd.f32 %v207, %v1166
  %v1168 = vpop.f32.mrb[0].mxu0
  %v1169 = vpop.f32.mrb[0].mxu0
  %1170 = vdwg.mxu0
  %1171 = vmatprep.subr.bf16.mxu0 %v578
  %1172 = vmatpush1.bf16.msra.mxu0 %v577
  %1173 = vmatprep.subr.bf16.mxu0 %v603
  %1174 = vmatpush1.bf16.msra.mxu0 %v602
  %1175 = vmatprep.subr.bf16.mxu0 %v628
  %1176 = vmatpush1.bf16.msra.mxu0 %v627
  %1177 = vmatprep.subr.bf16.mxu0 %v653
  %1178 = vmatpush1.bf16.msra.mxu0 %v652
  %1179 = vmatprep.subr.bf16.mxu0 0
  %1180 = vmatpush1.bf16.msra.mxu0 0
  %1181 = vmatprep.subr.bf16.mxu0 0
  %1182 = vmatpush1.bf16.msra.mxu0 0
  %1183 = vmatprep.subr.bf16.mxu0 0
  %1184 = vmatpush1.bf16.msra.mxu0 0
  %1185 = vmatprep.subr.bf16.mxu0 0
  %1186 = vmatpush1.bf16.msra.mxu0 0
  %1187 = vmatprep.subr.bf16.mxu0 0
  %1188 = vmatpush1.bf16.msra.mxu0 0
  %1189 = vmatprep.subr.bf16.mxu0 0
  %1190 = vmatpush1.bf16.msra.mxu0 0
  %1191 = vmatprep.subr.bf16.mxu0 0
  %1192 = vmatpush1.bf16.msra.mxu0 0
  %1193 = vmatprep.subr.bf16.mxu0 0
  %1194 = vmatpush1.bf16.msra.mxu0 0
  %1195 = vmatprep.subr.bf16.mxu0 0
  %1196 = vmatpush1.bf16.msra.mxu0 0
  %1197 = vmatprep.subr.bf16.mxu0 0
  %1198 = vmatpush1.bf16.msra.mxu0 0
  %1199 = vmatprep.subr.bf16.mxu0 0
  %1200 = vmatpush1.bf16.msra.mxu0 0
  %1201 = vmatprep.subr.bf16.mxu0 0
  %1202 = vmatpush1.bf16.msra.mxu0 0
  %1203 = vmatprep.mubr.bf16.mxu0 0
  %1204 = vmatmul.mubr.bf16.gmra.mrb[0].mxu0 %v759
  %v1205 = vpop.f32.mrb[0].mxu0
  %v1206 = vadd.f32 %v211, %v1205
  %v1207 = vpop.f32.mrb[0].mxu0
  %v1208 = vadd.f32 %v215, %v1207
  %v1209 = vpop.f32.mrb[0].mxu0
  %v1210 = vpop.f32.mrb[0].mxu0
  %1211 = vdwg.mxu0
  %1212 = vmatprep.subr.bf16.mxu0 %v580
  %1213 = vmatpush1.bf16.msra.mxu0 %v579
  %1214 = vmatprep.subr.bf16.mxu0 %v605
  %1215 = vmatpush1.bf16.msra.mxu0 %v604
  %1216 = vmatprep.subr.bf16.mxu0 %v630
  %1217 = vmatpush1.bf16.msra.mxu0 %v629
  %1218 = vmatprep.subr.bf16.mxu0 %v655
  %1219 = vmatpush1.bf16.msra.mxu0 %v654
  %1220 = vmatprep.subr.bf16.mxu0 0
  %1221 = vmatpush1.bf16.msra.mxu0 0
  %1222 = vmatprep.subr.bf16.mxu0 0
  %1223 = vmatpush1.bf16.msra.mxu0 0
  %1224 = vmatprep.subr.bf16.mxu0 0
  %1225 = vmatpush1.bf16.msra.mxu0 0
  %1226 = vmatprep.subr.bf16.mxu0 0
  %1227 = vmatpush1.bf16.msra.mxu0 0
  %1228 = vmatprep.subr.bf16.mxu0 0
  %1229 = vmatpush1.bf16.msra.mxu0 0
  %1230 = vmatprep.subr.bf16.mxu0 0
  %1231 = vmatpush1.bf16.msra.mxu0 0
  %1232 = vmatprep.subr.bf16.mxu0 0
  %1233 = vmatpush1.bf16.msra.mxu0 0
  %1234 = vmatprep.subr.bf16.mxu0 0
  %1235 = vmatpush1.bf16.msra.mxu0 0
  %1236 = vmatprep.subr.bf16.mxu0 0
  %1237 = vmatpush1.bf16.msra.mxu0 0
  %1238 = vmatprep.subr.bf16.mxu0 0
  %1239 = vmatpush1.bf16.msra.mxu0 0
  %1240 = vmatprep.subr.bf16.mxu0 0
  %1241 = vmatpush1.bf16.msra.mxu0 0
  %1242 = vmatprep.subr.bf16.mxu0 0
  %1243 = vmatpush1.bf16.msra.mxu0 0
  %1244 = vmatprep.mubr.bf16.mxu0 0
  %1245 = vmatmul.mubr.bf16.gmra.mrb[0].mxu0 %v759
  %v1246 = vpop.f32.mrb[0].mxu0
  %v1247 = vadd.f32 %v219, %v1246
  %v1248 = vpop.f32.mrb[0].mxu0
  %v1249 = vadd.f32 %v223, %v1248
  %v1250 = vpop.f32.mrb[0].mxu0
  %v1251 = vpop.f32.mrb[0].mxu0
  %1252 = vdwg.mxu0
  %1253 = vmatprep.subr.bf16.mxu0 0
  %1254 = vmatpush1.bf16.msra.mxu0 %v581
  %1255 = vmatprep.subr.bf16.mxu0 0
  %1256 = vmatpush1.bf16.msra.mxu0 %v606
  %1257 = vmatprep.subr.bf16.mxu0 0
  %1258 = vmatpush1.bf16.msra.mxu0 %v631
  %1259 = vmatprep.subr.bf16.mxu0 0
  %1260 = vmatpush1.bf16.msra.mxu0 %v656
  %1261 = vmatprep.subr.bf16.mxu0 0
  %1262 = vmatpush1.bf16.msra.mxu0 0
  %1263 = vmatprep.subr.bf16.mxu0 0
  %1264 = vmatpush1.bf16.msra.mxu0 0
  %1265 = vmatprep.subr.bf16.mxu0 0
  %1266 = vmatpush1.bf16.msra.mxu0 0
  %1267 = vmatprep.subr.bf16.mxu0 0
  %1268 = vmatpush1.bf16.msra.mxu0 0
  %1269 = vmatprep.subr.bf16.mxu0 0
  %1270 = vmatpush1.bf16.msra.mxu0 0
  %1271 = vmatprep.subr.bf16.mxu0 0
  %1272 = vmatpush1.bf16.msra.mxu0 0
  %1273 = vmatprep.subr.bf16.mxu0 0
  %1274 = vmatpush1.bf16.msra.mxu0 0
  %1275 = vmatprep.subr.bf16.mxu0 0
  %1276 = vmatpush1.bf16.msra.mxu0 0
  %1277 = vmatprep.subr.bf16.mxu0 0
  %1278 = vmatpush1.bf16.msra.mxu0 0
  %1279 = vmatprep.subr.bf16.mxu0 0
  %1280 = vmatpush1.bf16.msra.mxu0 0
  %1281 = vmatprep.subr.bf16.mxu0 0
  %1282 = vmatpush1.bf16.msra.mxu0 0
  %1283 = vmatprep.subr.bf16.mxu0 0
  %1284 = vmatpush1.bf16.msra.mxu0 0
  %1285 = vmatprep.mubr.bf16.mxu0 0
  %1286 = vmatmul.mubr.bf16.gmra.mrb[0].mxu0 %v759
  %v1287 = vpop.f32.mrb[0].mxu0
  %v1288 = vadd.f32 %v227, %v1287
  %v1289 = vpop.f32.mrb[0].mxu0
  %v1290 = vpop.f32.mrb[0].mxu0
  %v1291 = vpop.f32.mrb[0].mxu0
  %1292 = vdwg.mxu0
  %v1293 = vmax.f32 %v796, 0.0
  %v1294 = vmax.f32 %v798, 0.0
  %v1295 = vmax.f32 %v837, 0.0
  %v1296 = vmax.f32 %v839, 0.0
  %v1297 = vmax.f32 %v878, 0.0
  %v1298 = vmax.f32 %v880, 0.0
  %v1299 = vmax.f32 %v919, 0.0
  %v1300 = vmax.f32 %v921, 0.0
  %v1301 = vmax.f32 %v960, 0.0
  %v1302 = vmax.f32 %v962, 0.0
  %v1303 = vmax.f32 %v1001, 0.0
  %v1304 = vmax.f32 %v1003, 0.0
  %v1305 = vmax.f32 %v1042, 0.0
  %v1306 = vmax.f32 %v1044, 0.0
  %v1307 = vmax.f32 %v1083, 0.0
  %v1308 = vmax.f32 %v1085, 0.0
  %v1309 = vmax.f32 %v1124, 0.0
  %v1310 = vmax.f32 %v1126, 0.0
  %v1311 = vmax.f32 %v1165, 0.0
  %v1312 = vmax.f32 %v1167, 0.0
  %v1313 = vmax.f32 %v1206, 0.0
  %v1314 = vmax.f32 %v1208, 0.0
  %v1315 = vmax.f32 %v1247, 0.0
  %v1316 = vmax.f32 %v1249, 0.0
  %v1317 = vmax.f32 %v1288, 0.0
  %v1318 = vpack.c.bf16 %v1293, %v1293
  %v1319 = vpack.c.bf16 %v1294, %v1294
  %v1320 = vpack.c.bf16 %v1295, %v1295
  %v1321 = vpack.c.bf16 %v1296, %v1296
  %v1322 = vpack.c.bf16 %v1297, %v1297
  %v1323 = vpack.c.bf16 %v1298, %v1298
  %v1324 = vpack.c.bf16 %v1299, %v1299
  %v1325 = vpack.c.bf16 %v1300, %v1300
  %v1326 = vpack.c.bf16 %v1301, %v1301
  %v1327 = vpack.c.bf16 %v1302, %v1302
  %v1328 = vpack.c.bf16 %v1303, %v1303
  %v1329 = vpack.c.bf16 %v1304, %v1304
  %v1330 = vpack.c.bf16 %v1305, %v1305
  %v1331 = vpack.c.bf16 %v1306, %v1306
  %v1332 = vpack.c.bf16 %v1307, %v1307
  %v1333 = vpack.c.bf16 %v1308, %v1308
  %v1334 = vpack.c.bf16 %v1309, %v1309
  %v1335 = vpack.c.bf16 %v1310, %v1310
  %v1336 = vpack.c.bf16 %v1311, %v1311
  %v1337 = vpack.c.bf16 %v1312, %v1312
  %v1338 = vpack.c.bf16 %v1313, %v1313
  %v1339 = vpack.c.bf16 %v1314, %v1314
  %v1340 = vpack.c.bf16 %v1315, %v1315
  %v1341 = vpack.c.bf16 %v1316, %v1316
  %v1342 = vpack.c.bf16 %v1317, %v1317
  %v1368 = vcombine.low %v1318, %v1319
  %v1369 = vcombine.low %v1320, %v1321
  %v1370 = vcombine.low %v1322, %v1323
  %v1371 = vcombine.low %v1324, %v1325
  %v1373 = vunpack.c.l.s4 1966171168
  %v1374 = vunpack.c.0.s8 %v1373
  %v1375 = vlaneseq
  %v1376 = vshrl.u32 %v1375, 7
  %v1377 = vsub.s32 %v1374, %v1376
  %v1378 = vrot.slane %v1368, %v1377
  %v1380 = vunpack.c.l.s4 1966171168
  %v1381 = vunpack.c.0.s8 %v1380
  %v1382 = vlaneseq
  %v1383 = vshrl.u32 %v1382, 7
  %v1384 = vsub.s32 %v1381, %v1383
  %v1385 = vrot.slane %v1369, %v1384
  %v1387 = vunpack.c.l.s4 1966171168
  %v1388 = vunpack.c.0.s8 %v1387
  %v1389 = vlaneseq
  %v1390 = vshrl.u32 %v1389, 7
  %v1391 = vsub.s32 %v1388, %v1390
  %v1392 = vrot.slane %v1370, %v1391
  %v1394 = vunpack.c.l.s4 1966171168
  %v1395 = vunpack.c.0.s8 %v1394
  %v1396 = vlaneseq
  %v1397 = vshrl.u32 %v1396, 7
  %v1398 = vsub.s32 %v1395, %v1397
  %v1399 = vrot.slane %v1371, %v1398
  %v1400 = vcombine.low %v1378, %v1385
  %v1401 = vcombine.low %v1392, %v1399
  %v1403 = vunpack.c.l.s4 1966171168
  %v1404 = vunpack.c.0.s8 %v1403
  %v1405 = vlaneseq
  %v1406 = vshrl.u32 %v1405, 7
  %v1407 = vsub.s32 %v1404, %v1406
  %v1408 = vrot.slane %v1400, %v1407
  %v1410 = vunpack.c.l.s4 1966171168
  %v1411 = vunpack.c.0.s8 %v1410
  %v1412 = vlaneseq
  %v1413 = vshrl.u32 %v1412, 7
  %v1414 = vsub.s32 %v1411, %v1413
  %v1415 = vrot.slane %v1401, %v1414
  %v1416 = vcombine.low %v1408, %v1415
  %v1417 = vcombine.low %v1326, %v1327
  %v1418 = vcombine.low %v1328, %v1329
  %v1419 = vcombine.low %v1330, %v1331
  %v1420 = vcombine.low %v1332, %v1333
  %v1422 = vunpack.c.l.s4 1966171168
  %v1423 = vunpack.c.0.s8 %v1422
  %v1424 = vlaneseq
  %v1425 = vshrl.u32 %v1424, 7
  %v1426 = vsub.s32 %v1423, %v1425
  %v1427 = vrot.slane %v1417, %v1426
  %v1429 = vunpack.c.l.s4 1966171168
  %v1430 = vunpack.c.0.s8 %v1429
  %v1431 = vlaneseq
  %v1432 = vshrl.u32 %v1431, 7
  %v1433 = vsub.s32 %v1430, %v1432
  %v1434 = vrot.slane %v1418, %v1433
  %v1436 = vunpack.c.l.s4 1966171168
  %v1437 = vunpack.c.0.s8 %v1436
  %v1438 = vlaneseq
  %v1439 = vshrl.u32 %v1438, 7
  %v1440 = vsub.s32 %v1437, %v1439
  %v1441 = vrot.slane %v1419, %v1440
  %v1443 = vunpack.c.l.s4 1966171168
  %v1444 = vunpack.c.0.s8 %v1443
  %v1445 = vlaneseq
  %v1446 = vshrl.u32 %v1445, 7
  %v1447 = vsub.s32 %v1444, %v1446
  %v1448 = vrot.slane %v1420, %v1447
  %v1449 = vcombine.low %v1427, %v1434
  %v1450 = vcombine.low %v1441, %v1448
  %v1452 = vunpack.c.l.s4 1966171168
  %v1453 = vunpack.c.0.s8 %v1452
  %v1454 = vlaneseq
  %v1455 = vshrl.u32 %v1454, 7
  %v1456 = vsub.s32 %v1453, %v1455
  %v1457 = vrot.slane %v1449, %v1456
  %v1459 = vunpack.c.l.s4 1966171168
  %v1460 = vunpack.c.0.s8 %v1459
  %v1461 = vlaneseq
  %v1462 = vshrl.u32 %v1461, 7
  %v1463 = vsub.s32 %v1460, %v1462
  %v1464 = vrot.slane %v1450, %v1463
  %v1465 = vcombine.low %v1457, %v1464
  %v1466 = vcombine.low %v1334, %v1335
  %v1467 = vcombine.low %v1336, %v1337
  %v1468 = vcombine.low %v1338, %v1339
  %v1469 = vcombine.low %v1340, %v1341
  %v1471 = vunpack.c.l.s4 1966171168
  %v1472 = vunpack.c.0.s8 %v1471
  %v1473 = vlaneseq
  %v1474 = vshrl.u32 %v1473, 7
  %v1475 = vsub.s32 %v1472, %v1474
  %v1476 = vrot.slane %v1466, %v1475
  %v1478 = vunpack.c.l.s4 1966171168
  %v1479 = vunpack.c.0.s8 %v1478
  %v1480 = vlaneseq
  %v1481 = vshrl.u32 %v1480, 7
  %v1482 = vsub.s32 %v1479, %v1481
  %v1483 = vrot.slane %v1467, %v1482
  %v1485 = vunpack.c.l.s4 1966171168
  %v1486 = vunpack.c.0.s8 %v1485
  %v1487 = vlaneseq
  %v1488 = vshrl.u32 %v1487, 7
  %v1489 = vsub.s32 %v1486, %v1488
  %v1490 = vrot.slane %v1468, %v1489
  %v1492 = vunpack.c.l.s4 1966171168
  %v1493 = vunpack.c.0.s8 %v1492
  %v1494 = vlaneseq
  %v1495 = vshrl.u32 %v1494, 7
  %v1496 = vsub.s32 %v1493, %v1495
  %v1497 = vrot.slane %v1469, %v1496
  %v1498 = vcombine.low %v1476, %v1483
  %v1499 = vcombine.low %v1490, %v1497
  %v1501 = vunpack.c.l.s4 1966171168
  %v1502 = vunpack.c.0.s8 %v1501
  %v1503 = vlaneseq
  %v1504 = vshrl.u32 %v1503, 7
  %v1505 = vsub.s32 %v1502, %v1504
  %v1506 = vrot.slane %v1498, %v1505
  %v1508 = vunpack.c.l.s4 1966171168
  %v1509 = vunpack.c.0.s8 %v1508
  %v1510 = vlaneseq
  %v1511 = vshrl.u32 %v1510, 7
  %v1512 = vsub.s32 %v1509, %v1511
  %v1513 = vrot.slane %v1499, %v1512
  %v1514 = vcombine.low %v1506, %v1513
  %v1516 = vunpack.c.l.s4 1966171168
  %v1517 = vunpack.c.0.s8 %v1516
  %v1518 = vlaneseq
  %v1519 = vshrl.u32 %v1518, 7
  %v1520 = vsub.s32 %v1517, %v1519
  %v1521 = vrot.slane %v1342, %v1520
  %v1523 = vunpack.c.l.s4 1966171168
  %v1524 = vunpack.c.0.s8 %v1523
  %v1525 = vlaneseq
  %v1526 = vshrl.u32 %v1525, 7
  %v1527 = vsub.s32 %v1524, %v1526
  %v1528 = vrot.slane %v1521, %v1527
  %1533 = vst [vmem:[%s3] sm:$0xff] %v1416
  %1534 = vst [vmem:[%s3 + $0x8] sm:$0xff] %v1465
  %1535 = vst [vmem:[%s3 + $0x10] sm:$0xff] %v1514
  %vm1536 = vcmask 516096
  %1537 = vst.msk [vmem:[%s3 + $0x18] sm:$0x1] %vm1536, %v1528
  // Predicated region
  $region14: #{generator_forward.4} parent=0 // pred_check
    _
  $region15: #{generator_forward.4} parent=0 // pred_check_branch
    %1539 = sbr.rel (0) target = $region17
  $region16: #{generator_forward.4} parent=0 // pred_region
    _
  $region17: #{generator_forward.4} parent=0 // pred_fallthru
    _
  // Predicated region
  $region18: #{generator_forward.4} parent=0 // pred_check
    _
  $region19: #{generator_forward.4} parent=0 // pred_check_branch
    %1541 = sbr.rel (0) target = $region21
  $region20: #{generator_forward.4} parent=0 // pred_region
    _
  $region21: #{generator_forward.4} parent=0 // pred_fallthru
    _

// kernel: tile.17
$region0: #{tile.17}
  #allocation0 [shape = 's32[1]{0}', space=sflag, size = 0x4, scoped, tag = 'scoped memory for tile.17']
  %s0 = inlined_call_operand.vmem [shape: f32[32], index: 0, kind: input, shape index: {}]
  %s1 = inlined_call_operand.vmem [shape: f32[4,32], index: 1, kind: output, shape index: {}]
  // Predicated region
  $region2: #{tile.17} parent=0 // pred_check
    _
  $region3: #{tile.17} parent=0 // pred_check_branch
    %3 = sbr.rel (0) target = $region5
  $region4: #{tile.17} parent=0 // pred_region
    _
  $region5: #{tile.17} parent=0 // pred_fallthru
    _
  %v4 = vld [vmem:[%s0] ss:$0 sm:$0xff]
  %5 = vst [vmem:[%s1] sm:$0xf] %v4

// kernel: tile.0
$region0: #{tile.0}
  %s0 = inlined_call_operand.vmem [shape: f32[4,32], index: 0, kind: input, shape index: {}]
  %s1 = inlined_call_operand.vmem [shape: f32[128,1], index: 1, kind: output, shape index: {}]
  $region1: #{tile.0} parent=0
    #allocation0 [shape = 'u8[4096]{0}', space=vmem, size = 0x1000, scoped, tag = 'scoped mem for input reshape']
    %s3 = sshllo.u32 0, 4
    %v4 = vld [vmem:[%s0] sm:%s3]
    %5 = vst [vmem:[#allocation0] sm:%s3] %v4
    %v6 = vld [vmem:[#allocation0] sm:$0xf]
    %vm7 = vcmask 7168
    %8 = vst.msk [vmem:[%s1] sm:$0x1] %vm7, %v6
    %s9 = scalar_lea.vmem %s1, 31
    %10 = vst.msk [vmem:[%s9] sm:$0x2] %vm7, %v6
    %s11 = scalar_lea.vmem %s1, 62
    %12 = vst.msk [vmem:[%s11] sm:$0x4] %vm7, %v6
    %s13 = scalar_lea.vmem %s1, 93
    %14 = vst.msk [vmem:[%s13] sm:$0x8] %vm7, %v6
    %v15 = vld [vmem:[#allocation0] sm:$0xf]
    %16 = vrot.lane.b32.xlu0 %v15, 127
    %v17 = vpop.permute.xlu0 %16
    %vm18 = vcmask 7168
    %s19 = scalar_lea.vmem %s1, 1
    %20 = vst.msk [vmem:[%s19] sm:$0x1] %vm18, %v17
    %s21 = scalar_lea.vmem %s1, 32
    %22 = vst.msk [vmem:[%s21] sm:$0x2] %vm18, %v17
    %s23 = scalar_lea.vmem %s1, 63
    %24 = vst.msk [vmem:[%s23] sm:$0x4] %vm18, %v17
    %s25 = scalar_lea.vmem %s1, 94
    %26 = vst.msk [vmem:[%s25] sm:$0x8] %vm18, %v17
    %v27 = vld [vmem:[#allocation0] sm:$0xf]
    %28 = vrot.lane.b32.xlu0 %v27, 126
    %v29 = vpop.permute.xlu0 %28
    %vm30 = vcmask 7168
    %s31 = scalar_lea.vmem %s1, 2
    %32 = vst.msk [vmem:[%s31] sm:$0x1] %vm30, %v29
    %s33 = scalar_lea.vmem %s1, 33
    %34 = vst.msk [vmem:[%s33] sm:$0x2] %vm30, %v29
    %s35 = scalar_lea.vmem %s1, 64
    %36 = vst.msk [vmem:[%s35] sm:$0x4] %vm30, %v29
    %s37 = scalar_lea.vmem %s1, 95
    %38 = vst.msk [vmem:[%s37] sm:$0x8] %vm30, %v29
    %v39 = vld [vmem:[#allocation0] sm:$0xf]
    %40 = vrot.lane.b32.xlu0 %v39, 125
    %v41 = vpop.permute.xlu0 %40
    %vm42 = vcmask 7168
    %s43 = scalar_lea.vmem %s1, 3
    %44 = vst.msk [vmem:[%s43] sm:$0x1] %vm42, %v41
    %s45 = scalar_lea.vmem %s1, 34
    %46 = vst.msk [vmem:[%s45] sm:$0x2] %vm42, %v41
    %s47 = scalar_lea.vmem %s1, 65
    %48 = vst.msk [vmem:[%s47] sm:$0x4] %vm42, %v41
    %s49 = scalar_lea.vmem %s1, 96
    %50 = vst.msk [vmem:[%s49] sm:$0x8] %vm42, %v41
    %v51 = vld [vmem:[#allocation0] sm:$0xf]
    %52 = vrot.lane.b32.xlu0 %v51, 124
    %v53 = vpop.permute.xlu0 %52
    %vm54 = vcmask 7168
    %s55 = scalar_lea.vmem %s1, 4
    %56 = vst.msk [vmem:[%s55] sm:$0x1] %vm54, %v53
    %s57 = scalar_lea.vmem %s1, 35
    %58 = vst.msk [vmem:[%s57] sm:$0x2] %vm54, %v53
    %s59 = scalar_lea.vmem %s1, 66
    %60 = vst.msk [vmem:[%s59] sm:$0x4] %vm54, %v53
    %s61 = scalar_lea.vmem %s1, 97
    %62 = vst.msk [vmem:[%s61] sm:$0x8] %vm54, %v53
    %v63 = vld [vmem:[#allocation0] sm:$0xf]
    %64 = vrot.lane.b32.xlu0 %v63, 123
    %v65 = vpop.permute.xlu0 %64
    %vm66 = vcmask 7168
    %s67 = scalar_lea.vmem %s1, 5
    %68 = vst.msk [vmem:[%s67] sm:$0x1] %vm66, %v65
    %s69 = scalar_lea.vmem %s1, 36
    %70 = vst.msk [vmem:[%s69] sm:$0x2] %vm66, %v65
    %s71 = scalar_lea.vmem %s1, 67
    %72 = vst.msk [vmem:[%s71] sm:$0x4] %vm66, %v65
    %s73 = scalar_lea.vmem %s1, 98
    %74 = vst.msk [vmem:[%s73] sm:$0x8] %vm66, %v65
    %v75 = vld [vmem:[#allocation0] sm:$0xf]
    %76 = vrot.lane.b32.xlu0 %v75, 122
    %v77 = vpop.permute.xlu0 %76
    %vm78 = vcmask 7168
    %s79 = scalar_lea.vmem %s1, 6
    %80 = vst.msk [vmem:[%s79] sm:$0x1] %vm78, %v77
    %s81 = scalar_lea.vmem %s1, 37
    %82 = vst.msk [vmem:[%s81] sm:$0x2] %vm78, %v77
    %s83 = scalar_lea.vmem %s1, 68
    %84 = vst.msk [vmem:[%s83] sm:$0x4] %vm78, %v77
    %s85 = scalar_lea.vmem %s1, 99
    %86 = vst.msk [vmem:[%s85] sm:$0x8] %vm78, %v77
    %v87 = vld [vmem:[#allocation0] sm:$0xf]
    %88 = vrot.lane.b32.xlu0 %v87, 121
    %v89 = vpop.permute.xlu0 %88
    %vm90 = vcmask 7168
    %s91 = scalar_lea.vmem %s1, 7
    %92 = vst.msk [vmem:[%s91] sm:$0x1] %vm90, %v89
    %s93 = scalar_lea.vmem %s1, 38
    %94 = vst.msk [vmem:[%s93] sm:$0x2] %vm90, %v89
    %s95 = scalar_lea.vmem %s1, 69
    %96 = vst.msk [vmem:[%s95] sm:$0x4] %vm90, %v89
    %s97 = scalar_lea.vmem %s1, 100
    %98 = vst.msk [vmem:[%s97] sm:$0x8] %vm90, %v89
    %v99 = vld [vmem:[#allocation0] sm:$0xf]
    %100 = vrot.lane.b32.xlu0 %v99, 120
    %v101 = vpop.permute.xlu0 %100
    %vm102 = vcmask 7168
    %s103 = scalar_lea.vmem %s1, 8
    %104 = vst.msk [vmem:[%s103] sm:$0x1] %vm102, %v101
    %s105 = scalar_lea.vmem %s1, 39
    %106 = vst.msk [vmem:[%s105] sm:$0x2] %vm102, %v101
    %s107 = scalar_lea.vmem %s1, 70
    %108 = vst.msk [vmem:[%s107] sm:$0x4] %vm102, %v101
    %s109 = scalar_lea.vmem %s1, 101
    %110 = vst.msk [vmem:[%s109] sm:$0x8] %vm102, %v101
    %v111 = vld [vmem:[#allocation0] sm:$0xf]
    %112 = vrot.lane.b32.xlu0 %v111, 119
    %v113 = vpop.permute.xlu0 %112
    %vm114 = vcmask 7168
    %s115 = scalar_lea.vmem %s1, 9
    %116 = vst.msk [vmem:[%s115] sm:$0x1] %vm114, %v113
    %s117 = scalar_lea.vmem %s1, 40
    %118 = vst.msk [vmem:[%s117] sm:$0x2] %vm114, %v113
    %s119 = scalar_lea.vmem %s1, 71
    %120 = vst.msk [vmem:[%s119] sm:$0x4] %vm114, %v113
    %s121 = scalar_lea.vmem %s1, 102
    %122 = vst.msk [vmem:[%s121] sm:$0x8] %vm114, %v113
    %v123 = vld [vmem:[#allocation0] sm:$0xf]
    %124 = vrot.lane.b32.xlu0 %v123, 118
    %v125 = vpop.permute.xlu0 %124
    %vm126 = vcmask 7168
    %s127 = scalar_lea.vmem %s1, 10
    %128 = vst.msk [vmem:[%s127] sm:$0x1] %vm126, %v125
    %s129 = scalar_lea.vmem %s1, 41
    %130 = vst.msk [vmem:[%s129] sm:$0x2] %vm126, %v125
    %s131 = scalar_lea.vmem %s1, 72
    %132 = vst.msk [vmem:[%s131] sm:$0x4] %vm126, %v125
    %s133 = scalar_lea.vmem %s1, 103
    %134 = vst.msk [vmem:[%s133] sm:$0x8] %vm126, %v125
    %v135 = vld [vmem:[#allocation0] sm:$0xf]
    %136 = vrot.lane.b32.xlu0 %v135, 117
    %v137 = vpop.permute.xlu0 %136
    %vm138 = vcmask 7168
    %s139 = scalar_lea.vmem %s1, 11
    %140 = vst.msk [vmem:[%s139] sm:$0x1] %vm138, %v137
    %s141 = scalar_lea.vmem %s1, 42
    %142 = vst.msk [vmem:[%s141] sm:$0x2] %vm138, %v137
    %s143 = scalar_lea.vmem %s1, 73
    %144 = vst.msk [vmem:[%s143] sm:$0x4] %vm138, %v137
    %s145 = scalar_lea.vmem %s1, 104
    %146 = vst.msk [vmem:[%s145] sm:$0x8] %vm138, %v137
    %v147 = vld [vmem:[#allocation0] sm:$0xf]
    %148 = vrot.lane.b32.xlu0 %v147, 116
    %v149 = vpop.permute.xlu0 %148
    %vm150 = vcmask 7168
    %s151 = scalar_lea.vmem %s1, 12
    %152 = vst.msk [vmem:[%s151] sm:$0x1] %vm150, %v149
    %s153 = scalar_lea.vmem %s1, 43
    %154 = vst.msk [vmem:[%s153] sm:$0x2] %vm150, %v149
    %s155 = scalar_lea.vmem %s1, 74
    %156 = vst.msk [vmem:[%s155] sm:$0x4] %vm150, %v149
    %s157 = scalar_lea.vmem %s1, 105
    %158 = vst.msk [vmem:[%s157] sm:$0x8] %vm150, %v149
    %v159 = vld [vmem:[#allocation0] sm:$0xf]
    %160 = vrot.lane.b32.xlu0 %v159, 115
    %v161 = vpop.permute.xlu0 %160
    %vm162 = vcmask 7168
    %s163 = scalar_lea.vmem %s1, 13
    %164 = vst.msk [vmem:[%s163] sm:$0x1] %vm162, %v161
    %s165 = scalar_lea.vmem %s1, 44
    %166 = vst.msk [vmem:[%s165] sm:$0x2] %vm162, %v161
    %s167 = scalar_lea.vmem %s1, 75
    %168 = vst.msk [vmem:[%s167] sm:$0x4] %vm162, %v161
    %s169 = scalar_lea.vmem %s1, 106
    %170 = vst.msk [vmem:[%s169] sm:$0x8] %vm162, %v161
    %v171 = vld [vmem:[#allocation0] sm:$0xf]
    %172 = vrot.lane.b32.xlu0 %v171, 114
    %v173 = vpop.permute.xlu0 %172
    %vm174 = vcmask 7168
    %s175 = scalar_lea.vmem %s1, 14
    %176 = vst.msk [vmem:[%s175] sm:$0x1] %vm174, %v173
    %s177 = scalar_lea.vmem %s1, 45
    %178 = vst.msk [vmem:[%s177] sm:$0x2] %vm174, %v173
    %s179 = scalar_lea.vmem %s1, 76
    %180 = vst.msk [vmem:[%s179] sm:$0x4] %vm174, %v173
    %s181 = scalar_lea.vmem %s1, 107
    %182 = vst.msk [vmem:[%s181] sm:$0x8] %vm174, %v173
    %v183 = vld [vmem:[#allocation0] sm:$0xf]
    %184 = vrot.lane.b32.xlu0 %v183, 113
    %v185 = vpop.permute.xlu0 %184
    %vm186 = vcmask 7168
    %s187 = scalar_lea.vmem %s1, 15
    %188 = vst.msk [vmem:[%s187] sm:$0x1] %vm186, %v185
    %s189 = scalar_lea.vmem %s1, 46
    %190 = vst.msk [vmem:[%s189] sm:$0x2] %vm186, %v185
    %s191 = scalar_lea.vmem %s1, 77
    %192 = vst.msk [vmem:[%s191] sm:$0x4] %vm186, %v185
    %s193 = scalar_lea.vmem %s1, 108
    %194 = vst.msk [vmem:[%s193] sm:$0x8] %vm186, %v185
    %v195 = vld [vmem:[#allocation0] sm:$0xf]
    %196 = vrot.lane.b32.xlu0 %v195, 112
    %v197 = vpop.permute.xlu0 %196
    %vm198 = vcmask 7168
    %s199 = scalar_lea.vmem %s1, 16
    %200 = vst.msk [vmem:[%s199] sm:$0x1] %vm198, %v197
    %s201 = scalar_lea.vmem %s1, 47
    %202 = vst.msk [vmem:[%s201] sm:$0x2] %vm198, %v197
    %s203 = scalar_lea.vmem %s1, 78
    %204 = vst.msk [vmem:[%s203] sm:$0x4] %vm198, %v197
    %s205 = scalar_lea.vmem %s1, 109
    %206 = vst.msk [vmem:[%s205] sm:$0x8] %vm198, %v197
    %v207 = vld [vmem:[#allocation0] sm:$0xf]
    %208 = vrot.lane.b32.xlu0 %v207, 111
    %v209 = vpop.permute.xlu0 %208
    %vm210 = vcmask 7168
    %s211 = scalar_lea.vmem %s1, 17
    %212 = vst.msk [vmem:[%s211] sm:$0x1] %vm210, %v209
    %s213 = scalar_lea.vmem %s1, 48
    %214 = vst.msk [vmem:[%s213] sm:$0x2] %vm210, %v209
    %s215 = scalar_lea.vmem %s1, 79
    %216 = vst.msk [vmem:[%s215] sm:$0x4] %vm210, %v209
    %s217 = scalar_lea.vmem %s1, 110
    %218 = vst.msk [vmem:[%s217] sm:$0x8] %vm210, %v209
    %v219 = vld [vmem:[#allocation0] sm:$0xf]
    %220 = vrot.lane.b32.xlu0 %v219, 110
    %v221 = vpop.permute.xlu0 %220
    %vm222 = vcmask 7168
    %s223 = scalar_lea.vmem %s1, 18
    %224 = vst.msk [vmem:[%s223] sm:$0x1] %vm222, %v221
    %s225 = scalar_lea.vmem %s1, 49
    %226 = vst.msk [vmem:[%s225] sm:$0x2] %vm222, %v221
    %s227 = scalar_lea.vmem %s1, 80
    %228 = vst.msk [vmem:[%s227] sm:$0x4] %vm222, %v221
    %s229 = scalar_lea.vmem %s1, 111
    %230 = vst.msk [vmem:[%s229] sm:$0x8] %vm222, %v221
    %v231 = vld [vmem:[#allocation0] sm:$0xf]
    %232 = vrot.lane.b32.xlu0 %v231, 109
    %v233 = vpop.permute.xlu0 %232
    %vm234 = vcmask 7168
    %s235 = scalar_lea.vmem %s1, 19
    %236 = vst.msk [vmem:[%s235] sm:$0x1] %vm234, %v233
    %s237 = scalar_lea.vmem %s1, 50
    %238 = vst.msk [vmem:[%s237] sm:$0x2] %vm234, %v233
    %s239 = scalar_lea.vmem %s1, 81
    %240 = vst.msk [vmem:[%s239] sm:$0x4] %vm234, %v233
    %s241 = scalar_lea.vmem %s1, 112
    %242 = vst.msk [vmem:[%s241] sm:$0x8] %vm234, %v233
    %v243 = vld [vmem:[#allocation0] sm:$0xf]
    %244 = vrot.lane.b32.xlu0 %v243, 108
    %v245 = vpop.permute.xlu0 %244
    %vm246 = vcmask 7168
    %s247 = scalar_lea.vmem %s1, 20
    %248 = vst.msk [vmem:[%s247] sm:$0x1] %vm246, %v245
    %s249 = scalar_lea.vmem %s1, 51
    %250 = vst.msk [vmem:[%s249] sm:$0x2] %vm246, %v245
    %s251 = scalar_lea.vmem %s1, 82
    %252 = vst.msk [vmem:[%s251] sm:$0x4] %vm246, %v245
    %s253 = scalar_lea.vmem %s1, 113
    %254 = vst.msk [vmem:[%s253] sm:$0x8] %vm246, %v245
    %v255 = vld [vmem:[#allocation0] sm:$0xf]
    %256 = vrot.lane.b32.xlu0 %v255, 107
    %v257 = vpop.permute.xlu0 %256
    %vm258 = vcmask 7168
    %s259 = scalar_lea.vmem %s1, 21
    %260 = vst.msk [vmem:[%s259] sm:$0x1] %vm258, %v257
    %s261 = scalar_lea.vmem %s1, 52
    %262 = vst.msk [vmem:[%s261] sm:$0x2] %vm258, %v257
    %s263 = scalar_lea.vmem %s1, 83
    %264 = vst.msk [vmem:[%s263] sm:$0x4] %vm258, %v257
    %s265 = scalar_lea.vmem %s1, 114
    %266 = vst.msk [vmem:[%s265] sm:$0x8] %vm258, %v257
    %v267 = vld [vmem:[#allocation0] sm:$0xf]
    %268 = vrot.lane.b32.xlu0 %v267, 106
    %v269 = vpop.permute.xlu0 %268
    %vm270 = vcmask 7168
    %s271 = scalar_lea.vmem %s1, 22
    %272 = vst.msk [vmem:[%s271] sm:$0x1] %vm270, %v269
    %s273 = scalar_lea.vmem %s1, 53
    %274 = vst.msk [vmem:[%s273] sm:$0x2] %vm270, %v269
    %s275 = scalar_lea.vmem %s1, 84
    %276 = vst.msk [vmem:[%s275] sm:$0x4] %vm270, %v269
    %s277 = scalar_lea.vmem %s1, 115
    %278 = vst.msk [vmem:[%s277] sm:$0x8] %vm270, %v269
    %v279 = vld [vmem:[#allocation0] sm:$0xf]
    %280 = vrot.lane.b32.xlu0 %v279, 105
    %v281 = vpop.permute.xlu0 %280
    %vm282 = vcmask 7168
    %s283 = scalar_lea.vmem %s1, 23
    %284 = vst.msk [vmem:[%s283] sm:$0x1] %vm282, %v281
    %s285 = scalar_lea.vmem %s1, 54
    %286 = vst.msk [vmem:[%s285] sm:$0x2] %vm282, %v281
    %s287 = scalar_lea.vmem %s1, 85
    %288 = vst.msk [vmem:[%s287] sm:$0x4] %vm282, %v281
    %s289 = scalar_lea.vmem %s1, 116
    %290 = vst.msk [vmem:[%s289] sm:$0x8] %vm282, %v281
    %v291 = vld [vmem:[#allocation0] sm:$0xf]
    %292 = vrot.lane.b32.xlu0 %v291, 104
    %v293 = vpop.permute.xlu0 %292
    %vm294 = vcmask 7168
    %s295 = scalar_lea.vmem %s1, 24
    %296 = vst.msk [vmem:[%s295] sm:$0x1] %vm294, %v293
    %s297 = scalar_lea.vmem %s1, 55
    %298 = vst.msk [vmem:[%s297] sm:$0x2] %vm294, %v293
    %s299 = scalar_lea.vmem %s1, 86
    %300 = vst.msk [vmem:[%s299] sm:$0x4] %vm294, %v293
    %s301 = scalar_lea.vmem %s1, 117
    %302 = vst.msk [vmem:[%s301] sm:$0x8] %vm294, %v293
    %v303 = vld [vmem:[#allocation0] sm:$0xf]
    %304 = vrot.lane.b32.xlu0 %v303, 103
    %v305 = vpop.permute.xlu0 %304
    %vm306 = vcmask 7168
    %s307 = scalar_lea.vmem %s1, 25
    %308 = vst.msk [vmem:[%s307] sm:$0x1] %vm306, %v305
    %s309 = scalar_lea.vmem %s1, 56
    %310 = vst.msk [vmem:[%s309] sm:$0x2] %vm306, %v305
    %s311 = scalar_lea.vmem %s1, 87
    %312 = vst.msk [vmem:[%s311] sm:$0x4] %vm306, %v305
    %s313 = scalar_lea.vmem %s1, 118
    %314 = vst.msk [vmem:[%s313] sm:$0x8] %vm306, %v305
    %v315 = vld [vmem:[#allocation0] sm:$0xf]
    %316 = vrot.lane.b32.xlu0 %v315, 102
    %v317 = vpop.permute.xlu0 %316
    %vm318 = vcmask 7168
    %s319 = scalar_lea.vmem %s1, 26
    %320 = vst.msk [vmem:[%s319] sm:$0x1] %vm318, %v317
    %s321 = scalar_lea.vmem %s1, 57
    %322 = vst.msk [vmem:[%s321] sm:$0x2] %vm318, %v317
    %s323 = scalar_lea.vmem %s1, 88
    %324 = vst.msk [vmem:[%s323] sm:$0x4] %vm318, %v317
    %s325 = scalar_lea.vmem %s1, 119
    %326 = vst.msk [vmem:[%s325] sm:$0x8] %vm318, %v317
    %v327 = vld [vmem:[#allocation0] sm:$0xf]
    %328 = vrot.lane.b32.xlu0 %v327, 101
    %v329 = vpop.permute.xlu0 %328
    %vm330 = vcmask 7168
    %s331 = scalar_lea.vmem %s1, 27
    %332 = vst.msk [vmem:[%s331] sm:$0x1] %vm330, %v329
    %s333 = scalar_lea.vmem %s1, 58
    %334 = vst.msk [vmem:[%s333] sm:$0x2] %vm330, %v329
    %s335 = scalar_lea.vmem %s1, 89
    %336 = vst.msk [vmem:[%s335] sm:$0x4] %vm330, %v329
    %s337 = scalar_lea.vmem %s1, 120
    %338 = vst.msk [vmem:[%s337] sm:$0x8] %vm330, %v329
    %v339 = vld [vmem:[#allocation0] sm:$0xf]
    %340 = vrot.lane.b32.xlu0 %v339, 100
    %v341 = vpop.permute.xlu0 %340
    %vm342 = vcmask 7168
    %s343 = scalar_lea.vmem %s1, 28
    %344 = vst.msk [vmem:[%s343] sm:$0x1] %vm342, %v341
    %s345 = scalar_lea.vmem %s1, 59
    %346 = vst.msk [vmem:[%s345] sm:$0x2] %vm342, %v341
    %s347 = scalar_lea.vmem %s1, 90
    %348 = vst.msk [vmem:[%s347] sm:$0x4] %vm342, %v341
    %s349 = scalar_lea.vmem %s1, 121
    %350 = vst.msk [vmem:[%s349] sm:$0x8] %vm342, %v341
    %v351 = vld [vmem:[#allocation0] sm:$0xf]
    %352 = vrot.lane.b32.xlu0 %v351, 99
    %v353 = vpop.permute.xlu0 %352
    %vm354 = vcmask 7168
    %s355 = scalar_lea.vmem %s1, 29
    %356 = vst.msk [vmem:[%s355] sm:$0x1] %vm354, %v353
    %s357 = scalar_lea.vmem %s1, 60
    %358 = vst.msk [vmem:[%s357] sm:$0x2] %vm354, %v353
    %s359 = scalar_lea.vmem %s1, 91
    %360 = vst.msk [vmem:[%s359] sm:$0x4] %vm354, %v353
    %s361 = scalar_lea.vmem %s1, 122
    %362 = vst.msk [vmem:[%s361] sm:$0x8] %vm354, %v353
    %v363 = vld [vmem:[#allocation0] sm:$0xf]
    %364 = vrot.lane.b32.xlu0 %v363, 98
    %v365 = vpop.permute.xlu0 %364
    %vm366 = vcmask 7168
    %s367 = scalar_lea.vmem %s1, 30
    %368 = vst.msk [vmem:[%s367] sm:$0x1] %vm366, %v365
    %s369 = scalar_lea.vmem %s1, 61
    %370 = vst.msk [vmem:[%s369] sm:$0x2] %vm366, %v365
    %s371 = scalar_lea.vmem %s1, 92
    %372 = vst.msk [vmem:[%s371] sm:$0x4] %vm366, %v365
    %s373 = scalar_lea.vmem %s1, 123
    %374 = vst.msk [vmem:[%s373] sm:$0x8] %vm366, %v365
    %v375 = vld [vmem:[#allocation0] sm:$0xf]
    %376 = vrot.lane.b32.xlu0 %v375, 97
    %v377 = vpop.permute.xlu0 %376
    %vm378 = vcmask 7168
    %s379 = scalar_lea.vmem %s1, 31
    %380 = vst.msk [vmem:[%s379] sm:$0x1] %vm378, %v377
    %s381 = scalar_lea.vmem %s1, 62
    %382 = vst.msk [vmem:[%s381] sm:$0x2] %vm378, %v377
    %s383 = scalar_lea.vmem %s1, 93
    %384 = vst.msk [vmem:[%s383] sm:$0x4] %vm378, %v377
    %s385 = scalar_lea.vmem %s1, 124
    %386 = vst.msk [vmem:[%s385] sm:$0x8] %vm378, %v377

// kernel: generator_forward.5
$region0: #{generator_forward.5}
  #allocation0 [shape = 'u32[]', space=smem, size = 0x4, offset = 0x4, fixed_abs, tag = 'smem constant byte address 0x4 - core index']
  #allocation1 [shape = 'u32[144,128]{1,0:T(1,128)}', space=vmem, size = 0x12000, scoped, tag = 'internal scratch']
  %s0 = inlined_call_operand.vmem [shape: bf16[2,256,64], index: 0, kind: input, shape index: {}]
  %s1 = inlined_call_operand.vmem [shape: bf16[128,256], index: 1, kind: input, shape index: {}]
  %s2 = inlined_call_operand.vmem [shape: f32[128,1], index: 2, kind: input, shape index: {}]
  %s3 = inlined_call_operand.vmem [shape: bf16[2,128,64], index: 3, kind: output, shape index: {}]
  %s4 = sld [smem:[#allocation0]]
  $region45: #{generator_forward.5} parent=0
    _
  %s6 = ssub.s32 1, %s4
  %s7 = scalar_select 0, %s6, %s4
  loop: start=0, step=1, limit=4
  $region2: #{generator_forward.5} parent=0 // loop_pre_header
    _
  $region3: #{generator_forward.5} parent=0 // loop_header
    %s9 = sphi 0, %s13
    %p10 = scmp.ge.s32.totalorder %s9, 4
    %s19 = sphi 0, %s21
    %s22 = sphi 0, %s19
    %s23 = sphi 0, %s22
    %s39 = sphi 0, %s23
    %s43 = sphi 0, %s43
    %s45 = sphi 0, %s43
    %s46 = sphi 0, %s45
    %s60 = sphi 0, %s46
    %s64 = sphi 0, %s64
    %s66 = sphi 0, %s64
    %s67 = sphi 0, %s66
    %s81 = sphi 0, %s67
    %s87 = sphi 0, %s89
    %s90 = sphi 0, %s87
    %s91 = sphi 0, %s90
    %s107 = sphi 0, %s91
  $region4: #{generator_forward.5} parent=0 // loop_header_branch
    %12 = sbr.rel (%p10) target = $region8
  $region5: #{generator_forward.5} parent=0 // loop_body
    %s14 = ssub.s32 %s9, 1
    %s15 = ssub.s32 %s9, 2
    %s16 = sadd.s32 %s9, 1
    %s17 = ssub.s32 %s9, %s16
    %p18 = scmp.eq.s32.totalorder %s17, 0
    %s20 = sadd.s32 %s19, 1
    %s21 = scalar_select %p18, %s19, %s20
    %p24 = pneg %p18
    %p25 = scmp.eq.s32.totalorder %s9, 1
    %p26 = por %p24, %p25
    %p27 = scmp.ne.s32.totalorder %s19, %s22
    %p28 = scmp.eq.s32.totalorder %s9, 0
    %p29 = por %p27, %p28
    %p30 = scmp.ne.s32.totalorder %s19, %s22
    %p31 = scmp.eq.s32.totalorder %s14, 1
    %p32 = por %p30, %p31
    %p33 = scmp.ne.s32.totalorder %s22, %s23
    %p34 = scmp.eq.s32.totalorder %s14, 0
    %p35 = por %p33, %p34
    %p36 = scmp.ne.s32.totalorder %s22, %s23
    %p37 = scmp.eq.s32.totalorder %s15, 1
    %p38 = por %p36, %p37
    %p40 = scmp.ne.s32.totalorder %s23, %s39
    %p41 = scmp.eq.s32.totalorder %s15, 0
    %p42 = por %p40, %p41
    %s44 = sadd.s32 %s43, 1
    %p47 = scmp.eq.s32.totalorder %s9, 1
    %p48 = scmp.ne.s32.totalorder %s43, %s45
    %p49 = scmp.eq.s32.totalorder %s9, 0
    %p50 = por %p48, %p49
    %p51 = scmp.ne.s32.totalorder %s43, %s45
    %p52 = scmp.eq.s32.totalorder %s14, 1
    %p53 = por %p51, %p52
    %p54 = scmp.ne.s32.totalorder %s45, %s46
    %p55 = scmp.eq.s32.totalorder %s14, 0
    %p56 = por %p54, %p55
    %p57 = scmp.ne.s32.totalorder %s45, %s46
    %p58 = scmp.eq.s32.totalorder %s15, 1
    %p59 = por %p57, %p58
    %p61 = scmp.ne.s32.totalorder %s46, %s60
    %p62 = scmp.eq.s32.totalorder %s15, 0
    %p63 = por %p61, %p62
    %s65 = sadd.s32 %s64, 1
    %p68 = scmp.eq.s32.totalorder %s9, 1
    %p69 = scmp.ne.s32.totalorder %s64, %s66
    %p70 = scmp.eq.s32.totalorder %s9, 0
    %p71 = por %p69, %p70
    %p72 = scmp.ne.s32.totalorder %s64, %s66
    %p73 = scmp.eq.s32.totalorder %s14, 1
    %p74 = por %p72, %p73
    %p75 = scmp.ne.s32.totalorder %s66, %s67
    %p76 = scmp.eq.s32.totalorder %s14, 0
    %p77 = por %p75, %p76
    %p78 = scmp.ne.s32.totalorder %s66, %s67
    %p79 = scmp.eq.s32.totalorder %s15, 1
    %p80 = por %p78, %p79
    %p82 = scmp.ne.s32.totalorder %s67, %s81
    %p83 = scmp.eq.s32.totalorder %s15, 0
    %p84 = por %p82, %p83
    %s85 = ssub.s32 %s9, %s16
    %p86 = scmp.eq.s32.totalorder %s85, 0
    %s88 = sadd.s32 %s87, 1
    %s89 = scalar_select %p86, %s87, %s88
    %p92 = pneg %p86
    %p93 = scmp.eq.s32.totalorder %s9, 1
    %p94 = por %p92, %p93
    %p95 = scmp.ne.s32.totalorder %s87, %s90
    %p96 = scmp.eq.s32.totalorder %s9, 0
    %p97 = por %p95, %p96
    %p98 = scmp.ne.s32.totalorder %s87, %s90
    %p99 = scmp.eq.s32.totalorder %s14, 1
    %p100 = por %p98, %p99
    %p101 = scmp.ne.s32.totalorder %s90, %s91
    %p102 = scmp.eq.s32.totalorder %s14, 0
    %p103 = por %p101, %p102
    %p104 = scmp.ne.s32.totalorder %s90, %s91
    %p105 = scmp.eq.s32.totalorder %s15, 1
    %p106 = por %p104, %p105
    %p108 = scmp.ne.s32.totalorder %s91, %s107
    %p109 = scmp.eq.s32.totalorder %s15, 0
    %p110 = por %p108, %p109
    %p111 = scmp.le.s32.totalorder 1, %s9
    %p112 = scmp.lt.s32.totalorder %s9, 3
    %p113 = pnand %p111, %p112
    %p114 = pneg %p113
    // Predicated region
    $region9: #{generator_forward.5} parent=5 // pred_check
      _
    $region10: #{generator_forward.5} parent=5 // pred_check_branch
      %116 = sbr.rel (%p113) target = $region12
    $region11: #{generator_forward.5} parent=5 // pred_region
      %s117 = ssub.s32 %s9, 1
      // Predicated region
      $region13: #{generator_forward.5} parent=11 // pred_check
        %p118 = pneg %p56
      $region14: #{generator_forward.5} parent=11 // pred_check_branch
        %120 = sbr.rel (%p118) target = $region16
      $region15: #{generator_forward.5} parent=11 // pred_region
        _
      $region16: #{generator_forward.5} parent=11 // pred_fallthru
        _
      // Predicated region
      $region17: #{generator_forward.5} parent=11 // pred_check
        %p121 = pneg %p77
      $region18: #{generator_forward.5} parent=11 // pred_check_branch
        %123 = sbr.rel (%p121) target = $region20
      $region19: #{generator_forward.5} parent=11 // pred_region
        _
      $region20: #{generator_forward.5} parent=11 // pred_fallthru
        _
    $region12: #{generator_forward.5} parent=5 // pred_fallthru
      _
    %p124 = scmp.lt.s32.totalorder %s9, 2
    // Predicated region
    $region21: #{generator_forward.5} parent=5 // pred_check
      %p125 = pneg %p124
    $region22: #{generator_forward.5} parent=5 // pred_check_branch
      %127 = sbr.rel (%p125) target = $region24
    $region23: #{generator_forward.5} parent=5 // pred_region
      // Predicated region
      $region25: #{generator_forward.5} parent=23 // pred_check
        %p128 = pneg %p29
      $region26: #{generator_forward.5} parent=23 // pred_check_branch
        %130 = sbr.rel (%p128) target = $region28
      $region27: #{generator_forward.5} parent=23 // pred_region
        %p131 = scmp.lt.s32.totalorder %s9, 1
        %s132 = scalar_select %p131, %s9, 1
        %s133 = smul.addr %s132, 32
        %s134 = smul.addr %s133, 4
        %s135 = scalar_lea.vmem %s0, %s134
      $region28: #{generator_forward.5} parent=23 // pred_fallthru
        _
    $region24: #{generator_forward.5} parent=5 // pred_fallthru
      _
    %p136 = scmp.le.s32.totalorder 1, %s9
    %p137 = scmp.lt.s32.totalorder %s9, 3
    %p138 = pnand %p136, %p137
    %p139 = pneg %p138
    // Predicated region
    $region29: #{generator_forward.5} parent=5 // pred_check
      _
    $region30: #{generator_forward.5} parent=5 // pred_check_branch
      %141 = sbr.rel (%p138) target = $region32
    $region31: #{generator_forward.5} parent=5 // pred_region
      %s142 = ssub.s32 %s9, 1
      %p143 = scmp.lt.s32.totalorder %s14, 1
      %s144 = scalar_select %p143, %s14, 1
      %s145 = smul.addr %s144, 32
      %s146 = smul.addr %s145, 4
      %s147 = scalar_lea.vmem %s0, %s146
      %p148 = pneg %p35
      %p149 = pneg %p32
      %p150 = pneg %p56
      %p151 = pneg %p53
      %p152 = pneg %p77
      %p153 = pneg %p74
      %p154 = pneg %p103
      %p155 = pneg %p100
      %p156 = scmp.lt.s32.totalorder %s14, 1
      %s157 = scalar_select %p156, %s14, 1
      %s158 = smul.addr %s157, 16
      %s159 = smul.addr %s158, 4
      %s160 = scalar_lea.vmem %s3, %s159
      %p161 = scmp.lt.s32.totalorder %s14, 1
      %s162 = scalar_select %p161, %s14, 1
      %s163 = smul.addr %s162, 32
      %s164 = smul.addr %s163, 4
      %s165 = scalar_lea.vmem %s0, %s164
      %p166 = scmp.lt.s32.totalorder %s14, 1
      %s167 = scalar_select %p166, %s14, 1
      %s168 = smul.addr %s167, 16
      %s169 = smul.addr %s168, 4
      %s170 = scalar_lea.vmem %s3, %s169
      %v172 = vld [vmem:[%s1] sm:$0xff]
      %v173 = vld [vmem:[%s1 + $0x8] sm:$0xff]
      %v174 = vld [vmem:[%s1 + $0x10] sm:$0xff]
      %v175 = vld [vmem:[%s1 + $0x18] sm:$0xff]
      %v176 = vld [vmem:[%s1 + $0x20] sm:$0xff]
      %v177 = vld [vmem:[%s1 + $0x28] sm:$0xff]
      %v178 = vld [vmem:[%s1 + $0x30] sm:$0xff]
      %v179 = vld [vmem:[%s1 + $0x38] sm:$0xff]
      %v180 = vld [vmem:[%s1 + $0x40] sm:$0xff]
      %v181 = vld [vmem:[%s1 + $0x48] sm:$0xff]
      %v182 = vld [vmem:[%s1 + $0x50] sm:$0xff]
      %v183 = vld [vmem:[%s1 + $0x58] sm:$0xff]
      %v184 = vld [vmem:[%s1 + $0x60] sm:$0xff]
      %v185 = vld [vmem:[%s1 + $0x68] sm:$0xff]
      %v186 = vld [vmem:[%s1 + $0x70] sm:$0xff]
      %v187 = vld [vmem:[%s1 + $0x78] sm:$0xff]
      %v188 = vld [vmem:[%s165] sm:$0xf]
      %v189 = vld [vmem:[%s165 + $0x4] sm:$0xf]
      %v190 = vld [vmem:[%s165 + $0x8] sm:$0xf]
      %v191 = vld [vmem:[%s165 + $0xc] sm:$0xf]
      %v192 = vld [vmem:[%s165 + $0x10] sm:$0xf]
      %v193 = vld [vmem:[%s165 + $0x14] sm:$0xf]
      %v194 = vld [vmem:[%s165 + $0x18] sm:$0xf]
      %v195 = vld [vmem:[%s165 + $0x1c] sm:$0xf]
      %v196 = vld [vmem:[%s165 + $0x20] sm:$0xf]
      %v197 = vld [vmem:[%s165 + $0x24] sm:$0xf]
      %v198 = vld [vmem:[%s165 + $0x28] sm:$0xf]
      %v199 = vld [vmem:[%s165 + $0x2c] sm:$0xf]
      %v200 = vld [vmem:[%s165 + $0x30] sm:$0xf]
      %v201 = vld [vmem:[%s165 + $0x34] sm:$0xf]
      %v202 = vld [vmem:[%s165 + $0x38] sm:$0xf]
      %v203 = vld [vmem:[%s165 + $0x3c] sm:$0xf]
      %v204 = vld [vmem:[%s165 + $0x40] sm:$0xf]
      %v205 = vld [vmem:[%s165 + $0x44] sm:$0xf]
      %v206 = vld [vmem:[%s165 + $0x48] sm:$0xf]
      %v207 = vld [vmem:[%s165 + $0x4c] sm:$0xf]
      %v208 = vld [vmem:[%s165 + $0x50] sm:$0xf]
      %v209 = vld [vmem:[%s165 + $0x54] sm:$0xf]
      %v210 = vld [vmem:[%s165 + $0x58] sm:$0xf]
      %v211 = vld [vmem:[%s165 + $0x5c] sm:$0xf]
      %v212 = vld [vmem:[%s165 + $0x60] sm:$0xf]
      %v213 = vld [vmem:[%s165 + $0x64] sm:$0xf]
      %v214 = vld [vmem:[%s165 + $0x68] sm:$0xf]
      %v215 = vld [vmem:[%s165 + $0x6c] sm:$0xf]
      %v216 = vld [vmem:[%s165 + $0x70] sm:$0xf]
      %v217 = vld [vmem:[%s165 + $0x74] sm:$0xf]
      %v218 = vld [vmem:[%s165 + $0x78] sm:$0xf]
      %v219 = vld [vmem:[%s165 + $0x7c] sm:$0xf]
      %v220 = vld [vmem:[%s2] sm:$0xff]
      %v221 = vld [vmem:[%s2 + $0x8] sm:$0xff]
      %v222 = vld [vmem:[%s2 + $0x10] sm:$0xff]
      %v223 = vld [vmem:[%s2 + $0x18] sm:$0xff]
      %v224 = vld [vmem:[%s2 + $0x20] sm:$0xff]
      %v225 = vld [vmem:[%s2 + $0x28] sm:$0xff]
      %v226 = vld [vmem:[%s2 + $0x30] sm:$0xff]
      %v227 = vld [vmem:[%s2 + $0x38] sm:$0xff]
      %v228 = vld [vmem:[%s2 + $0x40] sm:$0xff]
      %v229 = vld [vmem:[%s2 + $0x48] sm:$0xff]
      %v230 = vld [vmem:[%s2 + $0x50] sm:$0xff]
      %v231 = vld [vmem:[%s2 + $0x58] sm:$0xff]
      %v232 = vld [vmem:[%s2 + $0x60] sm:$0xff]
      %v233 = vld [vmem:[%s2 + $0x68] sm:$0xff]
      %v234 = vld [vmem:[%s2 + $0x70] sm:$0xff]
      %v235 = vld [vmem:[%s2 + $0x78] sm:$0xff]
      %237 = vset.pattern.permute.xlu0 0
      %238 = vperm.xlu0 %237, %v220
      %v239 = vpop.permute.xlu0 %238
      %242 = vset.pattern.permute.xlu0 0
      %243 = vperm.xlu0 %242, %v221
      %v244 = vpop.permute.xlu0 %243
      %247 = vset.pattern.permute.xlu0 0
      %248 = vperm.xlu0 %247, %v222
      %v249 = vpop.permute.xlu0 %248
      %252 = vset.pattern.permute.xlu0 0
      %253 = vperm.xlu0 %252, %v223
      %v254 = vpop.permute.xlu0 %253
      %257 = vset.pattern.permute.xlu0 0
      %258 = vperm.xlu0 %257, %v224
      %v259 = vpop.permute.xlu0 %258
      %262 = vset.pattern.permute.xlu0 0
      %263 = vperm.xlu0 %262, %v225
      %v264 = vpop.permute.xlu0 %263
      %267 = vset.pattern.permute.xlu0 0
      %268 = vperm.xlu0 %267, %v226
      %v269 = vpop.permute.xlu0 %268
      %272 = vset.pattern.permute.xlu0 0
      %273 = vperm.xlu0 %272, %v227
      %v274 = vpop.permute.xlu0 %273
      %277 = vset.pattern.permute.xlu0 0
      %278 = vperm.xlu0 %277, %v228
      %v279 = vpop.permute.xlu0 %278
      %282 = vset.pattern.permute.xlu0 0
      %283 = vperm.xlu0 %282, %v229
      %v284 = vpop.permute.xlu0 %283
      %287 = vset.pattern.permute.xlu0 0
      %288 = vperm.xlu0 %287, %v230
      %v289 = vpop.permute.xlu0 %288
      %292 = vset.pattern.permute.xlu0 0
      %293 = vperm.xlu0 %292, %v231
      %v294 = vpop.permute.xlu0 %293
      %297 = vset.pattern.permute.xlu0 0
      %298 = vperm.xlu0 %297, %v232
      %v299 = vpop.permute.xlu0 %298
      %302 = vset.pattern.permute.xlu0 0
      %303 = vperm.xlu0 %302, %v233
      %v304 = vpop.permute.xlu0 %303
      %307 = vset.pattern.permute.xlu0 0
      %308 = vperm.xlu0 %307, %v234
      %v309 = vpop.permute.xlu0 %308
      %312 = vset.pattern.permute.xlu0 0
      %313 = vperm.xlu0 %312, %v235
      %v314 = vpop.permute.xlu0 %313
      %v332 = vunpack.c.l.b16 %v172
      %v333 = vunpack.c.h.b16 %v172
      %v334 = vunpack.c.l.b16 %v173
      %v335 = vunpack.c.h.b16 %v173
      %v336 = vunpack.c.l.b16 %v174
      %v337 = vunpack.c.h.b16 %v174
      %v338 = vunpack.c.l.b16 %v175
      %v339 = vunpack.c.h.b16 %v175
      %v340 = vunpack.c.l.b16 %v176
      %v341 = vunpack.c.h.b16 %v176
      %v342 = vunpack.c.l.b16 %v177
      %v343 = vunpack.c.h.b16 %v177
      %v344 = vunpack.c.l.b16 %v178
      %v345 = vunpack.c.h.b16 %v178
      %v346 = vunpack.c.l.b16 %v179
      %v347 = vunpack.c.h.b16 %v179
      %v348 = vunpack.c.l.b16 %v180
      %v349 = vunpack.c.h.b16 %v180
      %v350 = vunpack.c.l.b16 %v181
      %v351 = vunpack.c.h.b16 %v181
      %v352 = vunpack.c.l.b16 %v182
      %v353 = vunpack.c.h.b16 %v182
      %v354 = vunpack.c.l.b16 %v183
      %v355 = vunpack.c.h.b16 %v183
      %v356 = vunpack.c.l.b16 %v184
      %v357 = vunpack.c.h.b16 %v184
      %v358 = vunpack.c.l.b16 %v185
      %v359 = vunpack.c.h.b16 %v185
      %v360 = vunpack.c.l.b16 %v186
      %v361 = vunpack.c.h.b16 %v186
      %v362 = vunpack.c.l.b16 %v187
      %v363 = vunpack.c.h.b16 %v187
      %v364 = vpack.c.b16 %v334, %v332
      %v365 = vpack.c.b16 %v335, %v333
      %v366 = vpack.c.b16 %v338, %v336
      %v367 = vpack.c.b16 %v339, %v337
      %v368 = vpack.c.b16 %v342, %v340
      %v369 = vpack.c.b16 %v343, %v341
      %v370 = vpack.c.b16 %v346, %v344
      %v371 = vpack.c.b16 %v347, %v345
      %v372 = vpack.c.b16 %v350, %v348
      %v373 = vpack.c.b16 %v351, %v349
      %v374 = vpack.c.b16 %v354, %v352
      %v375 = vpack.c.b16 %v355, %v353
      %v376 = vpack.c.b16 %v358, %v356
      %v377 = vpack.c.b16 %v359, %v357
      %v378 = vpack.c.b16 %v362, %v360
      %v379 = vpack.c.b16 %v363, %v361
      %v428 = vunpack.c.l.b16 %v188
      %v429 = vunpack.c.l.b16 %v189
      %v430 = vunpack.c.l.b16 %v190
      %v431 = vunpack.c.l.b16 %v191
      %v432 = vunpack.c.l.b16 %v192
      %v433 = vunpack.c.l.b16 %v193
      %v434 = vunpack.c.l.b16 %v194
      %v435 = vunpack.c.l.b16 %v195
      %v436 = vunpack.c.l.b16 %v196
      %v437 = vunpack.c.l.b16 %v197
      %v438 = vunpack.c.l.b16 %v198
      %v439 = vunpack.c.l.b16 %v199
      %v440 = vunpack.c.l.b16 %v200
      %v441 = vunpack.c.l.b16 %v201
      %v442 = vunpack.c.l.b16 %v202
      %v443 = vunpack.c.l.b16 %v203
      %v444 = vunpack.c.l.b16 %v204
      %v445 = vunpack.c.l.b16 %v205
      %v446 = vunpack.c.l.b16 %v206
      %v447 = vunpack.c.l.b16 %v207
      %v448 = vunpack.c.l.b16 %v208
      %v449 = vunpack.c.l.b16 %v209
      %v450 = vunpack.c.l.b16 %v210
      %v451 = vunpack.c.l.b16 %v211
      %v452 = vunpack.c.l.b16 %v212
      %v453 = vunpack.c.l.b16 %v213
      %v454 = vunpack.c.l.b16 %v214
      %v455 = vunpack.c.l.b16 %v215
      %v456 = vunpack.c.l.b16 %v216
      %v457 = vunpack.c.l.b16 %v217
      %v458 = vunpack.c.l.b16 %v218
      %v459 = vunpack.c.l.b16 %v219
      %v460 = vpack.c.b16 %v429, %v428
      %v461 = vpack.c.b16 %v431, %v430
      %v462 = vpack.c.b16 %v433, %v432
      %v463 = vpack.c.b16 %v435, %v434
      %v464 = vpack.c.b16 %v437, %v436
      %v465 = vpack.c.b16 %v439, %v438
      %v466 = vpack.c.b16 %v441, %v440
      %v467 = vpack.c.b16 %v443, %v442
      %v468 = vpack.c.b16 %v445, %v444
      %v469 = vpack.c.b16 %v447, %v446
      %v470 = vpack.c.b16 %v449, %v448
      %v471 = vpack.c.b16 %v451, %v450
      %v472 = vpack.c.b16 %v453, %v452
      %v473 = vpack.c.b16 %v455, %v454
      %v474 = vpack.c.b16 %v457, %v456
      %v475 = vpack.c.b16 %v459, %v458
      %492 = vmatprep.subr.bf16.mxu0 0
      %493 = vmatpush1.bf16.msra.mxu0 %v460
      %494 = vmatprep.subr.bf16.mxu0 0
      %495 = vmatpush1.bf16.msra.mxu0 %v461
      %496 = vmatprep.subr.bf16.mxu0 0
      %497 = vmatpush1.bf16.msra.mxu0 %v462
      %498 = vmatprep.subr.bf16.mxu0 0
      %499 = vmatpush1.bf16.msra.mxu0 %v463
      %500 = vmatprep.subr.bf16.mxu0 0
      %501 = vmatpush1.bf16.msra.mxu0 %v464
      %502 = vmatprep.subr.bf16.mxu0 0
      %503 = vmatpush1.bf16.msra.mxu0 %v465
      %504 = vmatprep.subr.bf16.mxu0 0
      %505 = vmatpush1.bf16.msra.mxu0 %v466
      %506 = vmatprep.subr.bf16.mxu0 0
      %507 = vmatpush1.bf16.msra.mxu0 %v467
      %508 = vmatprep.subr.bf16.mxu0 0
      %509 = vmatpush1.bf16.msra.mxu0 %v468
      %510 = vmatprep.subr.bf16.mxu0 0
      %511 = vmatpush1.bf16.msra.mxu0 %v469
      %512 = vmatprep.subr.bf16.mxu0 0
      %513 = vmatpush1.bf16.msra.mxu0 %v470
      %514 = vmatprep.subr.bf16.mxu0 0
      %515 = vmatpush1.bf16.msra.mxu0 %v471
      %516 = vmatprep.subr.bf16.mxu0 0
      %517 = vmatpush1.bf16.msra.mxu0 %v472
      %518 = vmatprep.subr.bf16.mxu0 0
      %519 = vmatpush1.bf16.msra.mxu0 %v473
      %520 = vmatprep.subr.bf16.mxu0 0
      %521 = vmatpush1.bf16.msra.mxu0 %v474
      %522 = vmatprep.subr.bf16.mxu0 0
      %523 = vmatpush1.bf16.msra.mxu0 %v475
      %524 = vmatprep.mubr.bf16.mxu0 %v365
      %525 = vmatmul.mubr.bf16.gmra.mrb[0].mxu0 %v364
      %v526 = vpop.f32.mrb[0].mxu0
      %v527 = vadd.f32 %v239, %v526
      %v528 = vpop.f32.mrb[0].mxu0
      %v529 = vpop.f32.mrb[0].mxu0
      %v530 = vadd.f32 %v244, %v529
      %v531 = vpop.f32.mrb[0].mxu0
      %532 = vmatprep.mubr.bf16.mxu0 %v367
      %533 = vmatmul.mubr.bf16.gmra.mrb[0].mxu0 %v366
      %v534 = vpop.f32.mrb[0].mxu0
      %v535 = vadd.f32 %v249, %v534
      %v536 = vpop.f32.mrb[0].mxu0
      %v537 = vpop.f32.mrb[0].mxu0
      %v538 = vadd.f32 %v254, %v537
      %v539 = vpop.f32.mrb[0].mxu0
      %540 = vmatprep.mubr.bf16.mxu0 %v369
      %541 = vmatmul.mubr.bf16.gmra.mrb[0].mxu0 %v368
      %v542 = vpop.f32.mrb[0].mxu0
      %v543 = vadd.f32 %v259, %v542
      %v544 = vpop.f32.mrb[0].mxu0
      %v545 = vpop.f32.mrb[0].mxu0
      %v546 = vadd.f32 %v264, %v545
      %v547 = vpop.f32.mrb[0].mxu0
      %548 = vmatprep.mubr.bf16.mxu0 %v371
      %549 = vmatmul.mubr.bf16.gmra.mrb[0].mxu0 %v370
      %v550 = vpop.f32.mrb[0].mxu0
      %v551 = vadd.f32 %v269, %v550
      %v552 = vpop.f32.mrb[0].mxu0
      %v553 = vpop.f32.mrb[0].mxu0
      %v554 = vadd.f32 %v274, %v553
      %v555 = vpop.f32.mrb[0].mxu0
      %556 = vmatprep.mubr.bf16.mxu0 %v373
      %557 = vmatmul.mubr.bf16.gmra.mrb[0].mxu0 %v372
      %v558 = vpop.f32.mrb[0].mxu0
      %v559 = vadd.f32 %v279, %v558
      %v560 = vpop.f32.mrb[0].mxu0
      %v561 = vpop.f32.mrb[0].mxu0
      %v562 = vadd.f32 %v284, %v561
      %v563 = vpop.f32.mrb[0].mxu0
      %564 = vmatprep.mubr.bf16.mxu0 %v375
      %565 = vmatmul.mubr.bf16.gmra.mrb[0].mxu0 %v374
      %v566 = vpop.f32.mrb[0].mxu0
      %v567 = vadd.f32 %v289, %v566
      %v568 = vpop.f32.mrb[0].mxu0
      %v569 = vpop.f32.mrb[0].mxu0
      %v570 = vadd.f32 %v294, %v569
      %v571 = vpop.f32.mrb[0].mxu0
      %572 = vmatprep.mubr.bf16.mxu0 %v377
      %573 = vmatmul.mubr.bf16.gmra.mrb[0].mxu0 %v376
      %v574 = vpop.f32.mrb[0].mxu0
      %v575 = vadd.f32 %v299, %v574
      %v576 = vpop.f32.mrb[0].mxu0
      %v577 = vpop.f32.mrb[0].mxu0
      %v578 = vadd.f32 %v304, %v577
      %v579 = vpop.f32.mrb[0].mxu0
      %580 = vmatprep.mubr.bf16.mxu0 %v379
      %581 = vmatmul.mubr.bf16.gmra.mrb[0].mxu0 %v378
      %v582 = vpop.f32.mrb[0].mxu0
      %v583 = vadd.f32 %v309, %v582
      %v584 = vpop.f32.mrb[0].mxu0
      %v585 = vpop.f32.mrb[0].mxu0
      %v586 = vadd.f32 %v314, %v585
      %v587 = vpop.f32.mrb[0].mxu0
      %588 = vdwg.mxu0
      %v589 = vmax.f32 %v527, 0.0
      %v590 = vmax.f32 %v530, 0.0
      %v591 = vmax.f32 %v535, 0.0
      %v592 = vmax.f32 %v538, 0.0
      %v593 = vmax.f32 %v543, 0.0
      %v594 = vmax.f32 %v546, 0.0
      %v595 = vmax.f32 %v551, 0.0
      %v596 = vmax.f32 %v554, 0.0
      %v597 = vmax.f32 %v559, 0.0
      %v598 = vmax.f32 %v562, 0.0
      %v599 = vmax.f32 %v567, 0.0
      %v600 = vmax.f32 %v570, 0.0
      %v601 = vmax.f32 %v575, 0.0
      %v602 = vmax.f32 %v578, 0.0
      %v603 = vmax.f32 %v583, 0.0
      %v604 = vmax.f32 %v586, 0.0
      %v605 = vpack.c.bf16 %v590, %v589
      %v606 = vpack.c.bf16 %v592, %v591
      %v607 = vpack.c.bf16 %v594, %v593
      %v608 = vpack.c.bf16 %v596, %v595
      %v609 = vpack.c.bf16 %v598, %v597
      %v610 = vpack.c.bf16 %v600, %v599
      %v611 = vpack.c.bf16 %v602, %v601
      %v612 = vpack.c.bf16 %v604, %v603
      %v621 = vunpack.c.l.b16 %v605
      %v622 = vunpack.c.h.b16 %v605
      %v623 = vunpack.c.l.b16 %v606
      %v624 = vunpack.c.h.b16 %v606
      %v625 = vunpack.c.l.b16 %v607
      %v626 = vunpack.c.h.b16 %v607
      %v627 = vunpack.c.l.b16 %v608
      %v628 = vunpack.c.h.b16 %v608
      %v629 = vunpack.c.l.b16 %v609
      %v630 = vunpack.c.h.b16 %v609
      %v631 = vunpack.c.l.b16 %v610
      %v632 = vunpack.c.h.b16 %v610
      %v633 = vunpack.c.l.b16 %v611
      %v634 = vunpack.c.h.b16 %v611
      %v635 = vunpack.c.l.b16 %v612
      %v636 = vunpack.c.h.b16 %v612
      %v637 = vpack.c.b16 %v621, %v621
      %v638 = vpack.c.b16 %v622, %v622
      %v639 = vpack.c.b16 %v623, %v623
      %v640 = vpack.c.b16 %v624, %v624
      %v641 = vpack.c.b16 %v625, %v625
      %v642 = vpack.c.b16 %v626, %v626
      %v643 = vpack.c.b16 %v627, %v627
      %v644 = vpack.c.b16 %v628, %v628
      %v645 = vpack.c.b16 %v629, %v629
      %v646 = vpack.c.b16 %v630, %v630
      %v647 = vpack.c.b16 %v631, %v631
      %v648 = vpack.c.b16 %v632, %v632
      %v649 = vpack.c.b16 %v633, %v633
      %v650 = vpack.c.b16 %v634, %v634
      %v651 = vpack.c.b16 %v635, %v635
      %v652 = vpack.c.b16 %v636, %v636
      %vm669 = vcmask 519168
      %670 = vst.msk [vmem:[%s170] sm:$0xf] %vm669, %v637
      %671 = vst.msk [vmem:[%s170 + $0x4] sm:$0xf] %vm669, %v638
      %672 = vst.msk [vmem:[%s170 + $0x8] sm:$0xf] %vm669, %v639
      %673 = vst.msk [vmem:[%s170 + $0xc] sm:$0xf] %vm669, %v640
      %674 = vst.msk [vmem:[%s170 + $0x10] sm:$0xf] %vm669, %v641
      %675 = vst.msk [vmem:[%s170 + $0x14] sm:$0xf] %vm669, %v642
      %676 = vst.msk [vmem:[%s170 + $0x18] sm:$0xf] %vm669, %v643
      %677 = vst.msk [vmem:[%s170 + $0x1c] sm:$0xf] %vm669, %v644
      %678 = vst.msk [vmem:[%s170 + $0x20] sm:$0xf] %vm669, %v645
      %679 = vst.msk [vmem:[%s170 + $0x24] sm:$0xf] %vm669, %v646
      %680 = vst.msk [vmem:[%s170 + $0x28] sm:$0xf] %vm669, %v647
      %681 = vst.msk [vmem:[%s170 + $0x2c] sm:$0xf] %vm669, %v648
      %682 = vst.msk [vmem:[%s170 + $0x30] sm:$0xf] %vm669, %v649
      %683 = vst.msk [vmem:[%s170 + $0x34] sm:$0xf] %vm669, %v650
      %684 = vst.msk [vmem:[%s170 + $0x38] sm:$0xf] %vm669, %v651
      %685 = vst.msk [vmem:[%s170 + $0x3c] sm:$0xf] %vm669, %v652
      %p686 = scmp.lt.s32.totalorder %s14, 1
      %s687 = scalar_select %p686, %s14, 1
      %s688 = smul.addr %s687, 16
      %s689 = smul.addr %s688, 4
      %s690 = scalar_lea.vmem %s3, %s689
      // Predicated region
      $region33: #{generator_forward.5} parent=31 // pred_check
        %p691 = pneg %p100
      $region34: #{generator_forward.5} parent=31 // pred_check_branch
        %693 = sbr.rel (%p691) target = $region36
      $region35: #{generator_forward.5} parent=31 // pred_region
        _
      $region36: #{generator_forward.5} parent=31 // pred_fallthru
        _
    $region32: #{generator_forward.5} parent=5 // pred_fallthru
      _
    %p694 = scmp.le.s32.totalorder 2, %s9
    // Predicated region
    $region37: #{generator_forward.5} parent=5 // pred_check
      %p695 = pneg %p694
    $region38: #{generator_forward.5} parent=5 // pred_check_branch
      %697 = sbr.rel (%p695) target = $region40
    $region39: #{generator_forward.5} parent=5 // pred_region
      %s698 = ssub.s32 %s9, 2
      // Predicated region
      $region41: #{generator_forward.5} parent=39 // pred_check
        %p699 = pneg %p106
      $region42: #{generator_forward.5} parent=39 // pred_check_branch
        %701 = sbr.rel (%p699) target = $region44
      $region43: #{generator_forward.5} parent=39 // pred_region
        %p702 = scmp.lt.s32.totalorder %s15, 1
        %s703 = scalar_select %p702, %s15, 1
        %s704 = smul.addr %s703, 16
        %s705 = smul.addr %s704, 4
        %s706 = scalar_lea.vmem %s3, %s705
      $region44: #{generator_forward.5} parent=39 // pred_fallthru
        _
    $region40: #{generator_forward.5} parent=5 // pred_fallthru
      _
  $region6: #{generator_forward.5} parent=0 // loop_footer
    %s13 = sadd.s32 1, %s9
  $region7: #{generator_forward.5} parent=0 // loop_footer_branch
    %8 = sbr.rel target = $region3
  $region8: #{generator_forward.5} parent=0 // loop_exit
    _

// kernel: tile.22
$region0: #{tile.22}
  #allocation0 [shape = 's32[1]{0}', space=sflag, size = 0x4, scoped, tag = 'scoped memory for tile.22']
  %s0 = inlined_call_operand.vmem [shape: f32[16], index: 0, kind: input, shape index: {}]
  %s1 = inlined_call_operand.vmem [shape: f32[4,16], index: 1, kind: output, shape index: {}]
  // Predicated region
  $region2: #{tile.22} parent=0 // pred_check
    _
  $region3: #{tile.22} parent=0 // pred_check_branch
    %3 = sbr.rel (0) target = $region5
  $region4: #{tile.22} parent=0 // pred_region
    _
  $region5: #{tile.22} parent=0 // pred_fallthru
    _
  %v4 = vld [vmem:[%s0] ss:$0 sm:$0xff]
  %5 = vst [vmem:[%s1] sm:$0xf] %v4

// kernel: tile.1
$region0: #{tile.1}
  %s0 = inlined_call_operand.vmem [shape: f32[4,16], index: 0, kind: input, shape index: {}]
  %s1 = inlined_call_operand.vmem [shape: f32[64,1], index: 1, kind: output, shape index: {}]
  $region1: #{tile.1} parent=0
    #allocation0 [shape = 'u8[4096]{0}', space=vmem, size = 0x1000, scoped, tag = 'scoped mem for input reshape']
    %s3 = sshllo.u32 0, 4
    %v4 = vld [vmem:[%s0] sm:%s3]
    %5 = vst [vmem:[#allocation0] sm:%s3] %v4
    %v6 = vld [vmem:[#allocation0] sm:$0xf]
    %vm7 = vcmask 7168
    %8 = vst.msk [vmem:[%s1] ss:$16 sm:$0x3] %vm7, %v6
    %9 = vst.msk [vmem:[%s1] ss:$16 sm:$0xc] %vm7, %v6
    %v10 = vld [vmem:[#allocation0] sm:$0xf]
    %11 = vrot.lane.b32.xlu0 %v10, 127
    %v12 = vpop.permute.xlu0 %11
    %vm13 = vcmask 7168
    %s14 = scalar_lea.vmem %s1, 1
    %15 = vst.msk [vmem:[%s14] ss:$16 sm:$0x3] %vm13, %v12
    %s16 = scalar_lea.vmem %s1, 1
    %17 = vst.msk [vmem:[%s16] ss:$16 sm:$0xc] %vm13, %v12
    %v18 = vld [vmem:[#allocation0] sm:$0xf]
    %19 = vrot.lane.b32.xlu0 %v18, 126
    %v20 = vpop.permute.xlu0 %19
    %vm21 = vcmask 7168
    %s22 = scalar_lea.vmem %s1, 2
    %23 = vst.msk [vmem:[%s22] ss:$16 sm:$0x3] %vm21, %v20
    %s24 = scalar_lea.vmem %s1, 2
    %25 = vst.msk [vmem:[%s24] ss:$16 sm:$0xc] %vm21, %v20
    %v26 = vld [vmem:[#allocation0] sm:$0xf]
    %27 = vrot.lane.b32.xlu0 %v26, 125
    %v28 = vpop.permute.xlu0 %27
    %vm29 = vcmask 7168
    %s30 = scalar_lea.vmem %s1, 3
    %31 = vst.msk [vmem:[%s30] ss:$16 sm:$0x3] %vm29, %v28
    %s32 = scalar_lea.vmem %s1, 3
    %33 = vst.msk [vmem:[%s32] ss:$16 sm:$0xc] %vm29, %v28
    %v34 = vld [vmem:[#allocation0] sm:$0xf]
    %35 = vrot.lane.b32.xlu0 %v34, 124
    %v36 = vpop.permute.xlu0 %35
    %vm37 = vcmask 7168
    %s38 = scalar_lea.vmem %s1, 4
    %39 = vst.msk [vmem:[%s38] ss:$16 sm:$0x3] %vm37, %v36
    %s40 = scalar_lea.vmem %s1, 4
    %41 = vst.msk [vmem:[%s40] ss:$16 sm:$0xc] %vm37, %v36
    %v42 = vld [vmem:[#allocation0] sm:$0xf]
    %43 = vrot.lane.b32.xlu0 %v42, 123
    %v44 = vpop.permute.xlu0 %43
    %vm45 = vcmask 7168
    %s46 = scalar_lea.vmem %s1, 5
    %47 = vst.msk [vmem:[%s46] ss:$16 sm:$0x3] %vm45, %v44
    %s48 = scalar_lea.vmem %s1, 5
    %49 = vst.msk [vmem:[%s48] ss:$16 sm:$0xc] %vm45, %v44
    %v50 = vld [vmem:[#allocation0] sm:$0xf]
    %51 = vrot.lane.b32.xlu0 %v50, 122
    %v52 = vpop.permute.xlu0 %51
    %vm53 = vcmask 7168
    %s54 = scalar_lea.vmem %s1, 6
    %55 = vst.msk [vmem:[%s54] ss:$16 sm:$0x3] %vm53, %v52
    %s56 = scalar_lea.vmem %s1, 6
    %57 = vst.msk [vmem:[%s56] ss:$16 sm:$0xc] %vm53, %v52
    %v58 = vld [vmem:[#allocation0] sm:$0xf]
    %59 = vrot.lane.b32.xlu0 %v58, 121
    %v60 = vpop.permute.xlu0 %59
    %vm61 = vcmask 7168
    %s62 = scalar_lea.vmem %s1, 7
    %63 = vst.msk [vmem:[%s62] ss:$16 sm:$0x3] %vm61, %v60
    %s64 = scalar_lea.vmem %s1, 7
    %65 = vst.msk [vmem:[%s64] ss:$16 sm:$0xc] %vm61, %v60
    %v66 = vld [vmem:[#allocation0] sm:$0xf]
    %67 = vrot.lane.b32.xlu0 %v66, 120
    %v68 = vpop.permute.xlu0 %67
    %vm69 = vcmask 7168
    %s70 = scalar_lea.vmem %s1, 8
    %71 = vst.msk [vmem:[%s70] ss:$16 sm:$0x3] %vm69, %v68
    %s72 = scalar_lea.vmem %s1, 8
    %73 = vst.msk [vmem:[%s72] ss:$16 sm:$0xc] %vm69, %v68
    %v74 = vld [vmem:[#allocation0] sm:$0xf]
    %75 = vrot.lane.b32.xlu0 %v74, 119
    %v76 = vpop.permute.xlu0 %75
    %vm77 = vcmask 7168
    %s78 = scalar_lea.vmem %s1, 9
    %79 = vst.msk [vmem:[%s78] ss:$16 sm:$0x3] %vm77, %v76
    %s80 = scalar_lea.vmem %s1, 9
    %81 = vst.msk [vmem:[%s80] ss:$16 sm:$0xc] %vm77, %v76
    %v82 = vld [vmem:[#allocation0] sm:$0xf]
    %83 = vrot.lane.b32.xlu0 %v82, 118
    %v84 = vpop.permute.xlu0 %83
    %vm85 = vcmask 7168
    %s86 = scalar_lea.vmem %s1, 10
    %87 = vst.msk [vmem:[%s86] ss:$16 sm:$0x3] %vm85, %v84
    %s88 = scalar_lea.vmem %s1, 10
    %89 = vst.msk [vmem:[%s88] ss:$16 sm:$0xc] %vm85, %v84
    %v90 = vld [vmem:[#allocation0] sm:$0xf]
    %91 = vrot.lane.b32.xlu0 %v90, 117
    %v92 = vpop.permute.xlu0 %91
    %vm93 = vcmask 7168
    %s94 = scalar_lea.vmem %s1, 11
    %95 = vst.msk [vmem:[%s94] ss:$16 sm:$0x3] %vm93, %v92
    %s96 = scalar_lea.vmem %s1, 11
    %97 = vst.msk [vmem:[%s96] ss:$16 sm:$0xc] %vm93, %v92
    %v98 = vld [vmem:[#allocation0] sm:$0xf]
    %99 = vrot.lane.b32.xlu0 %v98, 116
    %v100 = vpop.permute.xlu0 %99
    %vm101 = vcmask 7168
    %s102 = scalar_lea.vmem %s1, 12
    %103 = vst.msk [vmem:[%s102] ss:$16 sm:$0x3] %vm101, %v100
    %s104 = scalar_lea.vmem %s1, 12
    %105 = vst.msk [vmem:[%s104] ss:$16 sm:$0xc] %vm101, %v100
    %v106 = vld [vmem:[#allocation0] sm:$0xf]
    %107 = vrot.lane.b32.xlu0 %v106, 115
    %v108 = vpop.permute.xlu0 %107
    %vm109 = vcmask 7168
    %s110 = scalar_lea.vmem %s1, 13
    %111 = vst.msk [vmem:[%s110] ss:$16 sm:$0x3] %vm109, %v108
    %s112 = scalar_lea.vmem %s1, 13
    %113 = vst.msk [vmem:[%s112] ss:$16 sm:$0xc] %vm109, %v108
    %v114 = vld [vmem:[#allocation0] sm:$0xf]
    %115 = vrot.lane.b32.xlu0 %v114, 114
    %v116 = vpop.permute.xlu0 %115
    %vm117 = vcmask 7168
    %s118 = scalar_lea.vmem %s1, 14
    %119 = vst.msk [vmem:[%s118] ss:$16 sm:$0x3] %vm117, %v116
    %s120 = scalar_lea.vmem %s1, 14
    %121 = vst.msk [vmem:[%s120] ss:$16 sm:$0xc] %vm117, %v116
    %v122 = vld [vmem:[#allocation0] sm:$0xf]
    %123 = vrot.lane.b32.xlu0 %v122, 113
    %v124 = vpop.permute.xlu0 %123
    %vm125 = vcmask 7168
    %s126 = scalar_lea.vmem %s1, 15
    %127 = vst.msk [vmem:[%s126] ss:$16 sm:$0x3] %vm125, %v124
    %s128 = scalar_lea.vmem %s1, 15
    %129 = vst.msk [vmem:[%s128] ss:$16 sm:$0xc] %vm125, %v124

// kernel: generator_forward.6
$region0: #{generator_forward.6}
  #allocation0 [shape = 'u32[]', space=smem, size = 0x4, offset = 0x4, fixed_abs, tag = 'smem constant byte address 0x4 - core index']
  #allocation1 [shape = 'u32[144,128]{1,0:T(1,128)}', space=vmem, size = 0x12000, scoped, tag = 'internal scratch']
  %s0 = inlined_call_operand.vmem [shape: bf16[2,128,289], index: 0, kind: input, shape index: {}]
  %s1 = inlined_call_operand.vmem [shape: bf16[64,128], index: 1, kind: input, shape index: {}]
  %s2 = inlined_call_operand.vmem [shape: f32[64,1], index: 2, kind: input, shape index: {}]
  %s3 = inlined_call_operand.vmem [shape: bf16[2,64,289], index: 3, kind: output, shape index: {}]
  %s4 = sld [smem:[#allocation0]]
  $region45: #{generator_forward.6} parent=0
    _
  %s6 = ssub.s32 1, %s4
  %s7 = scalar_select 0, %s6, %s4
  loop: start=0, step=1, limit=4
  $region2: #{generator_forward.6} parent=0 // loop_pre_header
    _
  $region3: #{generator_forward.6} parent=0 // loop_header
    %s9 = sphi 0, %s13
    %p10 = scmp.ge.s32.totalorder %s9, 4
    %s19 = sphi 0, %s21
    %s22 = sphi 0, %s19
    %s23 = sphi 0, %s22
    %s39 = sphi 0, %s23
    %s43 = sphi 0, %s43
    %s45 = sphi 0, %s43
    %s46 = sphi 0, %s45
    %s60 = sphi 0, %s46
    %s64 = sphi 0, %s64
    %s66 = sphi 0, %s64
    %s67 = sphi 0, %s66
    %s81 = sphi 0, %s67
    %s87 = sphi 0, %s89
    %s90 = sphi 0, %s87
    %s91 = sphi 0, %s90
    %s107 = sphi 0, %s91
  $region4: #{generator_forward.6} parent=0 // loop_header_branch
    %12 = sbr.rel (%p10) target = $region8
  $region5: #{generator_forward.6} parent=0 // loop_body
    %s14 = ssub.s32 %s9, 1
    %s15 = ssub.s32 %s9, 2
    %s16 = sadd.s32 %s9, 1
    %s17 = ssub.s32 %s9, %s16
    %p18 = scmp.eq.s32.totalorder %s17, 0
    %s20 = sadd.s32 %s19, 1
    %s21 = scalar_select %p18, %s19, %s20
    %p24 = pneg %p18
    %p25 = scmp.eq.s32.totalorder %s9, 1
    %p26 = por %p24, %p25
    %p27 = scmp.ne.s32.totalorder %s19, %s22
    %p28 = scmp.eq.s32.totalorder %s9, 0
    %p29 = por %p27, %p28
    %p30 = scmp.ne.s32.totalorder %s19, %s22
    %p31 = scmp.eq.s32.totalorder %s14, 1
    %p32 = por %p30, %p31
    %p33 = scmp.ne.s32.totalorder %s22, %s23
    %p34 = scmp.eq.s32.totalorder %s14, 0
    %p35 = por %p33, %p34
    %p36 = scmp.ne.s32.totalorder %s22, %s23
    %p37 = scmp.eq.s32.totalorder %s15, 1
    %p38 = por %p36, %p37
    %p40 = scmp.ne.s32.totalorder %s23, %s39
    %p41 = scmp.eq.s32.totalorder %s15, 0
    %p42 = por %p40, %p41
    %s44 = sadd.s32 %s43, 1
    %p47 = scmp.eq.s32.totalorder %s9, 1
    %p48 = scmp.ne.s32.totalorder %s43, %s45
    %p49 = scmp.eq.s32.totalorder %s9, 0
    %p50 = por %p48, %p49
    %p51 = scmp.ne.s32.totalorder %s43, %s45
    %p52 = scmp.eq.s32.totalorder %s14, 1
    %p53 = por %p51, %p52
    %p54 = scmp.ne.s32.totalorder %s45, %s46
    %p55 = scmp.eq.s32.totalorder %s14, 0
    %p56 = por %p54, %p55
    %p57 = scmp.ne.s32.totalorder %s45, %s46
    %p58 = scmp.eq.s32.totalorder %s15, 1
    %p59 = por %p57, %p58
    %p61 = scmp.ne.s32.totalorder %s46, %s60
    %p62 = scmp.eq.s32.totalorder %s15, 0
    %p63 = por %p61, %p62
    %s65 = sadd.s32 %s64, 1
    %p68 = scmp.eq.s32.totalorder %s9, 1
    %p69 = scmp.ne.s32.totalorder %s64, %s66
    %p70 = scmp.eq.s32.totalorder %s9, 0
    %p71 = por %p69, %p70
    %p72 = scmp.ne.s32.totalorder %s64, %s66
    %p73 = scmp.eq.s32.totalorder %s14, 1
    %p74 = por %p72, %p73
    %p75 = scmp.ne.s32.totalorder %s66, %s67
    %p76 = scmp.eq.s32.totalorder %s14, 0
    %p77 = por %p75, %p76
    %p78 = scmp.ne.s32.totalorder %s66, %s67
    %p79 = scmp.eq.s32.totalorder %s15, 1
    %p80 = por %p78, %p79
    %p82 = scmp.ne.s32.totalorder %s67, %s81
    %p83 = scmp.eq.s32.totalorder %s15, 0
    %p84 = por %p82, %p83
    %s85 = ssub.s32 %s9, %s16
    %p86 = scmp.eq.s32.totalorder %s85, 0
    %s88 = sadd.s32 %s87, 1
    %s89 = scalar_select %p86, %s87, %s88
    %p92 = pneg %p86
    %p93 = scmp.eq.s32.totalorder %s9, 1
    %p94 = por %p92, %p93
    %p95 = scmp.ne.s32.totalorder %s87, %s90
    %p96 = scmp.eq.s32.totalorder %s9, 0
    %p97 = por %p95, %p96
    %p98 = scmp.ne.s32.totalorder %s87, %s90
    %p99 = scmp.eq.s32.totalorder %s14, 1
    %p100 = por %p98, %p99
    %p101 = scmp.ne.s32.totalorder %s90, %s91
    %p102 = scmp.eq.s32.totalorder %s14, 0
    %p103 = por %p101, %p102
    %p104 = scmp.ne.s32.totalorder %s90, %s91
    %p105 = scmp.eq.s32.totalorder %s15, 1
    %p106 = por %p104, %p105
    %p108 = scmp.ne.s32.totalorder %s91, %s107
    %p109 = scmp.eq.s32.totalorder %s15, 0
    %p110 = por %p108, %p109
    %p111 = scmp.le.s32.totalorder 1, %s9
    %p112 = scmp.lt.s32.totalorder %s9, 3
    %p113 = pnand %p111, %p112
    %p114 = pneg %p113
    // Predicated region
    $region9: #{generator_forward.6} parent=5 // pred_check
      _
    $region10: #{generator_forward.6} parent=5 // pred_check_branch
      %116 = sbr.rel (%p113) target = $region12
    $region11: #{generator_forward.6} parent=5 // pred_region
      %s117 = ssub.s32 %s9, 1
      // Predicated region
      $region13: #{generator_forward.6} parent=11 // pred_check
        %p118 = pneg %p56
      $region14: #{generator_forward.6} parent=11 // pred_check_branch
        %120 = sbr.rel (%p118) target = $region16
      $region15: #{generator_forward.6} parent=11 // pred_region
        _
      $region16: #{generator_forward.6} parent=11 // pred_fallthru
        _
      // Predicated region
      $region17: #{generator_forward.6} parent=11 // pred_check
        %p121 = pneg %p77
      $region18: #{generator_forward.6} parent=11 // pred_check_branch
        %123 = sbr.rel (%p121) target = $region20
      $region19: #{generator_forward.6} parent=11 // pred_region
        _
      $region20: #{generator_forward.6} parent=11 // pred_fallthru
        _
    $region12: #{generator_forward.6} parent=5 // pred_fallthru
      _
    %p124 = scmp.lt.s32.totalorder %s9, 2
    // Predicated region
    $region21: #{generator_forward.6} parent=5 // pred_check
      %p125 = pneg %p124
    $region22: #{generator_forward.6} parent=5 // pred_check_branch
      %127 = sbr.rel (%p125) target = $region24
    $region23: #{generator_forward.6} parent=5 // pred_region
      // Predicated region
      $region25: #{generator_forward.6} parent=23 // pred_check
        %p128 = pneg %p29
      $region26: #{generator_forward.6} parent=23 // pred_check_branch
        %130 = sbr.rel (%p128) target = $region28
      $region27: #{generator_forward.6} parent=23 // pred_region
        %p131 = scmp.lt.s32.totalorder %s9, 1
        %s132 = scalar_select %p131, %s9, 1
        %s133 = smul.addr %s132, 48
        %s134 = smul.addr %s133, 4
        %s135 = scalar_lea.vmem %s0, %s134
      $region28: #{generator_forward.6} parent=23 // pred_fallthru
        _
    $region24: #{generator_forward.6} parent=5 // pred_fallthru
      _
    %p136 = scmp.le.s32.totalorder 1, %s9
    %p137 = scmp.lt.s32.totalorder %s9, 3
    %p138 = pnand %p136, %p137
    %p139 = pneg %p138
    // Predicated region
    $region29: #{generator_forward.6} parent=5 // pred_check
      _
    $region30: #{generator_forward.6} parent=5 // pred_check_branch
      %141 = sbr.rel (%p138) target = $region32
    $region31: #{generator_forward.6} parent=5 // pred_region
      %s142 = ssub.s32 %s9, 1
      %p143 = scmp.lt.s32.totalorder %s14, 1
      %s144 = scalar_select %p143, %s14, 1
      %s145 = smul.addr %s144, 48
      %s146 = smul.addr %s145, 4
      %s147 = scalar_lea.vmem %s0, %s146
      %p148 = pneg %p35
      %p149 = pneg %p32
      %p150 = pneg %p56
      %p151 = pneg %p53
      %p152 = pneg %p77
      %p153 = pneg %p74
      %p154 = pneg %p103
      %p155 = pneg %p100
      %p156 = scmp.lt.s32.totalorder %s14, 1
      %s157 = scalar_select %p156, %s14, 1
      %s158 = smul.addr %s157, 24
      %s159 = smul.addr %s158, 4
      %s160 = scalar_lea.vmem %s3, %s159
      %p161 = scmp.lt.s32.totalorder %s14, 1
      %s162 = scalar_select %p161, %s14, 1
      %s163 = smul.addr %s162, 48
      %s164 = smul.addr %s163, 4
      %s165 = scalar_lea.vmem %s0, %s164
      %p166 = scmp.lt.s32.totalorder %s14, 1
      %s167 = scalar_select %p166, %s14, 1
      %s168 = smul.addr %s167, 24
      %s169 = smul.addr %s168, 4
      %s170 = scalar_lea.vmem %s3, %s169
      %v172 = vld [vmem:[%s1] sm:$0xf]
      %v173 = vld [vmem:[%s1 + $0x4] sm:$0xf]
      %v174 = vld [vmem:[%s1 + $0x8] sm:$0xf]
      %v175 = vld [vmem:[%s1 + $0xc] sm:$0xf]
      %v176 = vld [vmem:[%s1 + $0x10] sm:$0xf]
      %v177 = vld [vmem:[%s1 + $0x14] sm:$0xf]
      %v178 = vld [vmem:[%s1 + $0x18] sm:$0xf]
      %v179 = vld [vmem:[%s1 + $0x1c] sm:$0xf]
      %v180 = vld [vmem:[%s165] sm:$0xff]
      %v181 = vld [vmem:[%s165 + $0x8] sm:$0xf]
      %v182 = vld [vmem:[%s165 + $0xc] sm:$0xff]
      %v183 = vld [vmem:[%s165 + $0x14] sm:$0xf]
      %v184 = vld [vmem:[%s165 + $0x18] sm:$0xff]
      %v185 = vld [vmem:[%s165 + $0x20] sm:$0xf]
      %v186 = vld [vmem:[%s165 + $0x24] sm:$0xff]
      %v187 = vld [vmem:[%s165 + $0x2c] sm:$0xf]
      %v188 = vld [vmem:[%s165 + $0x30] sm:$0xff]
      %v189 = vld [vmem:[%s165 + $0x38] sm:$0xf]
      %v190 = vld [vmem:[%s165 + $0x3c] sm:$0xff]
      %v191 = vld [vmem:[%s165 + $0x44] sm:$0xf]
      %v192 = vld [vmem:[%s165 + $0x48] sm:$0xff]
      %v193 = vld [vmem:[%s165 + $0x50] sm:$0xf]
      %v194 = vld [vmem:[%s165 + $0x54] sm:$0xff]
      %v195 = vld [vmem:[%s165 + $0x5c] sm:$0xf]
      %v196 = vld [vmem:[%s165 + $0x60] sm:$0xff]
      %v197 = vld [vmem:[%s165 + $0x68] sm:$0xf]
      %v198 = vld [vmem:[%s165 + $0x6c] sm:$0xff]
      %v199 = vld [vmem:[%s165 + $0x74] sm:$0xf]
      %v200 = vld [vmem:[%s165 + $0x78] sm:$0xff]
      %v201 = vld [vmem:[%s165 + $0x80] sm:$0xf]
      %v202 = vld [vmem:[%s165 + $0x84] sm:$0xff]
      %v203 = vld [vmem:[%s165 + $0x8c] sm:$0xf]
      %v204 = vld [vmem:[%s165 + $0x90] sm:$0xff]
      %v205 = vld [vmem:[%s165 + $0x98] sm:$0xf]
      %v206 = vld [vmem:[%s165 + $0x9c] sm:$0xff]
      %v207 = vld [vmem:[%s165 + $0xa4] sm:$0xf]
      %v208 = vld [vmem:[%s165 + $0xa8] sm:$0xff]
      %v209 = vld [vmem:[%s165 + $0xb0] sm:$0xf]
      %v210 = vld [vmem:[%s165 + $0xb4] sm:$0xff]
      %v211 = vld [vmem:[%s165 + $0xbc] sm:$0xf]
      %v212 = vld [vmem:[%s2] sm:$0xff]
      %v213 = vld [vmem:[%s2 + $0x8] sm:$0xff]
      %v214 = vld [vmem:[%s2 + $0x10] sm:$0xff]
      %v215 = vld [vmem:[%s2 + $0x18] sm:$0xff]
      %v216 = vld [vmem:[%s2 + $0x20] sm:$0xff]
      %v217 = vld [vmem:[%s2 + $0x28] sm:$0xff]
      %v218 = vld [vmem:[%s2 + $0x30] sm:$0xff]
      %v219 = vld [vmem:[%s2 + $0x38] sm:$0xff]
      %221 = vset.pattern.permute.xlu0 0
      %222 = vperm.xlu0 %221, %v212
      %v223 = vpop.permute.xlu0 %222
      %226 = vset.pattern.permute.xlu0 0
      %227 = vperm.xlu0 %226, %v213
      %v228 = vpop.permute.xlu0 %227
      %231 = vset.pattern.permute.xlu0 0
      %232 = vperm.xlu0 %231, %v214
      %v233 = vpop.permute.xlu0 %232
      %236 = vset.pattern.permute.xlu0 0
      %237 = vperm.xlu0 %236, %v215
      %v238 = vpop.permute.xlu0 %237
      %241 = vset.pattern.permute.xlu0 0
      %242 = vperm.xlu0 %241, %v216
      %v243 = vpop.permute.xlu0 %242
      %246 = vset.pattern.permute.xlu0 0
      %247 = vperm.xlu0 %246, %v217
      %v248 = vpop.permute.xlu0 %247
      %251 = vset.pattern.permute.xlu0 0
      %252 = vperm.xlu0 %251, %v218
      %v253 = vpop.permute.xlu0 %252
      %256 = vset.pattern.permute.xlu0 0
      %257 = vperm.xlu0 %256, %v219
      %v258 = vpop.permute.xlu0 %257
      %v268 = vunpack.c.l.b16 %v172
      %v269 = vunpack.c.l.b16 %v173
      %v270 = vunpack.c.l.b16 %v174
      %v271 = vunpack.c.l.b16 %v175
      %v272 = vunpack.c.l.b16 %v176
      %v273 = vunpack.c.l.b16 %v177
      %v274 = vunpack.c.l.b16 %v178
      %v275 = vunpack.c.l.b16 %v179
      %v276 = vpack.c.b16 %v269, %v268
      %v277 = vpack.c.b16 %v271, %v270
      %v278 = vpack.c.b16 %v273, %v272
      %v279 = vpack.c.b16 %v275, %v274
      %v316 = vunpack.c.l.b16 %v180
      %v317 = vunpack.c.h.b16 %v180
      %v318 = vunpack.c.l.b16 %v181
      %v319 = vunpack.c.l.b16 %v182
      %v320 = vunpack.c.h.b16 %v182
      %v321 = vunpack.c.l.b16 %v183
      %v322 = vunpack.c.l.b16 %v184
      %v323 = vunpack.c.h.b16 %v184
      %v324 = vunpack.c.l.b16 %v185
      %v325 = vunpack.c.l.b16 %v186
      %v326 = vunpack.c.h.b16 %v186
      %v327 = vunpack.c.l.b16 %v187
      %v328 = vunpack.c.l.b16 %v188
      %v329 = vunpack.c.h.b16 %v188
      %v330 = vunpack.c.l.b16 %v189
      %v331 = vunpack.c.l.b16 %v190
      %v332 = vunpack.c.h.b16 %v190
      %v333 = vunpack.c.l.b16 %v191
      %v334 = vunpack.c.l.b16 %v192
      %v335 = vunpack.c.h.b16 %v192
      %v336 = vunpack.c.l.b16 %v193
      %v337 = vunpack.c.l.b16 %v194
      %v338 = vunpack.c.h.b16 %v194
      %v339 = vunpack.c.l.b16 %v195
      %v340 = vunpack.c.l.b16 %v196
      %v341 = vunpack.c.h.b16 %v196
      %v342 = vunpack.c.l.b16 %v197
      %v343 = vunpack.c.l.b16 %v198
      %v344 = vunpack.c.h.b16 %v198
      %v345 = vunpack.c.l.b16 %v199
      %v346 = vunpack.c.l.b16 %v200
      %v347 = vunpack.c.h.b16 %v200
      %v348 = vunpack.c.l.b16 %v201
      %v349 = vunpack.c.l.b16 %v202
      %v350 = vunpack.c.h.b16 %v202
      %v351 = vunpack.c.l.b16 %v203
      %v352 = vunpack.c.l.b16 %v204
      %v353 = vunpack.c.h.b16 %v204
      %v354 = vunpack.c.l.b16 %v205
      %v355 = vunpack.c.l.b16 %v206
      %v356 = vunpack.c.h.b16 %v206
      %v357 = vunpack.c.l.b16 %v207
      %v358 = vunpack.c.l.b16 %v208
      %v359 = vunpack.c.h.b16 %v208
      %v360 = vunpack.c.l.b16 %v209
      %v361 = vunpack.c.l.b16 %v210
      %v362 = vunpack.c.h.b16 %v210
      %v363 = vunpack.c.l.b16 %v211
      %v364 = vpack.c.b16 %v319, %v316
      %v365 = vpack.c.b16 %v320, %v317
      %v366 = vpack.c.b16 %v321, %v318
      %v367 = vpack.c.b16 %v325, %v322
      %v368 = vpack.c.b16 %v326, %v323
      %v369 = vpack.c.b16 %v327, %v324
      %v370 = vpack.c.b16 %v331, %v328
      %v371 = vpack.c.b16 %v332, %v329
      %v372 = vpack.c.b16 %v333, %v330
      %v373 = vpack.c.b16 %v337, %v334
      %v374 = vpack.c.b16 %v338, %v335
      %v375 = vpack.c.b16 %v339, %v336
      %v376 = vpack.c.b16 %v343, %v340
      %v377 = vpack.c.b16 %v344, %v341
      %v378 = vpack.c.b16 %v345, %v342
      %v379 = vpack.c.b16 %v349, %v346
      %v380 = vpack.c.b16 %v350, %v347
      %v381 = vpack.c.b16 %v351, %v348
      %v382 = vpack.c.b16 %v355, %v352
      %v383 = vpack.c.b16 %v356, %v353
      %v384 = vpack.c.b16 %v357, %v354
      %v385 = vpack.c.b16 %v361, %v358
      %v386 = vpack.c.b16 %v362, %v359
      %v387 = vpack.c.b16 %v363, %v360
      %412 = vmatprep.subr.bf16.mxu0 %v365
      %413 = vmatpush1.bf16.msra.mxu0 %v364
      %414 = vmatprep.subr.bf16.mxu0 %v368
      %415 = vmatpush1.bf16.msra.mxu0 %v367
      %416 = vmatprep.subr.bf16.mxu0 %v371
      %417 = vmatpush1.bf16.msra.mxu0 %v370
      %418 = vmatprep.subr.bf16.mxu0 %v374
      %419 = vmatpush1.bf16.msra.mxu0 %v373
      %420 = vmatprep.subr.bf16.mxu0 %v377
      %421 = vmatpush1.bf16.msra.mxu0 %v376
      %422 = vmatprep.subr.bf16.mxu0 %v380
      %423 = vmatpush1.bf16.msra.mxu0 %v379
      %424 = vmatprep.subr.bf16.mxu0 %v383
      %425 = vmatpush1.bf16.msra.mxu0 %v382
      %426 = vmatprep.subr.bf16.mxu0 %v386
      %427 = vmatpush1.bf16.msra.mxu0 %v385
      %428 = vmatprep.subr.bf16.mxu0 0
      %429 = vmatpush1.bf16.msra.mxu0 0
      %430 = vmatprep.subr.bf16.mxu0 0
      %431 = vmatpush1.bf16.msra.mxu0 0
      %432 = vmatprep.subr.bf16.mxu0 0
      %433 = vmatpush1.bf16.msra.mxu0 0
      %434 = vmatprep.subr.bf16.mxu0 0
      %435 = vmatpush1.bf16.msra.mxu0 0
      %436 = vmatprep.subr.bf16.mxu0 0
      %437 = vmatpush1.bf16.msra.mxu0 0
      %438 = vmatprep.subr.bf16.mxu0 0
      %439 = vmatpush1.bf16.msra.mxu0 0
      %440 = vmatprep.subr.bf16.mxu0 0
      %441 = vmatpush1.bf16.msra.mxu0 0
      %442 = vmatprep.subr.bf16.mxu0 0
      %443 = vmatpush1.bf16.msra.mxu0 0
      %444 = vmatprep.mubr.bf16.mxu0 0
      %445 = vmatmul.mubr.bf16.gmra.mrb[0].mxu0 %v276
      %v446 = vpop.f32.mrb[0].mxu0
      %v447 = vadd.f32 %v223, %v446
      %v448 = vpop.f32.mrb[0].mxu0
      %v449 = vadd.f32 %v223, %v448
      %v450 = vpop.f32.mrb[0].mxu0
      %v451 = vadd.f32 %v228, %v450
      %v452 = vpop.f32.mrb[0].mxu0
      %v453 = vadd.f32 %v228, %v452
      %454 = vmatprep.mubr.bf16.mxu0 0
      %455 = vmatmul.mubr.bf16.gmra.mrb[0].mxu0 %v277
      %v456 = vpop.f32.mrb[0].mxu0
      %v457 = vadd.f32 %v233, %v456
      %v458 = vpop.f32.mrb[0].mxu0
      %v459 = vadd.f32 %v233, %v458
      %v460 = vpop.f32.mrb[0].mxu0
      %v461 = vadd.f32 %v238, %v460
      %v462 = vpop.f32.mrb[0].mxu0
      %v463 = vadd.f32 %v238, %v462
      %464 = vmatprep.mubr.bf16.mxu0 0
      %465 = vmatmul.mubr.bf16.gmra.mrb[0].mxu0 %v278
      %v466 = vpop.f32.mrb[0].mxu0
      %v467 = vadd.f32 %v243, %v466
      %v468 = vpop.f32.mrb[0].mxu0
      %v469 = vadd.f32 %v243, %v468
      %v470 = vpop.f32.mrb[0].mxu0
      %v471 = vadd.f32 %v248, %v470
      %v472 = vpop.f32.mrb[0].mxu0
      %v473 = vadd.f32 %v248, %v472
      %474 = vmatprep.mubr.bf16.mxu0 0
      %475 = vmatmul.mubr.bf16.gmra.mrb[0].mxu0 %v279
      %v476 = vpop.f32.mrb[0].mxu0
      %v477 = vadd.f32 %v253, %v476
      %v478 = vpop.f32.mrb[0].mxu0
      %v479 = vadd.f32 %v253, %v478
      %v480 = vpop.f32.mrb[0].mxu0
      %v481 = vadd.f32 %v258, %v480
      %v482 = vpop.f32.mrb[0].mxu0
      %v483 = vadd.f32 %v258, %v482
      %484 = vdwg.mxu0
      %485 = vmatprep.subr.bf16.mxu0 0
      %486 = vmatpush1.bf16.msra.mxu0 %v366
      %487 = vmatprep.subr.bf16.mxu0 0
      %488 = vmatpush1.bf16.msra.mxu0 %v369
      %489 = vmatprep.subr.bf16.mxu0 0
      %490 = vmatpush1.bf16.msra.mxu0 %v372
      %491 = vmatprep.subr.bf16.mxu0 0
      %492 = vmatpush1.bf16.msra.mxu0 %v375
      %493 = vmatprep.subr.bf16.mxu0 0
      %494 = vmatpush1.bf16.msra.mxu0 %v378
      %495 = vmatprep.subr.bf16.mxu0 0
      %496 = vmatpush1.bf16.msra.mxu0 %v381
      %497 = vmatprep.subr.bf16.mxu0 0
      %498 = vmatpush1.bf16.msra.mxu0 %v384
      %499 = vmatprep.subr.bf16.mxu0 0
      %500 = vmatpush1.bf16.msra.mxu0 %v387
      %501 = vmatprep.subr.bf16.mxu0 0
      %502 = vmatpush1.bf16.msra.mxu0 0
      %503 = vmatprep.subr.bf16.mxu0 0
      %504 = vmatpush1.bf16.msra.mxu0 0
      %505 = vmatprep.subr.bf16.mxu0 0
      %506 = vmatpush1.bf16.msra.mxu0 0
      %507 = vmatprep.subr.bf16.mxu0 0
      %508 = vmatpush1.bf16.msra.mxu0 0
      %509 = vmatprep.subr.bf16.mxu0 0
      %510 = vmatpush1.bf16.msra.mxu0 0
      %511 = vmatprep.subr.bf16.mxu0 0
      %512 = vmatpush1.bf16.msra.mxu0 0
      %513 = vmatprep.subr.bf16.mxu0 0
      %514 = vmatpush1.bf16.msra.mxu0 0
      %515 = vmatprep.subr.bf16.mxu0 0
      %516 = vmatpush1.bf16.msra.mxu0 0
      %517 = vmatprep.mubr.bf16.mxu0 0
      %518 = vmatmul.mubr.bf16.gmra.mrb[0].mxu0 %v276
      %v519 = vpop.f32.mrb[0].mxu0
      %v520 = vadd.f32 %v223, %v519
      %v521 = vpop.f32.mrb[0].mxu0
      %v522 = vpop.f32.mrb[0].mxu0
      %v523 = vadd.f32 %v228, %v522
      %v524 = vpop.f32.mrb[0].mxu0
      %525 = vmatprep.mubr.bf16.mxu0 0
      %526 = vmatmul.mubr.bf16.gmra.mrb[0].mxu0 %v277
      %v527 = vpop.f32.mrb[0].mxu0
      %v528 = vadd.f32 %v233, %v527
      %v529 = vpop.f32.mrb[0].mxu0
      %v530 = vpop.f32.mrb[0].mxu0
      %v531 = vadd.f32 %v238, %v530
      %v532 = vpop.f32.mrb[0].mxu0
      %533 = vmatprep.mubr.bf16.mxu0 0
      %534 = vmatmul.mubr.bf16.gmra.mrb[0].mxu0 %v278
      %v535 = vpop.f32.mrb[0].mxu0
      %v536 = vadd.f32 %v243, %v535
      %v537 = vpop.f32.mrb[0].mxu0
      %v538 = vpop.f32.mrb[0].mxu0
      %v539 = vadd.f32 %v248, %v538
      %v540 = vpop.f32.mrb[0].mxu0
      %541 = vmatprep.mubr.bf16.mxu0 0
      %542 = vmatmul.mubr.bf16.gmra.mrb[0].mxu0 %v279
      %v543 = vpop.f32.mrb[0].mxu0
      %v544 = vadd.f32 %v253, %v543
      %v545 = vpop.f32.mrb[0].mxu0
      %v546 = vpop.f32.mrb[0].mxu0
      %v547 = vadd.f32 %v258, %v546
      %v548 = vpop.f32.mrb[0].mxu0
      %549 = vdwg.mxu0
      %v550 = vmax.f32 %v447, 0.0
      %v551 = vmax.f32 %v449, 0.0
      %v552 = vmax.f32 %v520, 0.0
      %v553 = vmax.f32 %v451, 0.0
      %v554 = vmax.f32 %v453, 0.0
      %v555 = vmax.f32 %v523, 0.0
      %v556 = vmax.f32 %v457, 0.0
      %v557 = vmax.f32 %v459, 0.0
      %v558 = vmax.f32 %v528, 0.0
      %v559 = vmax.f32 %v461, 0.0
      %v560 = vmax.f32 %v463, 0.0
      %v561 = vmax.f32 %v531, 0.0
      %v562 = vmax.f32 %v467, 0.0
      %v563 = vmax.f32 %v469, 0.0
      %v564 = vmax.f32 %v536, 0.0
      %v565 = vmax.f32 %v471, 0.0
      %v566 = vmax.f32 %v473, 0.0
      %v567 = vmax.f32 %v539, 0.0
      %v568 = vmax.f32 %v477, 0.0
      %v569 = vmax.f32 %v479, 0.0
      %v570 = vmax.f32 %v544, 0.0
      %v571 = vmax.f32 %v481, 0.0
      %v572 = vmax.f32 %v483, 0.0
      %v573 = vmax.f32 %v547, 0.0
      %v574 = vpack.c.bf16 %v553, %v550
      %v575 = vpack.c.bf16 %v554, %v551
      %v576 = vpack.c.bf16 %v555, %v552
      %v577 = vpack.c.bf16 %v559, %v556
      %v578 = vpack.c.bf16 %v560, %v557
      %v579 = vpack.c.bf16 %v561, %v558
      %v580 = vpack.c.bf16 %v565, %v562
      %v581 = vpack.c.bf16 %v566, %v563
      %v582 = vpack.c.bf16 %v567, %v564
      %v583 = vpack.c.bf16 %v571, %v568
      %v584 = vpack.c.bf16 %v572, %v569
      %v585 = vpack.c.bf16 %v573, %v570
      %v598 = vunpack.c.l.b16 %v574
      %v599 = vunpack.c.l.b16 %v575
      %v600 = vunpack.c.l.b16 %v576
      %v601 = vunpack.c.h.b16 %v574
      %v602 = vunpack.c.h.b16 %v575
      %v603 = vunpack.c.h.b16 %v576
      %v604 = vunpack.c.l.b16 %v577
      %v605 = vunpack.c.l.b16 %v578
      %v606 = vunpack.c.l.b16 %v579
      %v607 = vunpack.c.h.b16 %v577
      %v608 = vunpack.c.h.b16 %v578
      %v609 = vunpack.c.h.b16 %v579
      %v610 = vunpack.c.l.b16 %v580
      %v611 = vunpack.c.l.b16 %v581
      %v612 = vunpack.c.l.b16 %v582
      %v613 = vunpack.c.h.b16 %v580
      %v614 = vunpack.c.h.b16 %v581
      %v615 = vunpack.c.h.b16 %v582
      %v616 = vunpack.c.l.b16 %v583
      %v617 = vunpack.c.l.b16 %v584
      %v618 = vunpack.c.l.b16 %v585
      %v619 = vunpack.c.h.b16 %v583
      %v620 = vunpack.c.h.b16 %v584
      %v621 = vunpack.c.h.b16 %v585
      %v622 = vpack.c.b16 %v599, %v598
      %v623 = vpack.c.b16 %v600, %v600
      %v624 = vpack.c.b16 %v602, %v601
      %v625 = vpack.c.b16 %v603, %v603
      %v626 = vpack.c.b16 %v605, %v604
      %v627 = vpack.c.b16 %v606, %v606
      %v628 = vpack.c.b16 %v608, %v607
      %v629 = vpack.c.b16 %v609, %v609
      %v630 = vpack.c.b16 %v611, %v610
      %v631 = vpack.c.b16 %v612, %v612
      %v632 = vpack.c.b16 %v614, %v613
      %v633 = vpack.c.b16 %v615, %v615
      %v634 = vpack.c.b16 %v617, %v616
      %v635 = vpack.c.b16 %v618, %v618
      %v636 = vpack.c.b16 %v620, %v619
      %v637 = vpack.c.b16 %v621, %v621
      %654 = vst [vmem:[%s170] sm:$0xff] %v622
      %vm655 = vcmask 265216
      %656 = vst.msk [vmem:[%s170 + $0x8] sm:$0xf] %vm655, %v623
      %657 = vst [vmem:[%s170 + $0xc] sm:$0xff] %v624
      %658 = vst.msk [vmem:[%s170 + $0x14] sm:$0xf] %vm655, %v625
      %659 = vst [vmem:[%s170 + $0x18] sm:$0xff] %v626
      %660 = vst.msk [vmem:[%s170 + $0x20] sm:$0xf] %vm655, %v627
      %661 = vst [vmem:[%s170 + $0x24] sm:$0xff] %v628
      %662 = vst.msk [vmem:[%s170 + $0x2c] sm:$0xf] %vm655, %v629
      %663 = vst [vmem:[%s170 + $0x30] sm:$0xff] %v630
      %664 = vst.msk [vmem:[%s170 + $0x38] sm:$0xf] %vm655, %v631
      %665 = vst [vmem:[%s170 + $0x3c] sm:$0xff] %v632
      %666 = vst.msk [vmem:[%s170 + $0x44] sm:$0xf] %vm655, %v633
      %667 = vst [vmem:[%s170 + $0x48] sm:$0xff] %v634
      %668 = vst.msk [vmem:[%s170 + $0x50] sm:$0xf] %vm655, %v635
      %669 = vst [vmem:[%s170 + $0x54] sm:$0xff] %v636
      %670 = vst.msk [vmem:[%s170 + $0x5c] sm:$0xf] %vm655, %v637
      %p671 = scmp.lt.s32.totalorder %s14, 1
      %s672 = scalar_select %p671, %s14, 1
      %s673 = smul.addr %s672, 24
      %s674 = smul.addr %s673, 4
      %s675 = scalar_lea.vmem %s3, %s674
      // Predicated region
      $region33: #{generator_forward.6} parent=31 // pred_check
        %p676 = pneg %p100
      $region34: #{generator_forward.6} parent=31 // pred_check_branch
        %678 = sbr.rel (%p676) target = $region36
      $region35: #{generator_forward.6} parent=31 // pred_region
        _
      $region36: #{generator_forward.6} parent=31 // pred_fallthru
        _
    $region32: #{generator_forward.6} parent=5 // pred_fallthru
      _
    %p679 = scmp.le.s32.totalorder 2, %s9
    // Predicated region
    $region37: #{generator_forward.6} parent=5 // pred_check
      %p680 = pneg %p679
    $region38: #{generator_forward.6} parent=5 // pred_check_branch
      %682 = sbr.rel (%p680) target = $region40
    $region39: #{generator_forward.6} parent=5 // pred_region
      %s683 = ssub.s32 %s9, 2
      // Predicated region
      $region41: #{generator_forward.6} parent=39 // pred_check
        %p684 = pneg %p106
      $region42: #{generator_forward.6} parent=39 // pred_check_branch
        %686 = sbr.rel (%p684) target = $region44
      $region43: #{generator_forward.6} parent=39 // pred_region
        %p687 = scmp.lt.s32.totalorder %s15, 1
        %s688 = scalar_select %p687, %s15, 1
        %s689 = smul.addr %s688, 24
        %s690 = smul.addr %s689, 4
        %s691 = scalar_lea.vmem %s3, %s690
      $region44: #{generator_forward.6} parent=39 // pred_fallthru
        _
    $region40: #{generator_forward.6} parent=5 // pred_fallthru
      _
  $region6: #{generator_forward.6} parent=0 // loop_footer
    %s13 = sadd.s32 1, %s9
  $region7: #{generator_forward.6} parent=0 // loop_footer_branch
    %8 = sbr.rel target = $region3
  $region8: #{generator_forward.6} parent=0 // loop_exit
    _

// kernel: tile.27
$region0: #{tile.27}
  #allocation0 [shape = 's32[1]{0}', space=sflag, size = 0x4, scoped, tag = 'scoped memory for tile.27']
  %s0 = inlined_call_operand.<no memory space> [shape: f32[], index: 0, kind: input, shape index: {}]
  %s1 = inlined_call_operand.vmem [shape: f32[4,1], index: 1, kind: output, shape index: {}]
  %v2 = vstv %s0
  %3 = vst [vmem:[%s1] sm:$0xf] %v2

// kernel: generator_forward.7
$region0: #{generator_forward.7}
  #allocation0 [shape = 'u32[]', space=smem, size = 0x4, offset = 0x4, fixed_abs, tag = 'smem constant byte address 0x4 - core index']
  #allocation1 [shape = 'u32[144,128]{1,0:T(1,128)}', space=vmem, size = 0x12000, scoped, tag = 'internal scratch']
  %s0 = inlined_call_operand.vmem [shape: bf16[2,64,1225], index: 0, kind: input, shape index: {}]
  %s1 = inlined_call_operand.vmem [shape: bf16[4,64], index: 1, kind: input, shape index: {}]
  %s2 = inlined_call_operand.vmem [shape: f32[4,1], index: 2, kind: input, shape index: {}]
  %s3 = inlined_call_operand.vmem [shape: f32[2,4,1225], index: 3, kind: output, shape index: {}]
  %s4 = sld [smem:[#allocation0]]
  $region45: #{generator_forward.7} parent=0
    _
  %s6 = ssub.s32 1, %s4
  %s7 = scalar_select 0, %s6, %s4
  loop: start=0, step=1, limit=4
  $region2: #{generator_forward.7} parent=0 // loop_pre_header
    _
  $region3: #{generator_forward.7} parent=0 // loop_header
    %s9 = sphi 0, %s13
    %p10 = scmp.ge.s32.totalorder %s9, 4
    %s19 = sphi 0, %s21
    %s22 = sphi 0, %s19
    %s23 = sphi 0, %s22
    %s39 = sphi 0, %s23
    %s43 = sphi 0, %s43
    %s45 = sphi 0, %s43
    %s46 = sphi 0, %s45
    %s60 = sphi 0, %s46
    %s64 = sphi 0, %s64
    %s66 = sphi 0, %s64
    %s67 = sphi 0, %s66
    %s81 = sphi 0, %s67
    %s87 = sphi 0, %s89
    %s90 = sphi 0, %s87
    %s91 = sphi 0, %s90
    %s107 = sphi 0, %s91
  $region4: #{generator_forward.7} parent=0 // loop_header_branch
    %12 = sbr.rel (%p10) target = $region8
  $region5: #{generator_forward.7} parent=0 // loop_body
    %s14 = ssub.s32 %s9, 1
    %s15 = ssub.s32 %s9, 2
    %s16 = sadd.s32 %s9, 1
    %s17 = ssub.s32 %s9, %s16
    %p18 = scmp.eq.s32.totalorder %s17, 0
    %s20 = sadd.s32 %s19, 1
    %s21 = scalar_select %p18, %s19, %s20
    %p24 = pneg %p18
    %p25 = scmp.eq.s32.totalorder %s9, 1
    %p26 = por %p24, %p25
    %p27 = scmp.ne.s32.totalorder %s19, %s22
    %p28 = scmp.eq.s32.totalorder %s9, 0
    %p29 = por %p27, %p28
    %p30 = scmp.ne.s32.totalorder %s19, %s22
    %p31 = scmp.eq.s32.totalorder %s14, 1
    %p32 = por %p30, %p31
    %p33 = scmp.ne.s32.totalorder %s22, %s23
    %p34 = scmp.eq.s32.totalorder %s14, 0
    %p35 = por %p33, %p34
    %p36 = scmp.ne.s32.totalorder %s22, %s23
    %p37 = scmp.eq.s32.totalorder %s15, 1
    %p38 = por %p36, %p37
    %p40 = scmp.ne.s32.totalorder %s23, %s39
    %p41 = scmp.eq.s32.totalorder %s15, 0
    %p42 = por %p40, %p41
    %s44 = sadd.s32 %s43, 1
    %p47 = scmp.eq.s32.totalorder %s9, 1
    %p48 = scmp.ne.s32.totalorder %s43, %s45
    %p49 = scmp.eq.s32.totalorder %s9, 0
    %p50 = por %p48, %p49
    %p51 = scmp.ne.s32.totalorder %s43, %s45
    %p52 = scmp.eq.s32.totalorder %s14, 1
    %p53 = por %p51, %p52
    %p54 = scmp.ne.s32.totalorder %s45, %s46
    %p55 = scmp.eq.s32.totalorder %s14, 0
    %p56 = por %p54, %p55
    %p57 = scmp.ne.s32.totalorder %s45, %s46
    %p58 = scmp.eq.s32.totalorder %s15, 1
    %p59 = por %p57, %p58
    %p61 = scmp.ne.s32.totalorder %s46, %s60
    %p62 = scmp.eq.s32.totalorder %s15, 0
    %p63 = por %p61, %p62
    %s65 = sadd.s32 %s64, 1
    %p68 = scmp.eq.s32.totalorder %s9, 1
    %p69 = scmp.ne.s32.totalorder %s64, %s66
    %p70 = scmp.eq.s32.totalorder %s9, 0
    %p71 = por %p69, %p70
    %p72 = scmp.ne.s32.totalorder %s64, %s66
    %p73 = scmp.eq.s32.totalorder %s14, 1
    %p74 = por %p72, %p73
    %p75 = scmp.ne.s32.totalorder %s66, %s67
    %p76 = scmp.eq.s32.totalorder %s14, 0
    %p77 = por %p75, %p76
    %p78 = scmp.ne.s32.totalorder %s66, %s67
    %p79 = scmp.eq.s32.totalorder %s15, 1
    %p80 = por %p78, %p79
    %p82 = scmp.ne.s32.totalorder %s67, %s81
    %p83 = scmp.eq.s32.totalorder %s15, 0
    %p84 = por %p82, %p83
    %s85 = ssub.s32 %s9, %s16
    %p86 = scmp.eq.s32.totalorder %s85, 0
    %s88 = sadd.s32 %s87, 1
    %s89 = scalar_select %p86, %s87, %s88
    %p92 = pneg %p86
    %p93 = scmp.eq.s32.totalorder %s9, 1
    %p94 = por %p92, %p93
    %p95 = scmp.ne.s32.totalorder %s87, %s90
    %p96 = scmp.eq.s32.totalorder %s9, 0
    %p97 = por %p95, %p96
    %p98 = scmp.ne.s32.totalorder %s87, %s90
    %p99 = scmp.eq.s32.totalorder %s14, 1
    %p100 = por %p98, %p99
    %p101 = scmp.ne.s32.totalorder %s90, %s91
    %p102 = scmp.eq.s32.totalorder %s14, 0
    %p103 = por %p101, %p102
    %p104 = scmp.ne.s32.totalorder %s90, %s91
    %p105 = scmp.eq.s32.totalorder %s15, 1
    %p106 = por %p104, %p105
    %p108 = scmp.ne.s32.totalorder %s91, %s107
    %p109 = scmp.eq.s32.totalorder %s15, 0
    %p110 = por %p108, %p109
    %p111 = scmp.le.s32.totalorder 1, %s9
    %p112 = scmp.lt.s32.totalorder %s9, 3
    %p113 = pnand %p111, %p112
    %p114 = pneg %p113
    // Predicated region
    $region9: #{generator_forward.7} parent=5 // pred_check
      _
    $region10: #{generator_forward.7} parent=5 // pred_check_branch
      %116 = sbr.rel (%p113) target = $region12
    $region11: #{generator_forward.7} parent=5 // pred_region
      %s117 = ssub.s32 %s9, 1
      // Predicated region
      $region13: #{generator_forward.7} parent=11 // pred_check
        %p118 = pneg %p56
      $region14: #{generator_forward.7} parent=11 // pred_check_branch
        %120 = sbr.rel (%p118) target = $region16
      $region15: #{generator_forward.7} parent=11 // pred_region
        _
      $region16: #{generator_forward.7} parent=11 // pred_fallthru
        _
      // Predicated region
      $region17: #{generator_forward.7} parent=11 // pred_check
        %p121 = pneg %p77
      $region18: #{generator_forward.7} parent=11 // pred_check_branch
        %123 = sbr.rel (%p121) target = $region20
      $region19: #{generator_forward.7} parent=11 // pred_region
        _
      $region20: #{generator_forward.7} parent=11 // pred_fallthru
        _
    $region12: #{generator_forward.7} parent=5 // pred_fallthru
      _
    %p124 = scmp.lt.s32.totalorder %s9, 2
    // Predicated region
    $region21: #{generator_forward.7} parent=5 // pred_check
      %p125 = pneg %p124
    $region22: #{generator_forward.7} parent=5 // pred_check_branch
      %127 = sbr.rel (%p125) target = $region24
    $region23: #{generator_forward.7} parent=5 // pred_region
      // Predicated region
      $region25: #{generator_forward.7} parent=23 // pred_check
        %p128 = pneg %p29
      $region26: #{generator_forward.7} parent=23 // pred_check_branch
        %130 = sbr.rel (%p128) target = $region28
      $region27: #{generator_forward.7} parent=23 // pred_region
        %p131 = scmp.lt.s32.totalorder %s9, 1
        %s132 = scalar_select %p131, %s9, 1
        %s133 = smul.addr %s132, 80
        %s134 = smul.addr %s133, 4
        %s135 = scalar_lea.vmem %s0, %s134
      $region28: #{generator_forward.7} parent=23 // pred_fallthru
        _
    $region24: #{generator_forward.7} parent=5 // pred_fallthru
      _
    %p136 = scmp.le.s32.totalorder 1, %s9
    %p137 = scmp.lt.s32.totalorder %s9, 3
    %p138 = pnand %p136, %p137
    %p139 = pneg %p138
    // Predicated region
    $region29: #{generator_forward.7} parent=5 // pred_check
      _
    $region30: #{generator_forward.7} parent=5 // pred_check_branch
      %141 = sbr.rel (%p138) target = $region32
    $region31: #{generator_forward.7} parent=5 // pred_region
      %s142 = ssub.s32 %s9, 1
      %p143 = scmp.lt.s32.totalorder %s14, 1
      %s144 = scalar_select %p143, %s14, 1
      %s145 = smul.addr %s144, 80
      %s146 = smul.addr %s145, 4
      %s147 = scalar_lea.vmem %s0, %s146
      %p148 = pneg %p35
      %p149 = pneg %p32
      %p150 = pneg %p56
      %p151 = pneg %p53
      %p152 = pneg %p77
      %p153 = pneg %p74
      %p154 = pneg %p103
      %p155 = pneg %p100
      %p156 = scmp.lt.s32.totalorder %s14, 1
      %s157 = scalar_select %p156, %s14, 1
      %s158 = smul.addr %s157, 10
      %s159 = smul.addr %s158, 4
      %s160 = scalar_lea.vmem %s3, %s159
      %p161 = scmp.lt.s32.totalorder %s14, 1
      %s162 = scalar_select %p161, %s14, 1
      %s163 = smul.addr %s162, 80
      %s164 = smul.addr %s163, 4
      %s165 = scalar_lea.vmem %s0, %s164
      %p166 = scmp.lt.s32.totalorder %s14, 1
      %s167 = scalar_select %p166, %s14, 1
      %s168 = smul.addr %s167, 10
      %s169 = smul.addr %s168, 4
      %s170 = scalar_lea.vmem %s3, %s169
      %v172 = vld [vmem:[%s1] sm:$0x3]
      %v173 = vld [vmem:[%s165] sm:$0xff]
      %v174 = vld [vmem:[%s165 + $0x8] sm:$0xff]
      %v175 = vld [vmem:[%s165 + $0x10] sm:$0xff]
      %v176 = vld [vmem:[%s165 + $0x18] sm:$0xff]
      %v177 = vld [vmem:[%s165 + $0x20] sm:$0xff]
      %v178 = vld [vmem:[%s165 + $0x28] sm:$0xff]
      %v179 = vld [vmem:[%s165 + $0x30] sm:$0xff]
      %v180 = vld [vmem:[%s165 + $0x38] sm:$0xff]
      %v181 = vld [vmem:[%s165 + $0x40] sm:$0xff]
      %v182 = vld [vmem:[%s165 + $0x48] sm:$0xff]
      %v183 = vld [vmem:[%s165 + $0x50] sm:$0xff]
      %v184 = vld [vmem:[%s165 + $0x58] sm:$0xff]
      %v185 = vld [vmem:[%s165 + $0x60] sm:$0xff]
      %v186 = vld [vmem:[%s165 + $0x68] sm:$0xff]
      %v187 = vld [vmem:[%s165 + $0x70] sm:$0xff]
      %v188 = vld [vmem:[%s165 + $0x78] sm:$0xff]
      %v189 = vld [vmem:[%s165 + $0x80] sm:$0xff]
      %v190 = vld [vmem:[%s165 + $0x88] sm:$0xff]
      %v191 = vld [vmem:[%s165 + $0x90] sm:$0xff]
      %v192 = vld [vmem:[%s165 + $0x98] sm:$0xff]
      %v193 = vld [vmem:[%s165 + $0xa0] sm:$0xff]
      %v194 = vld [vmem:[%s165 + $0xa8] sm:$0xff]
      %v195 = vld [vmem:[%s165 + $0xb0] sm:$0xff]
      %v196 = vld [vmem:[%s165 + $0xb8] sm:$0xff]
      %v197 = vld [vmem:[%s165 + $0xc0] sm:$0xff]
      %v198 = vld [vmem:[%s165 + $0xc8] sm:$0xff]
      %v199 = vld [vmem:[%s165 + $0xd0] sm:$0xff]
      %v200 = vld [vmem:[%s165 + $0xd8] sm:$0xff]
      %v201 = vld [vmem:[%s165 + $0xe0] sm:$0xff]
      %v202 = vld [vmem:[%s165 + $0xe8] sm:$0xff]
      %v203 = vld [vmem:[%s165 + $0xf0] sm:$0xff]
      %v204 = vld [vmem:[%s165 + $0xf8] sm:$0xff]
      %v205 = vld [vmem:[%s165 + $0x100] sm:$0xff]
      %v206 = vld [vmem:[%s165 + $0x108] sm:$0xff]
      %v207 = vld [vmem:[%s165 + $0x110] sm:$0xff]
      %v208 = vld [vmem:[%s165 + $0x118] sm:$0xff]
      %v209 = vld [vmem:[%s165 + $0x120] sm:$0xff]
      %v210 = vld [vmem:[%s165 + $0x128] sm:$0xff]
      %v211 = vld [vmem:[%s165 + $0x130] sm:$0xff]
      %v212 = vld [vmem:[%s165 + $0x138] sm:$0xff]
      %v213 = vld [vmem:[%s2] sm:$0xf]
      %215 = vset.pattern.permute.xlu0 0
      %216 = vperm.xlu0 %215, %v213
      %v217 = vpop.permute.xlu0 %216
      %v259 = vunpack.c.l.b16 %v173
      %v260 = vunpack.c.h.b16 %v173
      %v261 = vunpack.c.l.b16 %v174
      %v262 = vunpack.c.h.b16 %v174
      %v263 = vunpack.c.l.b16 %v175
      %v264 = vunpack.c.h.b16 %v175
      %v265 = vunpack.c.l.b16 %v176
      %v266 = vunpack.c.h.b16 %v176
      %v267 = vunpack.c.l.b16 %v177
      %v268 = vunpack.c.h.b16 %v177
      %v269 = vunpack.c.l.b16 %v178
      %v270 = vunpack.c.h.b16 %v178
      %v271 = vunpack.c.l.b16 %v179
      %v272 = vunpack.c.h.b16 %v179
      %v273 = vunpack.c.l.b16 %v180
      %v274 = vunpack.c.h.b16 %v180
      %v275 = vunpack.c.l.b16 %v181
      %v276 = vunpack.c.h.b16 %v181
      %v277 = vunpack.c.l.b16 %v182
      %v278 = vunpack.c.h.b16 %v182
      %v279 = vunpack.c.l.b16 %v183
      %v280 = vunpack.c.h.b16 %v183
      %v281 = vunpack.c.l.b16 %v184
      %v282 = vunpack.c.h.b16 %v184
      %v283 = vunpack.c.l.b16 %v185
      %v284 = vunpack.c.h.b16 %v185
      %v285 = vunpack.c.l.b16 %v186
      %v286 = vunpack.c.h.b16 %v186
      %v287 = vunpack.c.l.b16 %v187
      %v288 = vunpack.c.h.b16 %v187
      %v289 = vunpack.c.l.b16 %v188
      %v290 = vunpack.c.h.b16 %v188
      %v291 = vunpack.c.l.b16 %v189
      %v292 = vunpack.c.h.b16 %v189
      %v293 = vunpack.c.l.b16 %v190
      %v294 = vunpack.c.h.b16 %v190
      %v295 = vunpack.c.l.b16 %v191
      %v296 = vunpack.c.h.b16 %v191
      %v297 = vunpack.c.l.b16 %v192
      %v298 = vunpack.c.h.b16 %v192
      %v299 = vunpack.c.l.b16 %v193
      %v300 = vunpack.c.h.b16 %v193
      %v301 = vunpack.c.l.b16 %v194
      %v302 = vunpack.c.h.b16 %v194
      %v303 = vunpack.c.l.b16 %v195
      %v304 = vunpack.c.h.b16 %v195
      %v305 = vunpack.c.l.b16 %v196
      %v306 = vunpack.c.h.b16 %v196
      %v307 = vunpack.c.l.b16 %v197
      %v308 = vunpack.c.h.b16 %v197
      %v309 = vunpack.c.l.b16 %v198
      %v310 = vunpack.c.h.b16 %v198
      %v311 = vunpack.c.l.b16 %v199
      %v312 = vunpack.c.h.b16 %v199
      %v313 = vunpack.c.l.b16 %v200
      %v314 = vunpack.c.h.b16 %v200
      %v315 = vunpack.c.l.b16 %v201
      %v316 = vunpack.c.h.b16 %v201
      %v317 = vunpack.c.l.b16 %v202
      %v318 = vunpack.c.h.b16 %v202
      %v319 = vunpack.c.l.b16 %v203
      %v320 = vunpack.c.h.b16 %v203
      %v321 = vunpack.c.l.b16 %v204
      %v322 = vunpack.c.h.b16 %v204
      %v323 = vunpack.c.l.b16 %v205
      %v324 = vunpack.c.h.b16 %v205
      %v325 = vunpack.c.l.b16 %v206
      %v326 = vunpack.c.h.b16 %v206
      %v327 = vunpack.c.l.b16 %v207
      %v328 = vunpack.c.h.b16 %v207
      %v329 = vunpack.c.l.b16 %v208
      %v330 = vunpack.c.h.b16 %v208
      %v331 = vunpack.c.l.b16 %v209
      %v332 = vunpack.c.h.b16 %v209
      %v333 = vunpack.c.l.b16 %v210
      %v334 = vunpack.c.h.b16 %v210
      %v335 = vunpack.c.l.b16 %v211
      %v336 = vunpack.c.h.b16 %v211
      %v337 = vunpack.c.l.b16 %v212
      %v338 = vunpack.c.h.b16 %v212
      %v339 = vpack.c.b16 %v269, %v259
      %v340 = vpack.c.b16 %v270, %v260
      %v341 = vpack.c.b16 %v271, %v261
      %v342 = vpack.c.b16 %v272, %v262
      %v343 = vpack.c.b16 %v273, %v263
      %v344 = vpack.c.b16 %v274, %v264
      %v345 = vpack.c.b16 %v275, %v265
      %v346 = vpack.c.b16 %v276, %v266
      %v347 = vpack.c.b16 %v277, %v267
      %v348 = vpack.c.b16 %v278, %v268
      %v349 = vpack.c.b16 %v289, %v279
      %v350 = vpack.c.b16 %v290, %v280
      %v351 = vpack.c.b16 %v291, %v281
      %v352 = vpack.c.b16 %v292, %v282
      %v353 = vpack.c.b16 %v293, %v283
      %v354 = vpack.c.b16 %v294, %v284
      %v355 = vpack.c.b16 %v295, %v285
      %v356 = vpack.c.b16 %v296, %v286
      %v357 = vpack.c.b16 %v297, %v287
      %v358 = vpack.c.b16 %v298, %v288
      %v359 = vpack.c.b16 %v309, %v299
      %v360 = vpack.c.b16 %v310, %v300
      %v361 = vpack.c.b16 %v311, %v301
      %v362 = vpack.c.b16 %v312, %v302
      %v363 = vpack.c.b16 %v313, %v303
      %v364 = vpack.c.b16 %v314, %v304
      %v365 = vpack.c.b16 %v315, %v305
      %v366 = vpack.c.b16 %v316, %v306
      %v367 = vpack.c.b16 %v317, %v307
      %v368 = vpack.c.b16 %v318, %v308
      %v369 = vpack.c.b16 %v329, %v319
      %v370 = vpack.c.b16 %v330, %v320
      %v371 = vpack.c.b16 %v331, %v321
      %v372 = vpack.c.b16 %v332, %v322
      %v373 = vpack.c.b16 %v333, %v323
      %v374 = vpack.c.b16 %v334, %v324
      %v375 = vpack.c.b16 %v335, %v325
      %v376 = vpack.c.b16 %v336, %v326
      %v377 = vpack.c.b16 %v337, %v327
      %v378 = vpack.c.b16 %v338, %v328
      %vm419 = vcmask 523264
      %v421 = vsel %vm419, %v172, 0
      %423 = vmatprep.subr.bf16.mxu0 %v340
      %424 = vmatpush1.bf16.msra.mxu0 %v339
      %425 = vmatprep.subr.bf16.mxu0 %v350
      %426 = vmatpush1.bf16.msra.mxu0 %v349
      %427 = vmatprep.subr.bf16.mxu0 %v360
      %428 = vmatpush1.bf16.msra.mxu0 %v359
      %429 = vmatprep.subr.bf16.mxu0 %v370
      %430 = vmatpush1.bf16.msra.mxu0 %v369
      %431 = vmatprep.subr.bf16.mxu0 0
      %432 = vmatpush1.bf16.msra.mxu0 0
      %433 = vmatprep.subr.bf16.mxu0 0
      %434 = vmatpush1.bf16.msra.mxu0 0
      %435 = vmatprep.subr.bf16.mxu0 0
      %436 = vmatpush1.bf16.msra.mxu0 0
      %437 = vmatprep.subr.bf16.mxu0 0
      %438 = vmatpush1.bf16.msra.mxu0 0
      %439 = vmatprep.subr.bf16.mxu0 0
      %440 = vmatpush1.bf16.msra.mxu0 0
      %441 = vmatprep.subr.bf16.mxu0 0
      %442 = vmatpush1.bf16.msra.mxu0 0
      %443 = vmatprep.subr.bf16.mxu0 0
      %444 = vmatpush1.bf16.msra.mxu0 0
      %445 = vmatprep.subr.bf16.mxu0 0
      %446 = vmatpush1.bf16.msra.mxu0 0
      %447 = vmatprep.subr.bf16.mxu0 0
      %448 = vmatpush1.bf16.msra.mxu0 0
      %449 = vmatprep.subr.bf16.mxu0 0
      %450 = vmatpush1.bf16.msra.mxu0 0
      %451 = vmatprep.subr.bf16.mxu0 0
      %452 = vmatpush1.bf16.msra.mxu0 0
      %453 = vmatprep.subr.bf16.mxu0 0
      %454 = vmatpush1.bf16.msra.mxu0 0
      %455 = vmatprep.mubr.bf16.mxu0 0
      %456 = vmatmul.mubr.bf16.gmra.mrb[0].mxu0 %v421
      %v457 = vpop.f32.mrb[0].mxu0
      %v458 = vadd.f32 %v217, %v457
      %v459 = vpop.f32.mrb[0].mxu0
      %v460 = vadd.f32 %v217, %v459
      %v461 = vpop.f32.mrb[0].mxu0
      %v462 = vpop.f32.mrb[0].mxu0
      %463 = vdwg.mxu0
      %464 = vmatprep.subr.bf16.mxu0 %v342
      %465 = vmatpush1.bf16.msra.mxu0 %v341
      %466 = vmatprep.subr.bf16.mxu0 %v352
      %467 = vmatpush1.bf16.msra.mxu0 %v351
      %468 = vmatprep.subr.bf16.mxu0 %v362
      %469 = vmatpush1.bf16.msra.mxu0 %v361
      %470 = vmatprep.subr.bf16.mxu0 %v372
      %471 = vmatpush1.bf16.msra.mxu0 %v371
      %472 = vmatprep.subr.bf16.mxu0 0
      %473 = vmatpush1.bf16.msra.mxu0 0
      %474 = vmatprep.subr.bf16.mxu0 0
      %475 = vmatpush1.bf16.msra.mxu0 0
      %476 = vmatprep.subr.bf16.mxu0 0
      %477 = vmatpush1.bf16.msra.mxu0 0
      %478 = vmatprep.subr.bf16.mxu0 0
      %479 = vmatpush1.bf16.msra.mxu0 0
      %480 = vmatprep.subr.bf16.mxu0 0
      %481 = vmatpush1.bf16.msra.mxu0 0
      %482 = vmatprep.subr.bf16.mxu0 0
      %483 = vmatpush1.bf16.msra.mxu0 0
      %484 = vmatprep.subr.bf16.mxu0 0
      %485 = vmatpush1.bf16.msra.mxu0 0
      %486 = vmatprep.subr.bf16.mxu0 0
      %487 = vmatpush1.bf16.msra.mxu0 0
      %488 = vmatprep.subr.bf16.mxu0 0
      %489 = vmatpush1.bf16.msra.mxu0 0
      %490 = vmatprep.subr.bf16.mxu0 0
      %491 = vmatpush1.bf16.msra.mxu0 0
      %492 = vmatprep.subr.bf16.mxu0 0
      %493 = vmatpush1.bf16.msra.mxu0 0
      %494 = vmatprep.subr.bf16.mxu0 0
      %495 = vmatpush1.bf16.msra.mxu0 0
      %496 = vmatprep.mubr.bf16.mxu0 0
      %497 = vmatmul.mubr.bf16.gmra.mrb[0].mxu0 %v421
      %v498 = vpop.f32.mrb[0].mxu0
      %v499 = vadd.f32 %v217, %v498
      %v500 = vpop.f32.mrb[0].mxu0
      %v501 = vadd.f32 %v217, %v500
      %v502 = vpop.f32.mrb[0].mxu0
      %v503 = vpop.f32.mrb[0].mxu0
      %504 = vdwg.mxu0
      %505 = vmatprep.subr.bf16.mxu0 %v344
      %506 = vmatpush1.bf16.msra.mxu0 %v343
      %507 = vmatprep.subr.bf16.mxu0 %v354
      %508 = vmatpush1.bf16.msra.mxu0 %v353
      %509 = vmatprep.subr.bf16.mxu0 %v364
      %510 = vmatpush1.bf16.msra.mxu0 %v363
      %511 = vmatprep.subr.bf16.mxu0 %v374
      %512 = vmatpush1.bf16.msra.mxu0 %v373
      %513 = vmatprep.subr.bf16.mxu0 0
      %514 = vmatpush1.bf16.msra.mxu0 0
      %515 = vmatprep.subr.bf16.mxu0 0
      %516 = vmatpush1.bf16.msra.mxu0 0
      %517 = vmatprep.subr.bf16.mxu0 0
      %518 = vmatpush1.bf16.msra.mxu0 0
      %519 = vmatprep.subr.bf16.mxu0 0
      %520 = vmatpush1.bf16.msra.mxu0 0
      %521 = vmatprep.subr.bf16.mxu0 0
      %522 = vmatpush1.bf16.msra.mxu0 0
      %523 = vmatprep.subr.bf16.mxu0 0
      %524 = vmatpush1.bf16.msra.mxu0 0
      %525 = vmatprep.subr.bf16.mxu0 0
      %526 = vmatpush1.bf16.msra.mxu0 0
      %527 = vmatprep.subr.bf16.mxu0 0
      %528 = vmatpush1.bf16.msra.mxu0 0
      %529 = vmatprep.subr.bf16.mxu0 0
      %530 = vmatpush1.bf16.msra.mxu0 0
      %531 = vmatprep.subr.bf16.mxu0 0
      %532 = vmatpush1.bf16.msra.mxu0 0
      %533 = vmatprep.subr.bf16.mxu0 0
      %534 = vmatpush1.bf16.msra.mxu0 0
      %535 = vmatprep.subr.bf16.mxu0 0
      %536 = vmatpush1.bf16.msra.mxu0 0
      %537 = vmatprep.mubr.bf16.mxu0 0
      %538 = vmatmul.mubr.bf16.gmra.mrb[0].mxu0 %v421
      %v539 = vpop.f32.mrb[0].mxu0
      %v540 = vadd.f32 %v217, %v539
      %v541 = vpop.f32.mrb[0].mxu0
      %v542 = vadd.f32 %v217, %v541
      %v543 = vpop.f32.mrb[0].mxu0
      %v544 = vpop.f32.mrb[0].mxu0
      %545 = vdwg.mxu0
      %546 = vmatprep.subr.bf16.mxu0 %v346
      %547 = vmatpush1.bf16.msra.mxu0 %v345
      %548 = vmatprep.subr.bf16.mxu0 %v356
      %549 = vmatpush1.bf16.msra.mxu0 %v355
      %550 = vmatprep.subr.bf16.mxu0 %v366
      %551 = vmatpush1.bf16.msra.mxu0 %v365
      %552 = vmatprep.subr.bf16.mxu0 %v376
      %553 = vmatpush1.bf16.msra.mxu0 %v375
      %554 = vmatprep.subr.bf16.mxu0 0
      %555 = vmatpush1.bf16.msra.mxu0 0
      %556 = vmatprep.subr.bf16.mxu0 0
      %557 = vmatpush1.bf16.msra.mxu0 0
      %558 = vmatprep.subr.bf16.mxu0 0
      %559 = vmatpush1.bf16.msra.mxu0 0
      %560 = vmatprep.subr.bf16.mxu0 0
      %561 = vmatpush1.bf16.msra.mxu0 0
      %562 = vmatprep.subr.bf16.mxu0 0
      %563 = vmatpush1.bf16.msra.mxu0 0
      %564 = vmatprep.subr.bf16.mxu0 0
      %565 = vmatpush1.bf16.msra.mxu0 0
      %566 = vmatprep.subr.bf16.mxu0 0
      %567 = vmatpush1.bf16.msra.mxu0 0
      %568 = vmatprep.subr.bf16.mxu0 0
      %569 = vmatpush1.bf16.msra.mxu0 0
      %570 = vmatprep.subr.bf16.mxu0 0
      %571 = vmatpush1.bf16.msra.mxu0 0
      %572 = vmatprep.subr.bf16.mxu0 0
      %573 = vmatpush1.bf16.msra.mxu0 0
      %574 = vmatprep.subr.bf16.mxu0 0
      %575 = vmatpush1.bf16.msra.mxu0 0
      %576 = vmatprep.subr.bf16.mxu0 0
      %577 = vmatpush1.bf16.msra.mxu0 0
      %578 = vmatprep.mubr.bf16.mxu0 0
      %579 = vmatmul.mubr.bf16.gmra.mrb[0].mxu0 %v421
      %v580 = vpop.f32.mrb[0].mxu0
      %v581 = vadd.f32 %v217, %v580
      %v582 = vpop.f32.mrb[0].mxu0
      %v583 = vadd.f32 %v217, %v582
      %v584 = vpop.f32.mrb[0].mxu0
      %v585 = vpop.f32.mrb[0].mxu0
      %586 = vdwg.mxu0
      %587 = vmatprep.subr.bf16.mxu0 %v348
      %588 = vmatpush1.bf16.msra.mxu0 %v347
      %589 = vmatprep.subr.bf16.mxu0 %v358
      %590 = vmatpush1.bf16.msra.mxu0 %v357
      %591 = vmatprep.subr.bf16.mxu0 %v368
      %592 = vmatpush1.bf16.msra.mxu0 %v367
      %593 = vmatprep.subr.bf16.mxu0 %v378
      %594 = vmatpush1.bf16.msra.mxu0 %v377
      %595 = vmatprep.subr.bf16.mxu0 0
      %596 = vmatpush1.bf16.msra.mxu0 0
      %597 = vmatprep.subr.bf16.mxu0 0
      %598 = vmatpush1.bf16.msra.mxu0 0
      %599 = vmatprep.subr.bf16.mxu0 0
      %600 = vmatpush1.bf16.msra.mxu0 0
      %601 = vmatprep.subr.bf16.mxu0 0
      %602 = vmatpush1.bf16.msra.mxu0 0
      %603 = vmatprep.subr.bf16.mxu0 0
      %604 = vmatpush1.bf16.msra.mxu0 0
      %605 = vmatprep.subr.bf16.mxu0 0
      %606 = vmatpush1.bf16.msra.mxu0 0
      %607 = vmatprep.subr.bf16.mxu0 0
      %608 = vmatpush1.bf16.msra.mxu0 0
      %609 = vmatprep.subr.bf16.mxu0 0
      %610 = vmatpush1.bf16.msra.mxu0 0
      %611 = vmatprep.subr.bf16.mxu0 0
      %612 = vmatpush1.bf16.msra.mxu0 0
      %613 = vmatprep.subr.bf16.mxu0 0
      %614 = vmatpush1.bf16.msra.mxu0 0
      %615 = vmatprep.subr.bf16.mxu0 0
      %616 = vmatpush1.bf16.msra.mxu0 0
      %617 = vmatprep.subr.bf16.mxu0 0
      %618 = vmatpush1.bf16.msra.mxu0 0
      %619 = vmatprep.mubr.bf16.mxu0 0
      %620 = vmatmul.mubr.bf16.gmra.mrb[0].mxu0 %v421
      %v621 = vpop.f32.mrb[0].mxu0
      %v622 = vadd.f32 %v217, %v621
      %v623 = vpop.f32.mrb[0].mxu0
      %v624 = vadd.f32 %v217, %v623
      %v625 = vpop.f32.mrb[0].mxu0
      %v626 = vpop.f32.mrb[0].mxu0
      %627 = vdwg.mxu0
      %v638 = vcombine.low %v458, %v460
      %v639 = vcombine.low %v499, %v501
      %v640 = vcombine.low %v540, %v542
      %v641 = vcombine.low %v581, %v583
      %v642 = vcombine.low %v622, %v624
      %648 = vst [vmem:[%s170] sm:$0xff] %v638
      %649 = vst [vmem:[%s170 + $0x8] sm:$0xff] %v639
      %650 = vst [vmem:[%s170 + $0x10] sm:$0xff] %v640
      %651 = vst [vmem:[%s170 + $0x18] sm:$0xff] %v641
      %vm652 = vcmask 1043456
      %vm653 = vcmask 596996
      %vm654 = vmor %vm653, %vm652
      %655 = vst.msk [vmem:[%s170 + $0x20] sm:$0xff] %vm654, %v642
      %p656 = scmp.lt.s32.totalorder %s14, 1
      %s657 = scalar_select %p656, %s14, 1
      %s658 = smul.addr %s657, 10
      %s659 = smul.addr %s658, 4
      %s660 = scalar_lea.vmem %s3, %s659
      // Predicated region
      $region33: #{generator_forward.7} parent=31 // pred_check
        %p661 = pneg %p100
      $region34: #{generator_forward.7} parent=31 // pred_check_branch
        %663 = sbr.rel (%p661) target = $region36
      $region35: #{generator_forward.7} parent=31 // pred_region
        _
      $region36: #{generator_forward.7} parent=31 // pred_fallthru
        _
    $region32: #{generator_forward.7} parent=5 // pred_fallthru
      _
    %p664 = scmp.le.s32.totalorder 2, %s9
    // Predicated region
    $region37: #{generator_forward.7} parent=5 // pred_check
      %p665 = pneg %p664
    $region38: #{generator_forward.7} parent=5 // pred_check_branch
      %667 = sbr.rel (%p665) target = $region40
    $region39: #{generator_forward.7} parent=5 // pred_region
      %s668 = ssub.s32 %s9, 2
      // Predicated region
      $region41: #{generator_forward.7} parent=39 // pred_check
        %p669 = pneg %p106
      $region42: #{generator_forward.7} parent=39 // pred_check_branch
        %671 = sbr.rel (%p669) target = $region44
      $region43: #{generator_forward.7} parent=39 // pred_region
        %p672 = scmp.lt.s32.totalorder %s15, 1
        %s673 = scalar_select %p672, %s15, 1
        %s674 = smul.addr %s673, 10
        %s675 = smul.addr %s674, 4
        %s676 = scalar_lea.vmem %s3, %s675
      $region44: #{generator_forward.7} parent=39 // pred_fallthru
        _
    $region40: #{generator_forward.7} parent=5 // pred_fallthru
      _
  $region6: #{generator_forward.7} parent=0 // loop_footer
    %s13 = sadd.s32 1, %s9
  $region7: #{generator_forward.7} parent=0 // loop_footer_branch
    %8 = sbr.rel target = $region3
  $region8: #{generator_forward.7} parent=0 // loop_exit
    _

</llo_original>
